<compile_context>
chip_gen: v7x
topology: tpu7x:2x2x1
jax: 0.10.0
libtpu: 0.0.40
codegen_flags: <defaults>
</compile_context>

<pallas_src>
import functools

import jax
import jax.numpy as jnp
from jax.experimental import pallas as pl
from jax.experimental.pallas import tpu as pltpu

CHUNK = 512  # lane width of one in-kernel spatial slab (multiple of 128)


def _num_tensorcores() -> int:
    """Best-effort TensorCore-per-chip query; conservatively falls back to 1."""
    get_info = getattr(pltpu, "get_tpu_info", None)
    if get_info is None:
        return 1
    try:
        info = get_info()
    except Exception:
        return 1
    for name in ("num_cores", "core_count", "num_tensorcores", "tensor_cores",
                 "cores_per_chip"):
        v = getattr(info, name, None)
        if isinstance(v, int) and v >= 1:
            return v
    return 1


def _front_conv_eq(x):
    """Exact-equality feature map, (B, 9, L) bool.  Mirrors FrontConv.forward."""
    B, C, H, Wd = x.shape
    assert C == 2, "FrontConv expects 2 input channels"
    Ho, Wo = H - 2, Wd - 2
    assert Ho > 0 and Wo > 0, "FrontConv needs H > 2 and W > 2"
    center = x[:, 0, 1:1 + Ho, 1:1 + Wo]                       # (B, Ho, Wo)
    after = jnp.stack([x[:, 1, ki:ki + Ho, kj:kj + Wo]
                       for ki in range(3) for kj in range(3)], axis=1)
    # torch.isclose(rtol=0, atol=0) == exact equality
    return (after == center[:, None, :, :]).reshape(B, 9, Ho * Wo)


def front_conv(x):
    """FrontConv.forward equivalent: (B, L, 9) float32 equality map."""
    return jnp.transpose(_front_conv_eq(x), (0, 2, 1)).astype(jnp.float32)


def _orientation_kernel(eq_ref, s0_ref, ds_ref, out_ref, *,
                        dendrite, n_chunks, chunk, part_len, true_len, num_parts):
    """One partition of the OrientationNet hot path (single grid step).

    eq_ref : VMEM (9, B, part_len) int8 -- FrontConv features, tap-major
    s0_ref : VMEM (D, 9, 8, 1)     f32  -- sigmoid(-q*k)
    ds_ref : VMEM (D, 9, 8, 1)     f32  -- sigmoid((W-q)*k) - sigmoid(-q*k)
    out_ref: VMEM (B, 8)           f32  -- this partition's partial output
    """
    B = eq_ref.shape[1]
    p = pl.program_id(0)
    out_ref[...] = jnp.zeros_like(out_ref)

    def chunk_soma(off):
        """soma (B, 8, chunk) for the slab starting at local lane offset `off`."""
        menb = None
        for d in range(dendrite):                       # DConvMenb: sum over dendrites
            dend = None
            for i in range(9):                          # DConvDend: 9-tap product
                # per-tap slice + cast keeps only one tap live (rev #3)
                eqf = eq_ref[i, :, pl.ds(off, chunk)].astype(jnp.float32)
                eqf = eqf[:, None, :]                   # (B, 1, chunk), values in {0, 1}
                # DConvSynaps: sigmoid((eq*W - q)*k) == s0 + eq*(s1 - s0) for eq in {0,1};
                # (1, 8, 1) tables splat in-register along lanes/batch.
                s = s0_ref[d, i][None] + eqf * ds_ref[d, i][None]   # (B, 8, chunk)
                dend = s if dend is None else dend * s
            menb = dend if menb is None else menb + dend
        # DConvSoma: sigmoid((menb - 0.5) * 10).  exp -> EUP; exact divide (approx
        # reciprocal rejected: error would be amplified by the L-sized sum).
        return 1.0 / (1.0 + jnp.exp((0.5 - menb) * 10.0))          # (B, 8, chunk)

    for c in range(n_chunks):
        off = c * chunk                                  # local (per-partition) offset
        if num_parts == 1:
            # everything is static: classify the slab at trace time
            start = off
            if start >= true_len:
                continue                                 # fully padded slab
            soma = chunk_soma(off)
            if start + chunk <= true_len:
                out_ref[...] += jnp.sum(soma, axis=-1)   # interior slab: no mask
            else:
                lane = jax.lax.broadcasted_iota(jnp.int32, (1, 1, chunk), 2)
                m = (lane < (true_len - start)).astype(jnp.float32)
                out_ref[...] += jnp.sum(soma * m, axis=-1)
        else:
            if off >= true_len:
                continue                                 # padded for every partition
            if (num_parts - 1) * part_len + off + chunk <= true_len:
                soma = chunk_soma(off)                   # full for every partition
                out_ref[...] += jnp.sum(soma, axis=-1)
            else:
                rem = true_len - (p * part_len + off)    # traced scalar

                @pl.when(rem > 0)                        # skip fully padded slabs
                def _(off=off, rem=rem):
                    soma = chunk_soma(off)
                    lane = jax.lax.broadcasted_iota(jnp.int32, (1, 1, chunk), 2)
                    m = (lane < rem).astype(jnp.float32)
                    out_ref[...] += jnp.sum(soma * m, axis=-1)


def orientation_forward(x, W, q, k=10.0, *, num_cores=None, chunk=CHUNK):
    """x: (B, 2, H, W) float32 NCHW.  Returns (B, 8) float32."""
    B = x.shape[0]
    eq_bool = _front_conv_eq(x)                           # (B, 9, L) bool
    L = eq_bool.shape[-1]
    eq = jnp.transpose(eq_bool, (1, 0, 2)).astype(jnp.int8)   # (9, B, L) tap-major int8

    chunks_total = pl.cdiv(L, chunk)
    P = _num_tensorcores() if num_cores is None else int(num_cores)
    P = max(1, min(P, 2, chunks_total))                   # gate on real core count (rev #5)
    n_chunks = pl.cdiv(chunks_total, P)                   # slabs per partition
    part_len = n_chunks * chunk
    Lpad = P * part_len
    eq = jnp.pad(eq, ((0, 0), (0, 0), (0, Lpad - L)))

    D = W.shape[0]
    kf = float(k)
    # the only two possible synapse-sigmoid values (eq is binary), shipped tiny (rev #1)
    s0 = jax.nn.sigmoid(-q * kf).astype(jnp.float32)[..., None]            # (D, 9, 8, 1)
    ds = jax.nn.sigmoid((W - q) * kf).astype(jnp.float32)[..., None] - s0  # (D, 9, 8, 1)

    kernel = functools.partial(_orientation_kernel, dendrite=D, n_chunks=n_chunks,
                               chunk=chunk, part_len=part_len, true_len=L,
                               num_parts=P)

    out_parts = pl.pallas_call(
        kernel,
        out_shape=jax.ShapeDtypeStruct((P, B, 8), jnp.float32),
        grid=(P,),
        in_specs=[
            pl.BlockSpec((9, B, part_len), lambda p: (0, 0, p)),
            pl.BlockSpec((D, 9, 8, 1), lambda p: (0, 0, 0, 0)),
            pl.BlockSpec((D, 9, 8, 1), lambda p: (0, 0, 0, 0)),
        ],
        out_specs=pl.BlockSpec((None, B, 8), lambda p: (p, 0, 0)),
        compiler_params=pltpu.CompilerParams(
            dimension_semantics=("parallel",),
            vmem_limit_bytes=32 * 1024 * 1024),
    )(eq, s0, ds)

    return jnp.sum(out_parts, axis=0)                     # (B, 8)


def orientation_reference(x, W, q, k=10.0):
    """Pure-JAX reference mirroring the PyTorch modules exactly."""
    eq = front_conv(x)                                    # (B, L, 9)  FrontConv output
    s = jax.nn.sigmoid((eq[:, :, None, :, None] * W[None, None]
                        - q[None, None]) * k)             # (B, L, D, 9, 8)
    dend = jnp.prod(s, axis=3)                            # (B, L, D, 8)
    menb = jnp.sum(dend, axis=2)                          # (B, L, 8)
    soma = jax.nn.sigmoid((menb - 0.5) * 10.0)            # (B, L, 8)
    return jnp.sum(soma, axis=1)                          # (B, 8)


if __name__ == "__main__":
    key = jax.random.PRNGKey(0)
    kx, kw, kq = jax.random.split(key, 3)

    B, C, H, Wd = 2, 2, 48, 48
    # quantize the input so the exact-equality test (isclose atol=rtol=0) fires
    x = (jnp.round(jax.random.uniform(kx, (B, C, H, Wd)) * 3.0) / 3.0
         ).astype(jnp.float32)

    # deterministic parameter init matching DConvSynaps.__init__:
    #   W = 0.01 * randn(dendrite, 9, 8) + 0.2 ; q = 0.01 * randn(...) + 0
    dendrite, init_w_mul, init_w_add, init_q, k = 1, 0.01, 0.2, 0.0, 10.0
    Wp = (init_w_mul * jax.random.normal(kw, (dendrite, 9, 8))
          + init_w_add).astype(jnp.float32)
    qp = (init_w_mul * jax.random.normal(kq, (dendrite, 9, 8))
          + init_q).astype(jnp.float32)

    out = orientation_forward(x, Wp, qp, k=k)
    out = jax.block_until_ready(out)

    ref = orientation_reference(x, Wp, qp, k=k)
    assert out.shape == (B, 8)
    if not bool(jnp.allclose(out, ref, atol=1e-3, rtol=1e-4)):
        raise AssertionError("Pallas kernel does not match JAX reference")
    print("KERNEL_OK")
</pallas_src>

<mosaic_0001>
module attributes {stable_mosaic.version = 11 : i64} {
  func.func @_orientation_kernel(%arg0: i32, %arg1: memref<9x2x2560xi8, #tpu.memory_space<vmem>>, %arg2: memref<1x9x8x1xf32, #tpu.memory_space<vmem>>, %arg3: memref<1x9x8x1xf32, #tpu.memory_space<vmem>>, %arg4: memref<1x2x8xf32, #tpu.memory_space<vmem>>) attributes {dimension_semantics = [#tpu.dimension_semantics<parallel>], iteration_bounds = array<i64: 1>, scalar_prefetch = 0 : i64, scratch_operands = 0 : i64, tpu.core_type = #tpu.core_type<tc>, window_params = [{transform_indices = @transform_0, window_bounds = array<i64: 9, 2, 2560>}, {pipeline_mode = #tpu.pipeline_mode<synchronous>, transform_indices = @transform_1, window_bounds = array<i64: 1, 9, 8, 1>}, {pipeline_mode = #tpu.pipeline_mode<synchronous>, transform_indices = @transform_2, window_bounds = array<i64: 1, 9, 8, 1>}, {transform_indices = @transform_3, window_bounds = array<i64: 1, 2, 8>}]} {
    %cst = arith.constant 0.000000e+00 : f32
    %0 = vector.broadcast %cst : f32 to vector<2x8xf32>
    %c0 = arith.constant 0 : index
    %c0_0 = arith.constant 0 : index
    %c0_1 = arith.constant 0 : index
    %1 = vector.load %arg4[%c0, %c0_0, %c0_1] : memref<1x2x8xf32, #tpu.memory_space<vmem>>, vector<1x2x8xf32>
    %2 = vector.shape_cast %1 : vector<1x2x8xf32> to vector<2x8xf32>
    %3 = vector.shape_cast %0 : vector<2x8xf32> to vector<1x2x8xf32>
    tpu.vector_store %arg4[%c0, %c0_0, %c0_1], %3 {strides = array<i32>} : memref<1x2x8xf32, #tpu.memory_space<vmem>>, vector<1x2x8xf32>,
    %c0_2 = arith.constant 0 : index
    %c0_3 = arith.constant 0 : index
    %c0_4 = arith.constant 0 : index
    %4 = vector.load %arg1[%c0_2, %c0_3, %c0_4] : memref<9x2x2560xi8, #tpu.memory_space<vmem>>, vector<1x2x512xi8>
    %5 = vector.shape_cast %4 : vector<1x2x512xi8> to vector<2x512xi8>
    %6 = arith.sitofp %5 : vector<2x512xi8> to vector<2x512xf32>
    %7 = vector.shape_cast %6 : vector<2x512xf32> to vector<2x1x512xf32>
    %c0_5 = arith.constant 0 : index
    %c0_6 = arith.constant 0 : index
    %c0_7 = arith.constant 0 : index
    %c0_8 = arith.constant 0 : index
    %8 = vector.load %arg2[%c0_5, %c0_6, %c0_7, %c0_8] : memref<1x9x8x1xf32, #tpu.memory_space<vmem>>, vector<1x1x8x1xf32>
    %9 = vector.shape_cast %8 : vector<1x1x8x1xf32> to vector<8x1xf32>
    %10 = vector.shape_cast %9 : vector<8x1xf32> to vector<1x8x1xf32>
    %c0_9 = arith.constant 0 : index
    %c0_10 = arith.constant 0 : index
    %c0_11 = arith.constant 0 : index
    %c0_12 = arith.constant 0 : index
    %11 = vector.load %arg3[%c0_9, %c0_10, %c0_11, %c0_12] : memref<1x9x8x1xf32, #tpu.memory_space<vmem>>, vector<1x1x8x1xf32>
    %12 = vector.shape_cast %11 : vector<1x1x8x1xf32> to vector<8x1xf32>
    %13 = vector.shape_cast %12 : vector<8x1xf32> to vector<1x8x1xf32>
    %14 = vector.broadcast %7 : vector<2x1x512xf32> to vector<2x8x512xf32>
    %15 = vector.broadcast %13 : vector<1x8x1xf32> to vector<2x8x512xf32>
    %16 = arith.mulf %14, %15 : vector<2x8x512xf32>
    %17 = vector.broadcast %10 : vector<1x8x1xf32> to vector<2x8x512xf32>
    %18 = arith.addf %17, %16 : vector<2x8x512xf32>
    %c1 = arith.constant 1 : index
    %c0_13 = arith.constant 0 : index
    %c0_14 = arith.constant 0 : index
    %19 = vector.load %arg1[%c1, %c0_13, %c0_14] : memref<9x2x2560xi8, #tpu.memory_space<vmem>>, vector<1x2x512xi8>
    %20 = vector.shape_cast %19 : vector<1x2x512xi8> to vector<2x512xi8>
    %21 = arith.sitofp %20 : vector<2x512xi8> to vector<2x512xf32>
    %22 = vector.shape_cast %21 : vector<2x512xf32> to vector<2x1x512xf32>
    %c0_15 = arith.constant 0 : index
    %c1_16 = arith.constant 1 : index
    %c0_17 = arith.constant 0 : index
    %c0_18 = arith.constant 0 : index
    %23 = vector.load %arg2[%c0_15, %c1_16, %c0_17, %c0_18] : memref<1x9x8x1xf32, #tpu.memory_space<vmem>>, vector<1x1x8x1xf32>
    %24 = vector.shape_cast %23 : vector<1x1x8x1xf32> to vector<8x1xf32>
    %25 = vector.shape_cast %24 : vector<8x1xf32> to vector<1x8x1xf32>
    %c0_19 = arith.constant 0 : index
    %c1_20 = arith.constant 1 : index
    %c0_21 = arith.constant 0 : index
    %c0_22 = arith.constant 0 : index
    %26 = vector.load %arg3[%c0_19, %c1_20, %c0_21, %c0_22] : memref<1x9x8x1xf32, #tpu.memory_space<vmem>>, vector<1x1x8x1xf32>
    %27 = vector.shape_cast %26 : vector<1x1x8x1xf32> to vector<8x1xf32>
    %28 = vector.shape_cast %27 : vector<8x1xf32> to vector<1x8x1xf32>
    %29 = vector.broadcast %22 : vector<2x1x512xf32> to vector<2x8x512xf32>
    %30 = vector.broadcast %28 : vector<1x8x1xf32> to vector<2x8x512xf32>
    %31 = arith.mulf %29, %30 : vector<2x8x512xf32>
    %32 = vector.broadcast %25 : vector<1x8x1xf32> to vector<2x8x512xf32>
    %33 = arith.addf %32, %31 : vector<2x8x512xf32>
    %34 = arith.mulf %18, %33 : vector<2x8x512xf32>
    %c2 = arith.constant 2 : index
    %c0_23 = arith.constant 0 : index
    %c0_24 = arith.constant 0 : index
    %35 = vector.load %arg1[%c2, %c0_23, %c0_24] : memref<9x2x2560xi8, #tpu.memory_space<vmem>>, vector<1x2x512xi8>
    %36 = vector.shape_cast %35 : vector<1x2x512xi8> to vector<2x512xi8>
    %37 = arith.sitofp %36 : vector<2x512xi8> to vector<2x512xf32>
    %38 = vector.shape_cast %37 : vector<2x512xf32> to vector<2x1x512xf32>
    %c0_25 = arith.constant 0 : index
    %c2_26 = arith.constant 2 : index
    %c0_27 = arith.constant 0 : index
    %c0_28 = arith.constant 0 : index
    %39 = vector.load %arg2[%c0_25, %c2_26, %c0_27, %c0_28] : memref<1x9x8x1xf32, #tpu.memory_space<vmem>>, vector<1x1x8x1xf32>
    %40 = vector.shape_cast %39 : vector<1x1x8x1xf32> to vector<8x1xf32>
    %41 = vector.shape_cast %40 : vector<8x1xf32> to vector<1x8x1xf32>
    %c0_29 = arith.constant 0 : index
    %c2_30 = arith.constant 2 : index
    %c0_31 = arith.constant 0 : index
    %c0_32 = arith.constant 0 : index
    %42 = vector.load %arg3[%c0_29, %c2_30, %c0_31, %c0_32] : memref<1x9x8x1xf32, #tpu.memory_space<vmem>>, vector<1x1x8x1xf32>
    %43 = vector.shape_cast %42 : vector<1x1x8x1xf32> to vector<8x1xf32>
    %44 = vector.shape_cast %43 : vector<8x1xf32> to vector<1x8x1xf32>
    %45 = vector.broadcast %38 : vector<2x1x512xf32> to vector<2x8x512xf32>
    %46 = vector.broadcast %44 : vector<1x8x1xf32> to vector<2x8x512xf32>
    %47 = arith.mulf %45, %46 : vector<2x8x512xf32>
    %48 = vector.broadcast %41 : vector<1x8x1xf32> to vector<2x8x512xf32>
    %49 = arith.addf %48, %47 : vector<2x8x512xf32>
    %50 = arith.mulf %34, %49 : vector<2x8x512xf32>
    %c3 = arith.constant 3 : index
    %c0_33 = arith.constant 0 : index
    %c0_34 = arith.constant 0 : index
    %51 = vector.load %arg1[%c3, %c0_33, %c0_34] : memref<9x2x2560xi8, #tpu.memory_space<vmem>>, vector<1x2x512xi8>
    %52 = vector.shape_cast %51 : vector<1x2x512xi8> to vector<2x512xi8>
    %53 = arith.sitofp %52 : vector<2x512xi8> to vector<2x512xf32>
    %54 = vector.shape_cast %53 : vector<2x512xf32> to vector<2x1x512xf32>
    %c0_35 = arith.constant 0 : index
    %c3_36 = arith.constant 3 : index
    %c0_37 = arith.constant 0 : index
    %c0_38 = arith.constant 0 : index
    %55 = vector.load %arg2[%c0_35, %c3_36, %c0_37, %c0_38] : memref<1x9x8x1xf32, #tpu.memory_space<vmem>>, vector<1x1x8x1xf32>
    %56 = vector.shape_cast %55 : vector<1x1x8x1xf32> to vector<8x1xf32>
    %57 = vector.shape_cast %56 : vector<8x1xf32> to vector<1x8x1xf32>
    %c0_39 = arith.constant 0 : index
    %c3_40 = arith.constant 3 : index
    %c0_41 = arith.constant 0 : index
    %c0_42 = arith.constant 0 : index
    %58 = vector.load %arg3[%c0_39, %c3_40, %c0_41, %c0_42] : memref<1x9x8x1xf32, #tpu.memory_space<vmem>>, vector<1x1x8x1xf32>
    %59 = vector.shape_cast %58 : vector<1x1x8x1xf32> to vector<8x1xf32>
    %60 = vector.shape_cast %59 : vector<8x1xf32> to vector<1x8x1xf32>
    %61 = vector.broadcast %54 : vector<2x1x512xf32> to vector<2x8x512xf32>
    %62 = vector.broadcast %60 : vector<1x8x1xf32> to vector<2x8x512xf32>
    %63 = arith.mulf %61, %62 : vector<2x8x512xf32>
    %64 = vector.broadcast %57 : vector<1x8x1xf32> to vector<2x8x512xf32>
    %65 = arith.addf %64, %63 : vector<2x8x512xf32>
    %66 = arith.mulf %50, %65 : vector<2x8x512xf32>
    %c4 = arith.constant 4 : index
    %c0_43 = arith.constant 0 : index
    %c0_44 = arith.constant 0 : index
    %67 = vector.load %arg1[%c4, %c0_43, %c0_44] : memref<9x2x2560xi8, #tpu.memory_space<vmem>>, vector<1x2x512xi8>
    %68 = vector.shape_cast %67 : vector<1x2x512xi8> to vector<2x512xi8>
    %69 = arith.sitofp %68 : vector<2x512xi8> to vector<2x512xf32>
    %70 = vector.shape_cast %69 : vector<2x512xf32> to vector<2x1x512xf32>
    %c0_45 = arith.constant 0 : index
    %c4_46 = arith.constant 4 : index
    %c0_47 = arith.constant 0 : index
    %c0_48 = arith.constant 0 : index
    %71 = vector.load %arg2[%c0_45, %c4_46, %c0_47, %c0_48] : memref<1x9x8x1xf32, #tpu.memory_space<vmem>>, vector<1x1x8x1xf32>
    %72 = vector.shape_cast %71 : vector<1x1x8x1xf32> to vector<8x1xf32>
    %73 = vector.shape_cast %72 : vector<8x1xf32> to vector<1x8x1xf32>
    %c0_49 = arith.constant 0 : index
    %c4_50 = arith.constant 4 : index
    %c0_51 = arith.constant 0 : index
    %c0_52 = arith.constant 0 : index
    %74 = vector.load %arg3[%c0_49, %c4_50, %c0_51, %c0_52] : memref<1x9x8x1xf32, #tpu.memory_space<vmem>>, vector<1x1x8x1xf32>
    %75 = vector.shape_cast %74 : vector<1x1x8x1xf32> to vector<8x1xf32>
    %76 = vector.shape_cast %75 : vector<8x1xf32> to vector<1x8x1xf32>
    %77 = vector.broadcast %70 : vector<2x1x512xf32> to vector<2x8x512xf32>
    %78 = vector.broadcast %76 : vector<1x8x1xf32> to vector<2x8x512xf32>
    %79 = arith.mulf %77, %78 : vector<2x8x512xf32>
    %80 = vector.broadcast %73 : vector<1x8x1xf32> to vector<2x8x512xf32>
    %81 = arith.addf %80, %79 : vector<2x8x512xf32>
    %82 = arith.mulf %66, %81 : vector<2x8x512xf32>
    %c5 = arith.constant 5 : index
    %c0_53 = arith.constant 0 : index
    %c0_54 = arith.constant 0 : index
    %83 = vector.load %arg1[%c5, %c0_53, %c0_54] : memref<9x2x2560xi8, #tpu.memory_space<vmem>>, vector<1x2x512xi8>
    %84 = vector.shape_cast %83 : vector<1x2x512xi8> to vector<2x512xi8>
    %85 = arith.sitofp %84 : vector<2x512xi8> to vector<2x512xf32>
    %86 = vector.shape_cast %85 : vector<2x512xf32> to vector<2x1x512xf32>
    %c0_55 = arith.constant 0 : index
    %c5_56 = arith.constant 5 : index
    %c0_57 = arith.constant 0 : index
    %c0_58 = arith.constant 0 : index
    %87 = vector.load %arg2[%c0_55, %c5_56, %c0_57, %c0_58] : memref<1x9x8x1xf32, #tpu.memory_space<vmem>>, vector<1x1x8x1xf32>
    %88 = vector.shape_cast %87 : vector<1x1x8x1xf32> to vector<8x1xf32>
    %89 = vector.shape_cast %88 : vector<8x1xf32> to vector<1x8x1xf32>
    %c0_59 = arith.constant 0 : index
    %c5_60 = arith.constant 5 : index
    %c0_61 = arith.constant 0 : index
    %c0_62 = arith.constant 0 : index
    %90 = vector.load %arg3[%c0_59, %c5_60, %c0_61, %c0_62] : memref<1x9x8x1xf32, #tpu.memory_space<vmem>>, vector<1x1x8x1xf32>
    %91 = vector.shape_cast %90 : vector<1x1x8x1xf32> to vector<8x1xf32>
    %92 = vector.shape_cast %91 : vector<8x1xf32> to vector<1x8x1xf32>
    %93 = vector.broadcast %86 : vector<2x1x512xf32> to vector<2x8x512xf32>
    %94 = vector.broadcast %92 : vector<1x8x1xf32> to vector<2x8x512xf32>
    %95 = arith.mulf %93, %94 : vector<2x8x512xf32>
    %96 = vector.broadcast %89 : vector<1x8x1xf32> to vector<2x8x512xf32>
    %97 = arith.addf %96, %95 : vector<2x8x512xf32>
    %98 = arith.mulf %82, %97 : vector<2x8x512xf32>
    %c6 = arith.constant 6 : index
    %c0_63 = arith.constant 0 : index
    %c0_64 = arith.constant 0 : index
    %99 = vector.load %arg1[%c6, %c0_63, %c0_64] : memref<9x2x2560xi8, #tpu.memory_space<vmem>>, vector<1x2x512xi8>
    %100 = vector.shape_cast %99 : vector<1x2x512xi8> to vector<2x512xi8>
    %101 = arith.sitofp %100 : vector<2x512xi8> to vector<2x512xf32>
    %102 = vector.shape_cast %101 : vector<2x512xf32> to vector<2x1x512xf32>
    %c0_65 = arith.constant 0 : index
    %c6_66 = arith.constant 6 : index
    %c0_67 = arith.constant 0 : index
    %c0_68 = arith.constant 0 : index
    %103 = vector.load %arg2[%c0_65, %c6_66, %c0_67, %c0_68] : memref<1x9x8x1xf32, #tpu.memory_space<vmem>>, vector<1x1x8x1xf32>
    %104 = vector.shape_cast %103 : vector<1x1x8x1xf32> to vector<8x1xf32>
    %105 = vector.shape_cast %104 : vector<8x1xf32> to vector<1x8x1xf32>
    %c0_69 = arith.constant 0 : index
    %c6_70 = arith.constant 6 : index
    %c0_71 = arith.constant 0 : index
    %c0_72 = arith.constant 0 : index
    %106 = vector.load %arg3[%c0_69, %c6_70, %c0_71, %c0_72] : memref<1x9x8x1xf32, #tpu.memory_space<vmem>>, vector<1x1x8x1xf32>
    %107 = vector.shape_cast %106 : vector<1x1x8x1xf32> to vector<8x1xf32>
    %108 = vector.shape_cast %107 : vector<8x1xf32> to vector<1x8x1xf32>
    %109 = vector.broadcast %102 : vector<2x1x512xf32> to vector<2x8x512xf32>
    %110 = vector.broadcast %108 : vector<1x8x1xf32> to vector<2x8x512xf32>
    %111 = arith.mulf %109, %110 : vector<2x8x512xf32>
    %112 = vector.broadcast %105 : vector<1x8x1xf32> to vector<2x8x512xf32>
    %113 = arith.addf %112, %111 : vector<2x8x512xf32>
    %114 = arith.mulf %98, %113 : vector<2x8x512xf32>
    %c7 = arith.constant 7 : index
    %c0_73 = arith.constant 0 : index
    %c0_74 = arith.constant 0 : index
    %115 = vector.load %arg1[%c7, %c0_73, %c0_74] : memref<9x2x2560xi8, #tpu.memory_space<vmem>>, vector<1x2x512xi8>
    %116 = vector.shape_cast %115 : vector<1x2x512xi8> to vector<2x512xi8>
    %117 = arith.sitofp %116 : vector<2x512xi8> to vector<2x512xf32>
    %118 = vector.shape_cast %117 : vector<2x512xf32> to vector<2x1x512xf32>
    %c0_75 = arith.constant 0 : index
    %c7_76 = arith.constant 7 : index
    %c0_77 = arith.constant 0 : index
    %c0_78 = arith.constant 0 : index
    %119 = vector.load %arg2[%c0_75, %c7_76, %c0_77, %c0_78] : memref<1x9x8x1xf32, #tpu.memory_space<vmem>>, vector<1x1x8x1xf32>
    %120 = vector.shape_cast %119 : vector<1x1x8x1xf32> to vector<8x1xf32>
    %121 = vector.shape_cast %120 : vector<8x1xf32> to vector<1x8x1xf32>
    %c0_79 = arith.constant 0 : index
    %c7_80 = arith.constant 7 : index
    %c0_81 = arith.constant 0 : index
    %c0_82 = arith.constant 0 : index
    %122 = vector.load %arg3[%c0_79, %c7_80, %c0_81, %c0_82] : memref<1x9x8x1xf32, #tpu.memory_space<vmem>>, vector<1x1x8x1xf32>
    %123 = vector.shape_cast %122 : vector<1x1x8x1xf32> to vector<8x1xf32>
    %124 = vector.shape_cast %123 : vector<8x1xf32> to vector<1x8x1xf32>
    %125 = vector.broadcast %118 : vector<2x1x512xf32> to vector<2x8x512xf32>
    %126 = vector.broadcast %124 : vector<1x8x1xf32> to vector<2x8x512xf32>
    %127 = arith.mulf %125, %126 : vector<2x8x512xf32>
    %128 = vector.broadcast %121 : vector<1x8x1xf32> to vector<2x8x512xf32>
    %129 = arith.addf %128, %127 : vector<2x8x512xf32>
    %130 = arith.mulf %114, %129 : vector<2x8x512xf32>
    %c8 = arith.constant 8 : index
    %c0_83 = arith.constant 0 : index
    %c0_84 = arith.constant 0 : index
    %131 = vector.load %arg1[%c8, %c0_83, %c0_84] : memref<9x2x2560xi8, #tpu.memory_space<vmem>>, vector<1x2x512xi8>
    %132 = vector.shape_cast %131 : vector<1x2x512xi8> to vector<2x512xi8>
    %133 = arith.sitofp %132 : vector<2x512xi8> to vector<2x512xf32>
    %134 = vector.shape_cast %133 : vector<2x512xf32> to vector<2x1x512xf32>
    %c0_85 = arith.constant 0 : index
    %c8_86 = arith.constant 8 : index
    %c0_87 = arith.constant 0 : index
    %c0_88 = arith.constant 0 : index
    %135 = vector.load %arg2[%c0_85, %c8_86, %c0_87, %c0_88] : memref<1x9x8x1xf32, #tpu.memory_space<vmem>>, vector<1x1x8x1xf32>
    %136 = vector.shape_cast %135 : vector<1x1x8x1xf32> to vector<8x1xf32>
    %137 = vector.shape_cast %136 : vector<8x1xf32> to vector<1x8x1xf32>
    %c0_89 = arith.constant 0 : index
    %c8_90 = arith.constant 8 : index
    %c0_91 = arith.constant 0 : index
    %c0_92 = arith.constant 0 : index
    %138 = vector.load %arg3[%c0_89, %c8_90, %c0_91, %c0_92] : memref<1x9x8x1xf32, #tpu.memory_space<vmem>>, vector<1x1x8x1xf32>
    %139 = vector.shape_cast %138 : vector<1x1x8x1xf32> to vector<8x1xf32>
    %140 = vector.shape_cast %139 : vector<8x1xf32> to vector<1x8x1xf32>
    %141 = vector.broadcast %134 : vector<2x1x512xf32> to vector<2x8x512xf32>
    %142 = vector.broadcast %140 : vector<1x8x1xf32> to vector<2x8x512xf32>
    %143 = arith.mulf %141, %142 : vector<2x8x512xf32>
    %144 = vector.broadcast %137 : vector<1x8x1xf32> to vector<2x8x512xf32>
    %145 = arith.addf %144, %143 : vector<2x8x512xf32>
    %146 = arith.mulf %130, %145 : vector<2x8x512xf32>
    %cst_93 = arith.constant 5.000000e-01 : f32
    %147 = vector.broadcast %cst_93 : f32 to vector<2x8x512xf32>
    %148 = arith.subf %147, %146 : vector<2x8x512xf32>
    %cst_94 = arith.constant 1.000000e+01 : f32
    %149 = vector.broadcast %cst_94 : f32 to vector<2x8x512xf32>
    %150 = arith.mulf %148, %149 : vector<2x8x512xf32>
    %151 = math.exp %150 : vector<2x8x512xf32>
    %cst_95 = arith.constant 1.000000e+00 : f32
    %152 = vector.broadcast %cst_95 : f32 to vector<2x8x512xf32>
    %153 = arith.addf %152, %151 : vector<2x8x512xf32>
    %cst_96 = arith.constant 1.000000e+00 : f32
    %154 = vector.broadcast %cst_96 : f32 to vector<2x8x512xf32>
    %155 = arith.divf %154, %153 : vector<2x8x512xf32>
    %c0_97 = arith.constant 0 : index
    %c0_98 = arith.constant 0 : index
    %c0_99 = arith.constant 0 : index
    %156 = vector.load %arg4[%c0_97, %c0_98, %c0_99] : memref<1x2x8xf32, #tpu.memory_space<vmem>>, vector<1x2x8xf32>
    %157 = vector.shape_cast %156 : vector<1x2x8xf32> to vector<2x8xf32>
    %cst_100 = arith.constant dense<0.000000e+00> : vector<2x8xf32>
    %158 = vector.multi_reduction <add>, %155, %cst_100 [2] : vector<2x8x512xf32> to vector<2x8xf32>
    %159 = arith.addf %157, %158 : vector<2x8xf32>
    %c0_101 = arith.constant 0 : index
    %c0_102 = arith.constant 0 : index
    %c0_103 = arith.constant 0 : index
    %160 = vector.load %arg4[%c0_101, %c0_102, %c0_103] : memref<1x2x8xf32, #tpu.memory_space<vmem>>, vector<1x2x8xf32>
    %161 = vector.shape_cast %160 : vector<1x2x8xf32> to vector<2x8xf32>
    %162 = vector.shape_cast %159 : vector<2x8xf32> to vector<1x2x8xf32>
    tpu.vector_store %arg4[%c0_101, %c0_102, %c0_103], %162 {strides = array<i32>} : memref<1x2x8xf32, #tpu.memory_space<vmem>>, vector<1x2x8xf32>,
    %c0_104 = arith.constant 0 : index
    %c0_105 = arith.constant 0 : index
    %c512 = arith.constant 512 : index
    %163 = vector.load %arg1[%c0_104, %c0_105, %c512] : memref<9x2x2560xi8, #tpu.memory_space<vmem>>, vector<1x2x512xi8>
    %164 = vector.shape_cast %163 : vector<1x2x512xi8> to vector<2x512xi8>
    %165 = arith.sitofp %164 : vector<2x512xi8> to vector<2x512xf32>
    %166 = vector.shape_cast %165 : vector<2x512xf32> to vector<2x1x512xf32>
    %c0_106 = arith.constant 0 : index
    %c0_107 = arith.constant 0 : index
    %c0_108 = arith.constant 0 : index
    %c0_109 = arith.constant 0 : index
    %167 = vector.load %arg2[%c0_106, %c0_107, %c0_108, %c0_109] : memref<1x9x8x1xf32, #tpu.memory_space<vmem>>, vector<1x1x8x1xf32>
    %168 = vector.shape_cast %167 : vector<1x1x8x1xf32> to vector<8x1xf32>
    %169 = vector.shape_cast %168 : vector<8x1xf32> to vector<1x8x1xf32>
    %c0_110 = arith.constant 0 : index
    %c0_111 = arith.constant 0 : index
    %c0_112 = arith.constant 0 : index
    %c0_113 = arith.constant 0 : index
    %170 = vector.load %arg3[%c0_110, %c0_111, %c0_112, %c0_113] : memref<1x9x8x1xf32, #tpu.memory_space<vmem>>, vector<1x1x8x1xf32>
    %171 = vector.shape_cast %170 : vector<1x1x8x1xf32> to vector<8x1xf32>
    %172 = vector.shape_cast %171 : vector<8x1xf32> to vector<1x8x1xf32>
    %173 = vector.broadcast %166 : vector<2x1x512xf32> to vector<2x8x512xf32>
    %174 = vector.broadcast %172 : vector<1x8x1xf32> to vector<2x8x512xf32>
    %175 = arith.mulf %173, %174 : vector<2x8x512xf32>
    %176 = vector.broadcast %169 : vector<1x8x1xf32> to vector<2x8x512xf32>
    %177 = arith.addf %176, %175 : vector<2x8x512xf32>
    %c1_114 = arith.constant 1 : index
    %c0_115 = arith.constant 0 : index
    %c512_116 = arith.constant 512 : index
    %178 = vector.load %arg1[%c1_114, %c0_115, %c512_116] : memref<9x2x2560xi8, #tpu.memory_space<vmem>>, vector<1x2x512xi8>
    %179 = vector.shape_cast %178 : vector<1x2x512xi8> to vector<2x512xi8>
    %180 = arith.sitofp %179 : vector<2x512xi8> to vector<2x512xf32>
    %181 = vector.shape_cast %180 : vector<2x512xf32> to vector<2x1x512xf32>
    %c0_117 = arith.constant 0 : index
    %c1_118 = arith.constant 1 : index
    %c0_119 = arith.constant 0 : index
    %c0_120 = arith.constant 0 : index
    %182 = vector.load %arg2[%c0_117, %c1_118, %c0_119, %c0_120] : memref<1x9x8x1xf32, #tpu.memory_space<vmem>>, vector<1x1x8x1xf32>
    %183 = vector.shape_cast %182 : vector<1x1x8x1xf32> to vector<8x1xf32>
    %184 = vector.shape_cast %183 : vector<8x1xf32> to vector<1x8x1xf32>
    %c0_121 = arith.constant 0 : index
    %c1_122 = arith.constant 1 : index
    %c0_123 = arith.constant 0 : index
    %c0_124 = arith.constant 0 : index
    %185 = vector.load %arg3[%c0_121, %c1_122, %c0_123, %c0_124] : memref<1x9x8x1xf32, #tpu.memory_space<vmem>>, vector<1x1x8x1xf32>
    %186 = vector.shape_cast %185 : vector<1x1x8x1xf32> to vector<8x1xf32>
    %187 = vector.shape_cast %186 : vector<8x1xf32> to vector<1x8x1xf32>
    %188 = vector.broadcast %181 : vector<2x1x512xf32> to vector<2x8x512xf32>
    %189 = vector.broadcast %187 : vector<1x8x1xf32> to vector<2x8x512xf32>
    %190 = arith.mulf %188, %189 : vector<2x8x512xf32>
    %191 = vector.broadcast %184 : vector<1x8x1xf32> to vector<2x8x512xf32>
    %192 = arith.addf %191, %190 : vector<2x8x512xf32>
    %193 = arith.mulf %177, %192 : vector<2x8x512xf32>
    %c2_125 = arith.constant 2 : index
    %c0_126 = arith.constant 0 : index
    %c512_127 = arith.constant 512 : index
    %194 = vector.load %arg1[%c2_125, %c0_126, %c512_127] : memref<9x2x2560xi8, #tpu.memory_space<vmem>>, vector<1x2x512xi8>
    %195 = vector.shape_cast %194 : vector<1x2x512xi8> to vector<2x512xi8>
    %196 = arith.sitofp %195 : vector<2x512xi8> to vector<2x512xf32>
    %197 = vector.shape_cast %196 : vector<2x512xf32> to vector<2x1x512xf32>
    %c0_128 = arith.constant 0 : index
    %c2_129 = arith.constant 2 : index
    %c0_130 = arith.constant 0 : index
    %c0_131 = arith.constant 0 : index
    %198 = vector.load %arg2[%c0_128, %c2_129, %c0_130, %c0_131] : memref<1x9x8x1xf32, #tpu.memory_space<vmem>>, vector<1x1x8x1xf32>
    %199 = vector.shape_cast %198 : vector<1x1x8x1xf32> to vector<8x1xf32>
    %200 = vector.shape_cast %199 : vector<8x1xf32> to vector<1x8x1xf32>
    %c0_132 = arith.constant 0 : index
    %c2_133 = arith.constant 2 : index
    %c0_134 = arith.constant 0 : index
    %c0_135 = arith.constant 0 : index
    %201 = vector.load %arg3[%c0_132, %c2_133, %c0_134, %c0_135] : memref<1x9x8x1xf32, #tpu.memory_space<vmem>>, vector<1x1x8x1xf32>
    %202 = vector.shape_cast %201 : vector<1x1x8x1xf32> to vector<8x1xf32>
    %203 = vector.shape_cast %202 : vector<8x1xf32> to vector<1x8x1xf32>
    %204 = vector.broadcast %197 : vector<2x1x512xf32> to vector<2x8x512xf32>
    %205 = vector.broadcast %203 : vector<1x8x1xf32> to vector<2x8x512xf32>
    %206 = arith.mulf %204, %205 : vector<2x8x512xf32>
    %207 = vector.broadcast %200 : vector<1x8x1xf32> to vector<2x8x512xf32>
    %208 = arith.addf %207, %206 : vector<2x8x512xf32>
    %209 = arith.mulf %193, %208 : vector<2x8x512xf32>
    %c3_136 = arith.constant 3 : index
    %c0_137 = arith.constant 0 : index
    %c512_138 = arith.constant 512 : index
    %210 = vector.load %arg1[%c3_136, %c0_137, %c512_138] : memref<9x2x2560xi8, #tpu.memory_space<vmem>>, vector<1x2x512xi8>
    %211 = vector.shape_cast %210 : vector<1x2x512xi8> to vector<2x512xi8>
    %212 = arith.sitofp %211 : vector<2x512xi8> to vector<2x512xf32>
    %213 = vector.shape_cast %212 : vector<2x512xf32> to vector<2x1x512xf32>
    %c0_139 = arith.constant 0 : index
    %c3_140 = arith.constant 3 : index
    %c0_141 = arith.constant 0 : index
    %c0_142 = arith.constant 0 : index
    %214 = vector.load %arg2[%c0_139, %c3_140, %c0_141, %c0_142] : memref<1x9x8x1xf32, #tpu.memory_space<vmem>>, vector<1x1x8x1xf32>
    %215 = vector.shape_cast %214 : vector<1x1x8x1xf32> to vector<8x1xf32>
    %216 = vector.shape_cast %215 : vector<8x1xf32> to vector<1x8x1xf32>
    %c0_143 = arith.constant 0 : index
    %c3_144 = arith.constant 3 : index
    %c0_145 = arith.constant 0 : index
    %c0_146 = arith.constant 0 : index
    %217 = vector.load %arg3[%c0_143, %c3_144, %c0_145, %c0_146] : memref<1x9x8x1xf32, #tpu.memory_space<vmem>>, vector<1x1x8x1xf32>
    %218 = vector.shape_cast %217 : vector<1x1x8x1xf32> to vector<8x1xf32>
    %219 = vector.shape_cast %218 : vector<8x1xf32> to vector<1x8x1xf32>
    %220 = vector.broadcast %213 : vector<2x1x512xf32> to vector<2x8x512xf32>
    %221 = vector.broadcast %219 : vector<1x8x1xf32> to vector<2x8x512xf32>
    %222 = arith.mulf %220, %221 : vector<2x8x512xf32>
    %223 = vector.broadcast %216 : vector<1x8x1xf32> to vector<2x8x512xf32>
    %224 = arith.addf %223, %222 : vector<2x8x512xf32>
    %225 = arith.mulf %209, %224 : vector<2x8x512xf32>
    %c4_147 = arith.constant 4 : index
    %c0_148 = arith.constant 0 : index
    %c512_149 = arith.constant 512 : index
    %226 = vector.load %arg1[%c4_147, %c0_148, %c512_149] : memref<9x2x2560xi8, #tpu.memory_space<vmem>>, vector<1x2x512xi8>
    %227 = vector.shape_cast %226 : vector<1x2x512xi8> to vector<2x512xi8>
    %228 = arith.sitofp %227 : vector<2x512xi8> to vector<2x512xf32>
    %229 = vector.shape_cast %228 : vector<2x512xf32> to vector<2x1x512xf32>
    %c0_150 = arith.constant 0 : index
    %c4_151 = arith.constant 4 : index
    %c0_152 = arith.constant 0 : index
    %c0_153 = arith.constant 0 : index
    %230 = vector.load %arg2[%c0_150, %c4_151, %c0_152, %c0_153] : memref<1x9x8x1xf32, #tpu.memory_space<vmem>>, vector<1x1x8x1xf32>
    %231 = vector.shape_cast %230 : vector<1x1x8x1xf32> to vector<8x1xf32>
    %232 = vector.shape_cast %231 : vector<8x1xf32> to vector<1x8x1xf32>
    %c0_154 = arith.constant 0 : index
    %c4_155 = arith.constant 4 : index
    %c0_156 = arith.constant 0 : index
    %c0_157 = arith.constant 0 : index
    %233 = vector.load %arg3[%c0_154, %c4_155, %c0_156, %c0_157] : memref<1x9x8x1xf32, #tpu.memory_space<vmem>>, vector<1x1x8x1xf32>
    %234 = vector.shape_cast %233 : vector<1x1x8x1xf32> to vector<8x1xf32>
    %235 = vector.shape_cast %234 : vector<8x1xf32> to vector<1x8x1xf32>
    %236 = vector.broadcast %229 : vector<2x1x512xf32> to vector<2x8x512xf32>
    %237 = vector.broadcast %235 : vector<1x8x1xf32> to vector<2x8x512xf32>
    %238 = arith.mulf %236, %237 : vector<2x8x512xf32>
    %239 = vector.broadcast %232 : vector<1x8x1xf32> to vector<2x8x512xf32>
    %240 = arith.addf %239, %238 : vector<2x8x512xf32>
    %241 = arith.mulf %225, %240 : vector<2x8x512xf32>
    %c5_158 = arith.constant 5 : index
    %c0_159 = arith.constant 0 : index
    %c512_160 = arith.constant 512 : index
    %242 = vector.load %arg1[%c5_158, %c0_159, %c512_160] : memref<9x2x2560xi8, #tpu.memory_space<vmem>>, vector<1x2x512xi8>
    %243 = vector.shape_cast %242 : vector<1x2x512xi8> to vector<2x512xi8>
    %244 = arith.sitofp %243 : vector<2x512xi8> to vector<2x512xf32>
    %245 = vector.shape_cast %244 : vector<2x512xf32> to vector<2x1x512xf32>
    %c0_161 = arith.constant 0 : index
    %c5_162 = arith.constant 5 : index
    %c0_163 = arith.constant 0 : index
    %c0_164 = arith.constant 0 : index
    %246 = vector.load %arg2[%c0_161, %c5_162, %c0_163, %c0_164] : memref<1x9x8x1xf32, #tpu.memory_space<vmem>>, vector<1x1x8x1xf32>
    %247 = vector.shape_cast %246 : vector<1x1x8x1xf32> to vector<8x1xf32>
    %248 = vector.shape_cast %247 : vector<8x1xf32> to vector<1x8x1xf32>
    %c0_165 = arith.constant 0 : index
    %c5_166 = arith.constant 5 : index
    %c0_167 = arith.constant 0 : index
    %c0_168 = arith.constant 0 : index
    %249 = vector.load %arg3[%c0_165, %c5_166, %c0_167, %c0_168] : memref<1x9x8x1xf32, #tpu.memory_space<vmem>>, vector<1x1x8x1xf32>
    %250 = vector.shape_cast %249 : vector<1x1x8x1xf32> to vector<8x1xf32>
    %251 = vector.shape_cast %250 : vector<8x1xf32> to vector<1x8x1xf32>
    %252 = vector.broadcast %245 : vector<2x1x512xf32> to vector<2x8x512xf32>
    %253 = vector.broadcast %251 : vector<1x8x1xf32> to vector<2x8x512xf32>
    %254 = arith.mulf %252, %253 : vector<2x8x512xf32>
    %255 = vector.broadcast %248 : vector<1x8x1xf32> to vector<2x8x512xf32>
    %256 = arith.addf %255, %254 : vector<2x8x512xf32>
    %257 = arith.mulf %241, %256 : vector<2x8x512xf32>
    %c6_169 = arith.constant 6 : index
    %c0_170 = arith.constant 0 : index
    %c512_171 = arith.constant 512 : index
    %258 = vector.load %arg1[%c6_169, %c0_170, %c512_171] : memref<9x2x2560xi8, #tpu.memory_space<vmem>>, vector<1x2x512xi8>
    %259 = vector.shape_cast %258 : vector<1x2x512xi8> to vector<2x512xi8>
    %260 = arith.sitofp %259 : vector<2x512xi8> to vector<2x512xf32>
    %261 = vector.shape_cast %260 : vector<2x512xf32> to vector<2x1x512xf32>
    %c0_172 = arith.constant 0 : index
    %c6_173 = arith.constant 6 : index
    %c0_174 = arith.constant 0 : index
    %c0_175 = arith.constant 0 : index
    %262 = vector.load %arg2[%c0_172, %c6_173, %c0_174, %c0_175] : memref<1x9x8x1xf32, #tpu.memory_space<vmem>>, vector<1x1x8x1xf32>
    %263 = vector.shape_cast %262 : vector<1x1x8x1xf32> to vector<8x1xf32>
    %264 = vector.shape_cast %263 : vector<8x1xf32> to vector<1x8x1xf32>
    %c0_176 = arith.constant 0 : index
    %c6_177 = arith.constant 6 : index
    %c0_178 = arith.constant 0 : index
    %c0_179 = arith.constant 0 : index
    %265 = vector.load %arg3[%c0_176, %c6_177, %c0_178, %c0_179] : memref<1x9x8x1xf32, #tpu.memory_space<vmem>>, vector<1x1x8x1xf32>
    %266 = vector.shape_cast %265 : vector<1x1x8x1xf32> to vector<8x1xf32>
    %267 = vector.shape_cast %266 : vector<8x1xf32> to vector<1x8x1xf32>
    %268 = vector.broadcast %261 : vector<2x1x512xf32> to vector<2x8x512xf32>
    %269 = vector.broadcast %267 : vector<1x8x1xf32> to vector<2x8x512xf32>
    %270 = arith.mulf %268, %269 : vector<2x8x512xf32>
    %271 = vector.broadcast %264 : vector<1x8x1xf32> to vector<2x8x512xf32>
    %272 = arith.addf %271, %270 : vector<2x8x512xf32>
    %273 = arith.mulf %257, %272 : vector<2x8x512xf32>
    %c7_180 = arith.constant 7 : index
    %c0_181 = arith.constant 0 : index
    %c512_182 = arith.constant 512 : index
    %274 = vector.load %arg1[%c7_180, %c0_181, %c512_182] : memref<9x2x2560xi8, #tpu.memory_space<vmem>>, vector<1x2x512xi8>
    %275 = vector.shape_cast %274 : vector<1x2x512xi8> to vector<2x512xi8>
    %276 = arith.sitofp %275 : vector<2x512xi8> to vector<2x512xf32>
    %277 = vector.shape_cast %276 : vector<2x512xf32> to vector<2x1x512xf32>
    %c0_183 = arith.constant 0 : index
    %c7_184 = arith.constant 7 : index
    %c0_185 = arith.constant 0 : index
    %c0_186 = arith.constant 0 : index
    %278 = vector.load %arg2[%c0_183, %c7_184, %c0_185, %c0_186] : memref<1x9x8x1xf32, #tpu.memory_space<vmem>>, vector<1x1x8x1xf32>
    %279 = vector.shape_cast %278 : vector<1x1x8x1xf32> to vector<8x1xf32>
    %280 = vector.shape_cast %279 : vector<8x1xf32> to vector<1x8x1xf32>
    %c0_187 = arith.constant 0 : index
    %c7_188 = arith.constant 7 : index
    %c0_189 = arith.constant 0 : index
    %c0_190 = arith.constant 0 : index
    %281 = vector.load %arg3[%c0_187, %c7_188, %c0_189, %c0_190] : memref<1x9x8x1xf32, #tpu.memory_space<vmem>>, vector<1x1x8x1xf32>
    %282 = vector.shape_cast %281 : vector<1x1x8x1xf32> to vector<8x1xf32>
    %283 = vector.shape_cast %282 : vector<8x1xf32> to vector<1x8x1xf32>
    %284 = vector.broadcast %277 : vector<2x1x512xf32> to vector<2x8x512xf32>
    %285 = vector.broadcast %283 : vector<1x8x1xf32> to vector<2x8x512xf32>
    %286 = arith.mulf %284, %285 : vector<2x8x512xf32>
    %287 = vector.broadcast %280 : vector<1x8x1xf32> to vector<2x8x512xf32>
    %288 = arith.addf %287, %286 : vector<2x8x512xf32>
    %289 = arith.mulf %273, %288 : vector<2x8x512xf32>
    %c8_191 = arith.constant 8 : index
    %c0_192 = arith.constant 0 : index
    %c512_193 = arith.constant 512 : index
    %290 = vector.load %arg1[%c8_191, %c0_192, %c512_193] : memref<9x2x2560xi8, #tpu.memory_space<vmem>>, vector<1x2x512xi8>
    %291 = vector.shape_cast %290 : vector<1x2x512xi8> to vector<2x512xi8>
    %292 = arith.sitofp %291 : vector<2x512xi8> to vector<2x512xf32>
    %293 = vector.shape_cast %292 : vector<2x512xf32> to vector<2x1x512xf32>
    %c0_194 = arith.constant 0 : index
    %c8_195 = arith.constant 8 : index
    %c0_196 = arith.constant 0 : index
    %c0_197 = arith.constant 0 : index
    %294 = vector.load %arg2[%c0_194, %c8_195, %c0_196, %c0_197] : memref<1x9x8x1xf32, #tpu.memory_space<vmem>>, vector<1x1x8x1xf32>
    %295 = vector.shape_cast %294 : vector<1x1x8x1xf32> to vector<8x1xf32>
    %296 = vector.shape_cast %295 : vector<8x1xf32> to vector<1x8x1xf32>
    %c0_198 = arith.constant 0 : index
    %c8_199 = arith.constant 8 : index
    %c0_200 = arith.constant 0 : index
    %c0_201 = arith.constant 0 : index
    %297 = vector.load %arg3[%c0_198, %c8_199, %c0_200, %c0_201] : memref<1x9x8x1xf32, #tpu.memory_space<vmem>>, vector<1x1x8x1xf32>
    %298 = vector.shape_cast %297 : vector<1x1x8x1xf32> to vector<8x1xf32>
    %299 = vector.shape_cast %298 : vector<8x1xf32> to vector<1x8x1xf32>
    %300 = vector.broadcast %293 : vector<2x1x512xf32> to vector<2x8x512xf32>
    %301 = vector.broadcast %299 : vector<1x8x1xf32> to vector<2x8x512xf32>
    %302 = arith.mulf %300, %301 : vector<2x8x512xf32>
    %303 = vector.broadcast %296 : vector<1x8x1xf32> to vector<2x8x512xf32>
    %304 = arith.addf %303, %302 : vector<2x8x512xf32>
    %305 = arith.mulf %289, %304 : vector<2x8x512xf32>
    %cst_202 = arith.constant 5.000000e-01 : f32
    %306 = vector.broadcast %cst_202 : f32 to vector<2x8x512xf32>
    %307 = arith.subf %306, %305 : vector<2x8x512xf32>
    %cst_203 = arith.constant 1.000000e+01 : f32
    %308 = vector.broadcast %cst_203 : f32 to vector<2x8x512xf32>
    %309 = arith.mulf %307, %308 : vector<2x8x512xf32>
    %310 = math.exp %309 : vector<2x8x512xf32>
    %cst_204 = arith.constant 1.000000e+00 : f32
    %311 = vector.broadcast %cst_204 : f32 to vector<2x8x512xf32>
    %312 = arith.addf %311, %310 : vector<2x8x512xf32>
    %cst_205 = arith.constant 1.000000e+00 : f32
    %313 = vector.broadcast %cst_205 : f32 to vector<2x8x512xf32>
    %314 = arith.divf %313, %312 : vector<2x8x512xf32>
    %c0_206 = arith.constant 0 : index
    %c0_207 = arith.constant 0 : index
    %c0_208 = arith.constant 0 : index
    %315 = vector.load %arg4[%c0_206, %c0_207, %c0_208] : memref<1x2x8xf32, #tpu.memory_space<vmem>>, vector<1x2x8xf32>
    %316 = vector.shape_cast %315 : vector<1x2x8xf32> to vector<2x8xf32>
    %cst_209 = arith.constant dense<0.000000e+00> : vector<2x8xf32>
    %317 = vector.multi_reduction <add>, %314, %cst_209 [2] : vector<2x8x512xf32> to vector<2x8xf32>
    %318 = arith.addf %316, %317 : vector<2x8xf32>
    %c0_210 = arith.constant 0 : index
    %c0_211 = arith.constant 0 : index
    %c0_212 = arith.constant 0 : index
    %319 = vector.load %arg4[%c0_210, %c0_211, %c0_212] : memref<1x2x8xf32, #tpu.memory_space<vmem>>, vector<1x2x8xf32>
    %320 = vector.shape_cast %319 : vector<1x2x8xf32> to vector<2x8xf32>
    %321 = vector.shape_cast %318 : vector<2x8xf32> to vector<1x2x8xf32>
    tpu.vector_store %arg4[%c0_210, %c0_211, %c0_212], %321 {strides = array<i32>} : memref<1x2x8xf32, #tpu.memory_space<vmem>>, vector<1x2x8xf32>,
    %c0_213 = arith.constant 0 : index
    %c0_214 = arith.constant 0 : index
    %c1024 = arith.constant 1024 : index
    %322 = vector.load %arg1[%c0_213, %c0_214, %c1024] : memref<9x2x2560xi8, #tpu.memory_space<vmem>>, vector<1x2x512xi8>
    %323 = vector.shape_cast %322 : vector<1x2x512xi8> to vector<2x512xi8>
    %324 = arith.sitofp %323 : vector<2x512xi8> to vector<2x512xf32>
    %325 = vector.shape_cast %324 : vector<2x512xf32> to vector<2x1x512xf32>
    %c0_215 = arith.constant 0 : index
    %c0_216 = arith.constant 0 : index
    %c0_217 = arith.constant 0 : index
    %c0_218 = arith.constant 0 : index
    %326 = vector.load %arg2[%c0_215, %c0_216, %c0_217, %c0_218] : memref<1x9x8x1xf32, #tpu.memory_space<vmem>>, vector<1x1x8x1xf32>
    %327 = vector.shape_cast %326 : vector<1x1x8x1xf32> to vector<8x1xf32>
    %328 = vector.shape_cast %327 : vector<8x1xf32> to vector<1x8x1xf32>
    %c0_219 = arith.constant 0 : index
    %c0_220 = arith.constant 0 : index
    %c0_221 = arith.constant 0 : index
    %c0_222 = arith.constant 0 : index
    %329 = vector.load %arg3[%c0_219, %c0_220, %c0_221, %c0_222] : memref<1x9x8x1xf32, #tpu.memory_space<vmem>>, vector<1x1x8x1xf32>
    %330 = vector.shape_cast %329 : vector<1x1x8x1xf32> to vector<8x1xf32>
    %331 = vector.shape_cast %330 : vector<8x1xf32> to vector<1x8x1xf32>
    %332 = vector.broadcast %325 : vector<2x1x512xf32> to vector<2x8x512xf32>
    %333 = vector.broadcast %331 : vector<1x8x1xf32> to vector<2x8x512xf32>
    %334 = arith.mulf %332, %333 : vector<2x8x512xf32>
    %335 = vector.broadcast %328 : vector<1x8x1xf32> to vector<2x8x512xf32>
    %336 = arith.addf %335, %334 : vector<2x8x512xf32>
    %c1_223 = arith.constant 1 : index
    %c0_224 = arith.constant 0 : index
    %c1024_225 = arith.constant 1024 : index
    %337 = vector.load %arg1[%c1_223, %c0_224, %c1024_225] : memref<9x2x2560xi8, #tpu.memory_space<vmem>>, vector<1x2x512xi8>
    %338 = vector.shape_cast %337 : vector<1x2x512xi8> to vector<2x512xi8>
    %339 = arith.sitofp %338 : vector<2x512xi8> to vector<2x512xf32>
    %340 = vector.shape_cast %339 : vector<2x512xf32> to vector<2x1x512xf32>
    %c0_226 = arith.constant 0 : index
    %c1_227 = arith.constant 1 : index
    %c0_228 = arith.constant 0 : index
    %c0_229 = arith.constant 0 : index
    %341 = vector.load %arg2[%c0_226, %c1_227, %c0_228, %c0_229] : memref<1x9x8x1xf32, #tpu.memory_space<vmem>>, vector<1x1x8x1xf32>
    %342 = vector.shape_cast %341 : vector<1x1x8x1xf32> to vector<8x1xf32>
    %343 = vector.shape_cast %342 : vector<8x1xf32> to vector<1x8x1xf32>
    %c0_230 = arith.constant 0 : index
    %c1_231 = arith.constant 1 : index
    %c0_232 = arith.constant 0 : index
    %c0_233 = arith.constant 0 : index
    %344 = vector.load %arg3[%c0_230, %c1_231, %c0_232, %c0_233] : memref<1x9x8x1xf32, #tpu.memory_space<vmem>>, vector<1x1x8x1xf32>
    %345 = vector.shape_cast %344 : vector<1x1x8x1xf32> to vector<8x1xf32>
    %346 = vector.shape_cast %345 : vector<8x1xf32> to vector<1x8x1xf32>
    %347 = vector.broadcast %340 : vector<2x1x512xf32> to vector<2x8x512xf32>
    %348 = vector.broadcast %346 : vector<1x8x1xf32> to vector<2x8x512xf32>
    %349 = arith.mulf %347, %348 : vector<2x8x512xf32>
    %350 = vector.broadcast %343 : vector<1x8x1xf32> to vector<2x8x512xf32>
    %351 = arith.addf %350, %349 : vector<2x8x512xf32>
    %352 = arith.mulf %336, %351 : vector<2x8x512xf32>
    %c2_234 = arith.constant 2 : index
    %c0_235 = arith.constant 0 : index
    %c1024_236 = arith.constant 1024 : index
    %353 = vector.load %arg1[%c2_234, %c0_235, %c1024_236] : memref<9x2x2560xi8, #tpu.memory_space<vmem>>, vector<1x2x512xi8>
    %354 = vector.shape_cast %353 : vector<1x2x512xi8> to vector<2x512xi8>
    %355 = arith.sitofp %354 : vector<2x512xi8> to vector<2x512xf32>
    %356 = vector.shape_cast %355 : vector<2x512xf32> to vector<2x1x512xf32>
    %c0_237 = arith.constant 0 : index
    %c2_238 = arith.constant 2 : index
    %c0_239 = arith.constant 0 : index
    %c0_240 = arith.constant 0 : index
    %357 = vector.load %arg2[%c0_237, %c2_238, %c0_239, %c0_240] : memref<1x9x8x1xf32, #tpu.memory_space<vmem>>, vector<1x1x8x1xf32>
    %358 = vector.shape_cast %357 : vector<1x1x8x1xf32> to vector<8x1xf32>
    %359 = vector.shape_cast %358 : vector<8x1xf32> to vector<1x8x1xf32>
    %c0_241 = arith.constant 0 : index
    %c2_242 = arith.constant 2 : index
    %c0_243 = arith.constant 0 : index
    %c0_244 = arith.constant 0 : index
    %360 = vector.load %arg3[%c0_241, %c2_242, %c0_243, %c0_244] : memref<1x9x8x1xf32, #tpu.memory_space<vmem>>, vector<1x1x8x1xf32>
    %361 = vector.shape_cast %360 : vector<1x1x8x1xf32> to vector<8x1xf32>
    %362 = vector.shape_cast %361 : vector<8x1xf32> to vector<1x8x1xf32>
    %363 = vector.broadcast %356 : vector<2x1x512xf32> to vector<2x8x512xf32>
    %364 = vector.broadcast %362 : vector<1x8x1xf32> to vector<2x8x512xf32>
    %365 = arith.mulf %363, %364 : vector<2x8x512xf32>
    %366 = vector.broadcast %359 : vector<1x8x1xf32> to vector<2x8x512xf32>
    %367 = arith.addf %366, %365 : vector<2x8x512xf32>
    %368 = arith.mulf %352, %367 : vector<2x8x512xf32>
    %c3_245 = arith.constant 3 : index
    %c0_246 = arith.constant 0 : index
    %c1024_247 = arith.constant 1024 : index
    %369 = vector.load %arg1[%c3_245, %c0_246, %c1024_247] : memref<9x2x2560xi8, #tpu.memory_space<vmem>>, vector<1x2x512xi8>
    %370 = vector.shape_cast %369 : vector<1x2x512xi8> to vector<2x512xi8>
    %371 = arith.sitofp %370 : vector<2x512xi8> to vector<2x512xf32>
    %372 = vector.shape_cast %371 : vector<2x512xf32> to vector<2x1x512xf32>
    %c0_248 = arith.constant 0 : index
    %c3_249 = arith.constant 3 : index
    %c0_250 = arith.constant 0 : index
    %c0_251 = arith.constant 0 : index
    %373 = vector.load %arg2[%c0_248, %c3_249, %c0_250, %c0_251] : memref<1x9x8x1xf32, #tpu.memory_space<vmem>>, vector<1x1x8x1xf32>
    %374 = vector.shape_cast %373 : vector<1x1x8x1xf32> to vector<8x1xf32>
    %375 = vector.shape_cast %374 : vector<8x1xf32> to vector<1x8x1xf32>
    %c0_252 = arith.constant 0 : index
    %c3_253 = arith.constant 3 : index
    %c0_254 = arith.constant 0 : index
    %c0_255 = arith.constant 0 : index
    %376 = vector.load %arg3[%c0_252, %c3_253, %c0_254, %c0_255] : memref<1x9x8x1xf32, #tpu.memory_space<vmem>>, vector<1x1x8x1xf32>
    %377 = vector.shape_cast %376 : vector<1x1x8x1xf32> to vector<8x1xf32>
    %378 = vector.shape_cast %377 : vector<8x1xf32> to vector<1x8x1xf32>
    %379 = vector.broadcast %372 : vector<2x1x512xf32> to vector<2x8x512xf32>
    %380 = vector.broadcast %378 : vector<1x8x1xf32> to vector<2x8x512xf32>
    %381 = arith.mulf %379, %380 : vector<2x8x512xf32>
    %382 = vector.broadcast %375 : vector<1x8x1xf32> to vector<2x8x512xf32>
    %383 = arith.addf %382, %381 : vector<2x8x512xf32>
    %384 = arith.mulf %368, %383 : vector<2x8x512xf32>
    %c4_256 = arith.constant 4 : index
    %c0_257 = arith.constant 0 : index
    %c1024_258 = arith.constant 1024 : index
    %385 = vector.load %arg1[%c4_256, %c0_257, %c1024_258] : memref<9x2x2560xi8, #tpu.memory_space<vmem>>, vector<1x2x512xi8>
    %386 = vector.shape_cast %385 : vector<1x2x512xi8> to vector<2x512xi8>
    %387 = arith.sitofp %386 : vector<2x512xi8> to vector<2x512xf32>
    %388 = vector.shape_cast %387 : vector<2x512xf32> to vector<2x1x512xf32>
    %c0_259 = arith.constant 0 : index
    %c4_260 = arith.constant 4 : index
    %c0_261 = arith.constant 0 : index
    %c0_262 = arith.constant 0 : index
    %389 = vector.load %arg2[%c0_259, %c4_260, %c0_261, %c0_262] : memref<1x9x8x1xf32, #tpu.memory_space<vmem>>, vector<1x1x8x1xf32>
    %390 = vector.shape_cast %389 : vector<1x1x8x1xf32> to vector<8x1xf32>
    %391 = vector.shape_cast %390 : vector<8x1xf32> to vector<1x8x1xf32>
    %c0_263 = arith.constant 0 : index
    %c4_264 = arith.constant 4 : index
    %c0_265 = arith.constant 0 : index
    %c0_266 = arith.constant 0 : index
    %392 = vector.load %arg3[%c0_263, %c4_264, %c0_265, %c0_266] : memref<1x9x8x1xf32, #tpu.memory_space<vmem>>, vector<1x1x8x1xf32>
    %393 = vector.shape_cast %392 : vector<1x1x8x1xf32> to vector<8x1xf32>
    %394 = vector.shape_cast %393 : vector<8x1xf32> to vector<1x8x1xf32>
    %395 = vector.broadcast %388 : vector<2x1x512xf32> to vector<2x8x512xf32>
    %396 = vector.broadcast %394 : vector<1x8x1xf32> to vector<2x8x512xf32>
    %397 = arith.mulf %395, %396 : vector<2x8x512xf32>
    %398 = vector.broadcast %391 : vector<1x8x1xf32> to vector<2x8x512xf32>
    %399 = arith.addf %398, %397 : vector<2x8x512xf32>
    %400 = arith.mulf %384, %399 : vector<2x8x512xf32>
    %c5_267 = arith.constant 5 : index
    %c0_268 = arith.constant 0 : index
    %c1024_269 = arith.constant 1024 : index
    %401 = vector.load %arg1[%c5_267, %c0_268, %c1024_269] : memref<9x2x2560xi8, #tpu.memory_space<vmem>>, vector<1x2x512xi8>
    %402 = vector.shape_cast %401 : vector<1x2x512xi8> to vector<2x512xi8>
    %403 = arith.sitofp %402 : vector<2x512xi8> to vector<2x512xf32>
    %404 = vector.shape_cast %403 : vector<2x512xf32> to vector<2x1x512xf32>
    %c0_270 = arith.constant 0 : index
    %c5_271 = arith.constant 5 : index
    %c0_272 = arith.constant 0 : index
    %c0_273 = arith.constant 0 : index
    %405 = vector.load %arg2[%c0_270, %c5_271, %c0_272, %c0_273] : memref<1x9x8x1xf32, #tpu.memory_space<vmem>>, vector<1x1x8x1xf32>
    %406 = vector.shape_cast %405 : vector<1x1x8x1xf32> to vector<8x1xf32>
    %407 = vector.shape_cast %406 : vector<8x1xf32> to vector<1x8x1xf32>
    %c0_274 = arith.constant 0 : index
    %c5_275 = arith.constant 5 : index
    %c0_276 = arith.constant 0 : index
    %c0_277 = arith.constant 0 : index
    %408 = vector.load %arg3[%c0_274, %c5_275, %c0_276, %c0_277] : memref<1x9x8x1xf32, #tpu.memory_space<vmem>>, vector<1x1x8x1xf32>
    %409 = vector.shape_cast %408 : vector<1x1x8x1xf32> to vector<8x1xf32>
    %410 = vector.shape_cast %409 : vector<8x1xf32> to vector<1x8x1xf32>
    %411 = vector.broadcast %404 : vector<2x1x512xf32> to vector<2x8x512xf32>
    %412 = vector.broadcast %410 : vector<1x8x1xf32> to vector<2x8x512xf32>
    %413 = arith.mulf %411, %412 : vector<2x8x512xf32>
    %414 = vector.broadcast %407 : vector<1x8x1xf32> to vector<2x8x512xf32>
    %415 = arith.addf %414, %413 : vector<2x8x512xf32>
    %416 = arith.mulf %400, %415 : vector<2x8x512xf32>
    %c6_278 = arith.constant 6 : index
    %c0_279 = arith.constant 0 : index
    %c1024_280 = arith.constant 1024 : index
    %417 = vector.load %arg1[%c6_278, %c0_279, %c1024_280] : memref<9x2x2560xi8, #tpu.memory_space<vmem>>, vector<1x2x512xi8>
    %418 = vector.shape_cast %417 : vector<1x2x512xi8> to vector<2x512xi8>
    %419 = arith.sitofp %418 : vector<2x512xi8> to vector<2x512xf32>
    %420 = vector.shape_cast %419 : vector<2x512xf32> to vector<2x1x512xf32>
    %c0_281 = arith.constant 0 : index
    %c6_282 = arith.constant 6 : index
    %c0_283 = arith.constant 0 : index
    %c0_284 = arith.constant 0 : index
    %421 = vector.load %arg2[%c0_281, %c6_282, %c0_283, %c0_284] : memref<1x9x8x1xf32, #tpu.memory_space<vmem>>, vector<1x1x8x1xf32>
    %422 = vector.shape_cast %421 : vector<1x1x8x1xf32> to vector<8x1xf32>
    %423 = vector.shape_cast %422 : vector<8x1xf32> to vector<1x8x1xf32>
    %c0_285 = arith.constant 0 : index
    %c6_286 = arith.constant 6 : index
    %c0_287 = arith.constant 0 : index
    %c0_288 = arith.constant 0 : index
    %424 = vector.load %arg3[%c0_285, %c6_286, %c0_287, %c0_288] : memref<1x9x8x1xf32, #tpu.memory_space<vmem>>, vector<1x1x8x1xf32>
    %425 = vector.shape_cast %424 : vector<1x1x8x1xf32> to vector<8x1xf32>
    %426 = vector.shape_cast %425 : vector<8x1xf32> to vector<1x8x1xf32>
    %427 = vector.broadcast %420 : vector<2x1x512xf32> to vector<2x8x512xf32>
    %428 = vector.broadcast %426 : vector<1x8x1xf32> to vector<2x8x512xf32>
    %429 = arith.mulf %427, %428 : vector<2x8x512xf32>
    %430 = vector.broadcast %423 : vector<1x8x1xf32> to vector<2x8x512xf32>
    %431 = arith.addf %430, %429 : vector<2x8x512xf32>
    %432 = arith.mulf %416, %431 : vector<2x8x512xf32>
    %c7_289 = arith.constant 7 : index
    %c0_290 = arith.constant 0 : index
    %c1024_291 = arith.constant 1024 : index
    %433 = vector.load %arg1[%c7_289, %c0_290, %c1024_291] : memref<9x2x2560xi8, #tpu.memory_space<vmem>>, vector<1x2x512xi8>
    %434 = vector.shape_cast %433 : vector<1x2x512xi8> to vector<2x512xi8>
    %435 = arith.sitofp %434 : vector<2x512xi8> to vector<2x512xf32>
    %436 = vector.shape_cast %435 : vector<2x512xf32> to vector<2x1x512xf32>
    %c0_292 = arith.constant 0 : index
    %c7_293 = arith.constant 7 : index
    %c0_294 = arith.constant 0 : index
    %c0_295 = arith.constant 0 : index
    %437 = vector.load %arg2[%c0_292, %c7_293, %c0_294, %c0_295] : memref<1x9x8x1xf32, #tpu.memory_space<vmem>>, vector<1x1x8x1xf32>
    %438 = vector.shape_cast %437 : vector<1x1x8x1xf32> to vector<8x1xf32>
    %439 = vector.shape_cast %438 : vector<8x1xf32> to vector<1x8x1xf32>
    %c0_296 = arith.constant 0 : index
    %c7_297 = arith.constant 7 : index
    %c0_298 = arith.constant 0 : index
    %c0_299 = arith.constant 0 : index
    %440 = vector.load %arg3[%c0_296, %c7_297, %c0_298, %c0_299] : memref<1x9x8x1xf32, #tpu.memory_space<vmem>>, vector<1x1x8x1xf32>
    %441 = vector.shape_cast %440 : vector<1x1x8x1xf32> to vector<8x1xf32>
    %442 = vector.shape_cast %441 : vector<8x1xf32> to vector<1x8x1xf32>
    %443 = vector.broadcast %436 : vector<2x1x512xf32> to vector<2x8x512xf32>
    %444 = vector.broadcast %442 : vector<1x8x1xf32> to vector<2x8x512xf32>
    %445 = arith.mulf %443, %444 : vector<2x8x512xf32>
    %446 = vector.broadcast %439 : vector<1x8x1xf32> to vector<2x8x512xf32>
    %447 = arith.addf %446, %445 : vector<2x8x512xf32>
    %448 = arith.mulf %432, %447 : vector<2x8x512xf32>
    %c8_300 = arith.constant 8 : index
    %c0_301 = arith.constant 0 : index
    %c1024_302 = arith.constant 1024 : index
    %449 = vector.load %arg1[%c8_300, %c0_301, %c1024_302] : memref<9x2x2560xi8, #tpu.memory_space<vmem>>, vector<1x2x512xi8>
    %450 = vector.shape_cast %449 : vector<1x2x512xi8> to vector<2x512xi8>
    %451 = arith.sitofp %450 : vector<2x512xi8> to vector<2x512xf32>
    %452 = vector.shape_cast %451 : vector<2x512xf32> to vector<2x1x512xf32>
    %c0_303 = arith.constant 0 : index
    %c8_304 = arith.constant 8 : index
    %c0_305 = arith.constant 0 : index
    %c0_306 = arith.constant 0 : index
    %453 = vector.load %arg2[%c0_303, %c8_304, %c0_305, %c0_306] : memref<1x9x8x1xf32, #tpu.memory_space<vmem>>, vector<1x1x8x1xf32>
    %454 = vector.shape_cast %453 : vector<1x1x8x1xf32> to vector<8x1xf32>
    %455 = vector.shape_cast %454 : vector<8x1xf32> to vector<1x8x1xf32>
    %c0_307 = arith.constant 0 : index
    %c8_308 = arith.constant 8 : index
    %c0_309 = arith.constant 0 : index
    %c0_310 = arith.constant 0 : index
    %456 = vector.load %arg3[%c0_307, %c8_308, %c0_309, %c0_310] : memref<1x9x8x1xf32, #tpu.memory_space<vmem>>, vector<1x1x8x1xf32>
    %457 = vector.shape_cast %456 : vector<1x1x8x1xf32> to vector<8x1xf32>
    %458 = vector.shape_cast %457 : vector<8x1xf32> to vector<1x8x1xf32>
    %459 = vector.broadcast %452 : vector<2x1x512xf32> to vector<2x8x512xf32>
    %460 = vector.broadcast %458 : vector<1x8x1xf32> to vector<2x8x512xf32>
    %461 = arith.mulf %459, %460 : vector<2x8x512xf32>
    %462 = vector.broadcast %455 : vector<1x8x1xf32> to vector<2x8x512xf32>
    %463 = arith.addf %462, %461 : vector<2x8x512xf32>
    %464 = arith.mulf %448, %463 : vector<2x8x512xf32>
    %cst_311 = arith.constant 5.000000e-01 : f32
    %465 = vector.broadcast %cst_311 : f32 to vector<2x8x512xf32>
    %466 = arith.subf %465, %464 : vector<2x8x512xf32>
    %cst_312 = arith.constant 1.000000e+01 : f32
    %467 = vector.broadcast %cst_312 : f32 to vector<2x8x512xf32>
    %468 = arith.mulf %466, %467 : vector<2x8x512xf32>
    %469 = math.exp %468 : vector<2x8x512xf32>
    %cst_313 = arith.constant 1.000000e+00 : f32
    %470 = vector.broadcast %cst_313 : f32 to vector<2x8x512xf32>
    %471 = arith.addf %470, %469 : vector<2x8x512xf32>
    %cst_314 = arith.constant 1.000000e+00 : f32
    %472 = vector.broadcast %cst_314 : f32 to vector<2x8x512xf32>
    %473 = arith.divf %472, %471 : vector<2x8x512xf32>
    %c0_315 = arith.constant 0 : index
    %c0_316 = arith.constant 0 : index
    %c0_317 = arith.constant 0 : index
    %474 = vector.load %arg4[%c0_315, %c0_316, %c0_317] : memref<1x2x8xf32, #tpu.memory_space<vmem>>, vector<1x2x8xf32>
    %475 = vector.shape_cast %474 : vector<1x2x8xf32> to vector<2x8xf32>
    %cst_318 = arith.constant dense<0.000000e+00> : vector<2x8xf32>
    %476 = vector.multi_reduction <add>, %473, %cst_318 [2] : vector<2x8x512xf32> to vector<2x8xf32>
    %477 = arith.addf %475, %476 : vector<2x8xf32>
    %c0_319 = arith.constant 0 : index
    %c0_320 = arith.constant 0 : index
    %c0_321 = arith.constant 0 : index
    %478 = vector.load %arg4[%c0_319, %c0_320, %c0_321] : memref<1x2x8xf32, #tpu.memory_space<vmem>>, vector<1x2x8xf32>
    %479 = vector.shape_cast %478 : vector<1x2x8xf32> to vector<2x8xf32>
    %480 = vector.shape_cast %477 : vector<2x8xf32> to vector<1x2x8xf32>
    tpu.vector_store %arg4[%c0_319, %c0_320, %c0_321], %480 {strides = array<i32>} : memref<1x2x8xf32, #tpu.memory_space<vmem>>, vector<1x2x8xf32>,
    %c0_322 = arith.constant 0 : index
    %c0_323 = arith.constant 0 : index
    %c1536 = arith.constant 1536 : index
    %481 = vector.load %arg1[%c0_322, %c0_323, %c1536] : memref<9x2x2560xi8, #tpu.memory_space<vmem>>, vector<1x2x512xi8>
    %482 = vector.shape_cast %481 : vector<1x2x512xi8> to vector<2x512xi8>
    %483 = arith.sitofp %482 : vector<2x512xi8> to vector<2x512xf32>
    %484 = vector.shape_cast %483 : vector<2x512xf32> to vector<2x1x512xf32>
    %c0_324 = arith.constant 0 : index
    %c0_325 = arith.constant 0 : index
    %c0_326 = arith.constant 0 : index
    %c0_327 = arith.constant 0 : index
    %485 = vector.load %arg2[%c0_324, %c0_325, %c0_326, %c0_327] : memref<1x9x8x1xf32, #tpu.memory_space<vmem>>, vector<1x1x8x1xf32>
    %486 = vector.shape_cast %485 : vector<1x1x8x1xf32> to vector<8x1xf32>
    %487 = vector.shape_cast %486 : vector<8x1xf32> to vector<1x8x1xf32>
    %c0_328 = arith.constant 0 : index
    %c0_329 = arith.constant 0 : index
    %c0_330 = arith.constant 0 : index
    %c0_331 = arith.constant 0 : index
    %488 = vector.load %arg3[%c0_328, %c0_329, %c0_330, %c0_331] : memref<1x9x8x1xf32, #tpu.memory_space<vmem>>, vector<1x1x8x1xf32>
    %489 = vector.shape_cast %488 : vector<1x1x8x1xf32> to vector<8x1xf32>
    %490 = vector.shape_cast %489 : vector<8x1xf32> to vector<1x8x1xf32>
    %491 = vector.broadcast %484 : vector<2x1x512xf32> to vector<2x8x512xf32>
    %492 = vector.broadcast %490 : vector<1x8x1xf32> to vector<2x8x512xf32>
    %493 = arith.mulf %491, %492 : vector<2x8x512xf32>
    %494 = vector.broadcast %487 : vector<1x8x1xf32> to vector<2x8x512xf32>
    %495 = arith.addf %494, %493 : vector<2x8x512xf32>
    %c1_332 = arith.constant 1 : index
    %c0_333 = arith.constant 0 : index
    %c1536_334 = arith.constant 1536 : index
    %496 = vector.load %arg1[%c1_332, %c0_333, %c1536_334] : memref<9x2x2560xi8, #tpu.memory_space<vmem>>, vector<1x2x512xi8>
    %497 = vector.shape_cast %496 : vector<1x2x512xi8> to vector<2x512xi8>
    %498 = arith.sitofp %497 : vector<2x512xi8> to vector<2x512xf32>
    %499 = vector.shape_cast %498 : vector<2x512xf32> to vector<2x1x512xf32>
    %c0_335 = arith.constant 0 : index
    %c1_336 = arith.constant 1 : index
    %c0_337 = arith.constant 0 : index
    %c0_338 = arith.constant 0 : index
    %500 = vector.load %arg2[%c0_335, %c1_336, %c0_337, %c0_338] : memref<1x9x8x1xf32, #tpu.memory_space<vmem>>, vector<1x1x8x1xf32>
    %501 = vector.shape_cast %500 : vector<1x1x8x1xf32> to vector<8x1xf32>
    %502 = vector.shape_cast %501 : vector<8x1xf32> to vector<1x8x1xf32>
    %c0_339 = arith.constant 0 : index
    %c1_340 = arith.constant 1 : index
    %c0_341 = arith.constant 0 : index
    %c0_342 = arith.constant 0 : index
    %503 = vector.load %arg3[%c0_339, %c1_340, %c0_341, %c0_342] : memref<1x9x8x1xf32, #tpu.memory_space<vmem>>, vector<1x1x8x1xf32>
    %504 = vector.shape_cast %503 : vector<1x1x8x1xf32> to vector<8x1xf32>
    %505 = vector.shape_cast %504 : vector<8x1xf32> to vector<1x8x1xf32>
    %506 = vector.broadcast %499 : vector<2x1x512xf32> to vector<2x8x512xf32>
    %507 = vector.broadcast %505 : vector<1x8x1xf32> to vector<2x8x512xf32>
    %508 = arith.mulf %506, %507 : vector<2x8x512xf32>
    %509 = vector.broadcast %502 : vector<1x8x1xf32> to vector<2x8x512xf32>
    %510 = arith.addf %509, %508 : vector<2x8x512xf32>
    %511 = arith.mulf %495, %510 : vector<2x8x512xf32>
    %c2_343 = arith.constant 2 : index
    %c0_344 = arith.constant 0 : index
    %c1536_345 = arith.constant 1536 : index
    %512 = vector.load %arg1[%c2_343, %c0_344, %c1536_345] : memref<9x2x2560xi8, #tpu.memory_space<vmem>>, vector<1x2x512xi8>
    %513 = vector.shape_cast %512 : vector<1x2x512xi8> to vector<2x512xi8>
    %514 = arith.sitofp %513 : vector<2x512xi8> to vector<2x512xf32>
    %515 = vector.shape_cast %514 : vector<2x512xf32> to vector<2x1x512xf32>
    %c0_346 = arith.constant 0 : index
    %c2_347 = arith.constant 2 : index
    %c0_348 = arith.constant 0 : index
    %c0_349 = arith.constant 0 : index
    %516 = vector.load %arg2[%c0_346, %c2_347, %c0_348, %c0_349] : memref<1x9x8x1xf32, #tpu.memory_space<vmem>>, vector<1x1x8x1xf32>
    %517 = vector.shape_cast %516 : vector<1x1x8x1xf32> to vector<8x1xf32>
    %518 = vector.shape_cast %517 : vector<8x1xf32> to vector<1x8x1xf32>
    %c0_350 = arith.constant 0 : index
    %c2_351 = arith.constant 2 : index
    %c0_352 = arith.constant 0 : index
    %c0_353 = arith.constant 0 : index
    %519 = vector.load %arg3[%c0_350, %c2_351, %c0_352, %c0_353] : memref<1x9x8x1xf32, #tpu.memory_space<vmem>>, vector<1x1x8x1xf32>
    %520 = vector.shape_cast %519 : vector<1x1x8x1xf32> to vector<8x1xf32>
    %521 = vector.shape_cast %520 : vector<8x1xf32> to vector<1x8x1xf32>
    %522 = vector.broadcast %515 : vector<2x1x512xf32> to vector<2x8x512xf32>
    %523 = vector.broadcast %521 : vector<1x8x1xf32> to vector<2x8x512xf32>
    %524 = arith.mulf %522, %523 : vector<2x8x512xf32>
    %525 = vector.broadcast %518 : vector<1x8x1xf32> to vector<2x8x512xf32>
    %526 = arith.addf %525, %524 : vector<2x8x512xf32>
    %527 = arith.mulf %511, %526 : vector<2x8x512xf32>
    %c3_354 = arith.constant 3 : index
    %c0_355 = arith.constant 0 : index
    %c1536_356 = arith.constant 1536 : index
    %528 = vector.load %arg1[%c3_354, %c0_355, %c1536_356] : memref<9x2x2560xi8, #tpu.memory_space<vmem>>, vector<1x2x512xi8>
    %529 = vector.shape_cast %528 : vector<1x2x512xi8> to vector<2x512xi8>
    %530 = arith.sitofp %529 : vector<2x512xi8> to vector<2x512xf32>
    %531 = vector.shape_cast %530 : vector<2x512xf32> to vector<2x1x512xf32>
    %c0_357 = arith.constant 0 : index
    %c3_358 = arith.constant 3 : index
    %c0_359 = arith.constant 0 : index
    %c0_360 = arith.constant 0 : index
    %532 = vector.load %arg2[%c0_357, %c3_358, %c0_359, %c0_360] : memref<1x9x8x1xf32, #tpu.memory_space<vmem>>, vector<1x1x8x1xf32>
    %533 = vector.shape_cast %532 : vector<1x1x8x1xf32> to vector<8x1xf32>
    %534 = vector.shape_cast %533 : vector<8x1xf32> to vector<1x8x1xf32>
    %c0_361 = arith.constant 0 : index
    %c3_362 = arith.constant 3 : index
    %c0_363 = arith.constant 0 : index
    %c0_364 = arith.constant 0 : index
    %535 = vector.load %arg3[%c0_361, %c3_362, %c0_363, %c0_364] : memref<1x9x8x1xf32, #tpu.memory_space<vmem>>, vector<1x1x8x1xf32>
    %536 = vector.shape_cast %535 : vector<1x1x8x1xf32> to vector<8x1xf32>
    %537 = vector.shape_cast %536 : vector<8x1xf32> to vector<1x8x1xf32>
    %538 = vector.broadcast %531 : vector<2x1x512xf32> to vector<2x8x512xf32>
    %539 = vector.broadcast %537 : vector<1x8x1xf32> to vector<2x8x512xf32>
    %540 = arith.mulf %538, %539 : vector<2x8x512xf32>
    %541 = vector.broadcast %534 : vector<1x8x1xf32> to vector<2x8x512xf32>
    %542 = arith.addf %541, %540 : vector<2x8x512xf32>
    %543 = arith.mulf %527, %542 : vector<2x8x512xf32>
    %c4_365 = arith.constant 4 : index
    %c0_366 = arith.constant 0 : index
    %c1536_367 = arith.constant 1536 : index
    %544 = vector.load %arg1[%c4_365, %c0_366, %c1536_367] : memref<9x2x2560xi8, #tpu.memory_space<vmem>>, vector<1x2x512xi8>
    %545 = vector.shape_cast %544 : vector<1x2x512xi8> to vector<2x512xi8>
    %546 = arith.sitofp %545 : vector<2x512xi8> to vector<2x512xf32>
    %547 = vector.shape_cast %546 : vector<2x512xf32> to vector<2x1x512xf32>
    %c0_368 = arith.constant 0 : index
    %c4_369 = arith.constant 4 : index
    %c0_370 = arith.constant 0 : index
    %c0_371 = arith.constant 0 : index
    %548 = vector.load %arg2[%c0_368, %c4_369, %c0_370, %c0_371] : memref<1x9x8x1xf32, #tpu.memory_space<vmem>>, vector<1x1x8x1xf32>
    %549 = vector.shape_cast %548 : vector<1x1x8x1xf32> to vector<8x1xf32>
    %550 = vector.shape_cast %549 : vector<8x1xf32> to vector<1x8x1xf32>
    %c0_372 = arith.constant 0 : index
    %c4_373 = arith.constant 4 : index
    %c0_374 = arith.constant 0 : index
    %c0_375 = arith.constant 0 : index
    %551 = vector.load %arg3[%c0_372, %c4_373, %c0_374, %c0_375] : memref<1x9x8x1xf32, #tpu.memory_space<vmem>>, vector<1x1x8x1xf32>
    %552 = vector.shape_cast %551 : vector<1x1x8x1xf32> to vector<8x1xf32>
    %553 = vector.shape_cast %552 : vector<8x1xf32> to vector<1x8x1xf32>
    %554 = vector.broadcast %547 : vector<2x1x512xf32> to vector<2x8x512xf32>
    %555 = vector.broadcast %553 : vector<1x8x1xf32> to vector<2x8x512xf32>
    %556 = arith.mulf %554, %555 : vector<2x8x512xf32>
    %557 = vector.broadcast %550 : vector<1x8x1xf32> to vector<2x8x512xf32>
    %558 = arith.addf %557, %556 : vector<2x8x512xf32>
    %559 = arith.mulf %543, %558 : vector<2x8x512xf32>
    %c5_376 = arith.constant 5 : index
    %c0_377 = arith.constant 0 : index
    %c1536_378 = arith.constant 1536 : index
    %560 = vector.load %arg1[%c5_376, %c0_377, %c1536_378] : memref<9x2x2560xi8, #tpu.memory_space<vmem>>, vector<1x2x512xi8>
    %561 = vector.shape_cast %560 : vector<1x2x512xi8> to vector<2x512xi8>
    %562 = arith.sitofp %561 : vector<2x512xi8> to vector<2x512xf32>
    %563 = vector.shape_cast %562 : vector<2x512xf32> to vector<2x1x512xf32>
    %c0_379 = arith.constant 0 : index
    %c5_380 = arith.constant 5 : index
    %c0_381 = arith.constant 0 : index
    %c0_382 = arith.constant 0 : index
    %564 = vector.load %arg2[%c0_379, %c5_380, %c0_381, %c0_382] : memref<1x9x8x1xf32, #tpu.memory_space<vmem>>, vector<1x1x8x1xf32>
    %565 = vector.shape_cast %564 : vector<1x1x8x1xf32> to vector<8x1xf32>
    %566 = vector.shape_cast %565 : vector<8x1xf32> to vector<1x8x1xf32>
    %c0_383 = arith.constant 0 : index
    %c5_384 = arith.constant 5 : index
    %c0_385 = arith.constant 0 : index
    %c0_386 = arith.constant 0 : index
    %567 = vector.load %arg3[%c0_383, %c5_384, %c0_385, %c0_386] : memref<1x9x8x1xf32, #tpu.memory_space<vmem>>, vector<1x1x8x1xf32>
    %568 = vector.shape_cast %567 : vector<1x1x8x1xf32> to vector<8x1xf32>
    %569 = vector.shape_cast %568 : vector<8x1xf32> to vector<1x8x1xf32>
    %570 = vector.broadcast %563 : vector<2x1x512xf32> to vector<2x8x512xf32>
    %571 = vector.broadcast %569 : vector<1x8x1xf32> to vector<2x8x512xf32>
    %572 = arith.mulf %570, %571 : vector<2x8x512xf32>
    %573 = vector.broadcast %566 : vector<1x8x1xf32> to vector<2x8x512xf32>
    %574 = arith.addf %573, %572 : vector<2x8x512xf32>
    %575 = arith.mulf %559, %574 : vector<2x8x512xf32>
    %c6_387 = arith.constant 6 : index
    %c0_388 = arith.constant 0 : index
    %c1536_389 = arith.constant 1536 : index
    %576 = vector.load %arg1[%c6_387, %c0_388, %c1536_389] : memref<9x2x2560xi8, #tpu.memory_space<vmem>>, vector<1x2x512xi8>
    %577 = vector.shape_cast %576 : vector<1x2x512xi8> to vector<2x512xi8>
    %578 = arith.sitofp %577 : vector<2x512xi8> to vector<2x512xf32>
    %579 = vector.shape_cast %578 : vector<2x512xf32> to vector<2x1x512xf32>
    %c0_390 = arith.constant 0 : index
    %c6_391 = arith.constant 6 : index
    %c0_392 = arith.constant 0 : index
    %c0_393 = arith.constant 0 : index
    %580 = vector.load %arg2[%c0_390, %c6_391, %c0_392, %c0_393] : memref<1x9x8x1xf32, #tpu.memory_space<vmem>>, vector<1x1x8x1xf32>
    %581 = vector.shape_cast %580 : vector<1x1x8x1xf32> to vector<8x1xf32>
    %582 = vector.shape_cast %581 : vector<8x1xf32> to vector<1x8x1xf32>
    %c0_394 = arith.constant 0 : index
    %c6_395 = arith.constant 6 : index
    %c0_396 = arith.constant 0 : index
    %c0_397 = arith.constant 0 : index
    %583 = vector.load %arg3[%c0_394, %c6_395, %c0_396, %c0_397] : memref<1x9x8x1xf32, #tpu.memory_space<vmem>>, vector<1x1x8x1xf32>
    %584 = vector.shape_cast %583 : vector<1x1x8x1xf32> to vector<8x1xf32>
    %585 = vector.shape_cast %584 : vector<8x1xf32> to vector<1x8x1xf32>
    %586 = vector.broadcast %579 : vector<2x1x512xf32> to vector<2x8x512xf32>
    %587 = vector.broadcast %585 : vector<1x8x1xf32> to vector<2x8x512xf32>
    %588 = arith.mulf %586, %587 : vector<2x8x512xf32>
    %589 = vector.broadcast %582 : vector<1x8x1xf32> to vector<2x8x512xf32>
    %590 = arith.addf %589, %588 : vector<2x8x512xf32>
    %591 = arith.mulf %575, %590 : vector<2x8x512xf32>
    %c7_398 = arith.constant 7 : index
    %c0_399 = arith.constant 0 : index
    %c1536_400 = arith.constant 1536 : index
    %592 = vector.load %arg1[%c7_398, %c0_399, %c1536_400] : memref<9x2x2560xi8, #tpu.memory_space<vmem>>, vector<1x2x512xi8>
    %593 = vector.shape_cast %592 : vector<1x2x512xi8> to vector<2x512xi8>
    %594 = arith.sitofp %593 : vector<2x512xi8> to vector<2x512xf32>
    %595 = vector.shape_cast %594 : vector<2x512xf32> to vector<2x1x512xf32>
    %c0_401 = arith.constant 0 : index
    %c7_402 = arith.constant 7 : index
    %c0_403 = arith.constant 0 : index
    %c0_404 = arith.constant 0 : index
    %596 = vector.load %arg2[%c0_401, %c7_402, %c0_403, %c0_404] : memref<1x9x8x1xf32, #tpu.memory_space<vmem>>, vector<1x1x8x1xf32>
    %597 = vector.shape_cast %596 : vector<1x1x8x1xf32> to vector<8x1xf32>
    %598 = vector.shape_cast %597 : vector<8x1xf32> to vector<1x8x1xf32>
    %c0_405 = arith.constant 0 : index
    %c7_406 = arith.constant 7 : index
    %c0_407 = arith.constant 0 : index
    %c0_408 = arith.constant 0 : index
    %599 = vector.load %arg3[%c0_405, %c7_406, %c0_407, %c0_408] : memref<1x9x8x1xf32, #tpu.memory_space<vmem>>, vector<1x1x8x1xf32>
    %600 = vector.shape_cast %599 : vector<1x1x8x1xf32> to vector<8x1xf32>
    %601 = vector.shape_cast %600 : vector<8x1xf32> to vector<1x8x1xf32>
    %602 = vector.broadcast %595 : vector<2x1x512xf32> to vector<2x8x512xf32>
    %603 = vector.broadcast %601 : vector<1x8x1xf32> to vector<2x8x512xf32>
    %604 = arith.mulf %602, %603 : vector<2x8x512xf32>
    %605 = vector.broadcast %598 : vector<1x8x1xf32> to vector<2x8x512xf32>
    %606 = arith.addf %605, %604 : vector<2x8x512xf32>
    %607 = arith.mulf %591, %606 : vector<2x8x512xf32>
    %c8_409 = arith.constant 8 : index
    %c0_410 = arith.constant 0 : index
    %c1536_411 = arith.constant 1536 : index
    %608 = vector.load %arg1[%c8_409, %c0_410, %c1536_411] : memref<9x2x2560xi8, #tpu.memory_space<vmem>>, vector<1x2x512xi8>
    %609 = vector.shape_cast %608 : vector<1x2x512xi8> to vector<2x512xi8>
    %610 = arith.sitofp %609 : vector<2x512xi8> to vector<2x512xf32>
    %611 = vector.shape_cast %610 : vector<2x512xf32> to vector<2x1x512xf32>
    %c0_412 = arith.constant 0 : index
    %c8_413 = arith.constant 8 : index
    %c0_414 = arith.constant 0 : index
    %c0_415 = arith.constant 0 : index
    %612 = vector.load %arg2[%c0_412, %c8_413, %c0_414, %c0_415] : memref<1x9x8x1xf32, #tpu.memory_space<vmem>>, vector<1x1x8x1xf32>
    %613 = vector.shape_cast %612 : vector<1x1x8x1xf32> to vector<8x1xf32>
    %614 = vector.shape_cast %613 : vector<8x1xf32> to vector<1x8x1xf32>
    %c0_416 = arith.constant 0 : index
    %c8_417 = arith.constant 8 : index
    %c0_418 = arith.constant 0 : index
    %c0_419 = arith.constant 0 : index
    %615 = vector.load %arg3[%c0_416, %c8_417, %c0_418, %c0_419] : memref<1x9x8x1xf32, #tpu.memory_space<vmem>>, vector<1x1x8x1xf32>
    %616 = vector.shape_cast %615 : vector<1x1x8x1xf32> to vector<8x1xf32>
    %617 = vector.shape_cast %616 : vector<8x1xf32> to vector<1x8x1xf32>
    %618 = vector.broadcast %611 : vector<2x1x512xf32> to vector<2x8x512xf32>
    %619 = vector.broadcast %617 : vector<1x8x1xf32> to vector<2x8x512xf32>
    %620 = arith.mulf %618, %619 : vector<2x8x512xf32>
    %621 = vector.broadcast %614 : vector<1x8x1xf32> to vector<2x8x512xf32>
    %622 = arith.addf %621, %620 : vector<2x8x512xf32>
    %623 = arith.mulf %607, %622 : vector<2x8x512xf32>
    %cst_420 = arith.constant 5.000000e-01 : f32
    %624 = vector.broadcast %cst_420 : f32 to vector<2x8x512xf32>
    %625 = arith.subf %624, %623 : vector<2x8x512xf32>
    %cst_421 = arith.constant 1.000000e+01 : f32
    %626 = vector.broadcast %cst_421 : f32 to vector<2x8x512xf32>
    %627 = arith.mulf %625, %626 : vector<2x8x512xf32>
    %628 = math.exp %627 : vector<2x8x512xf32>
    %cst_422 = arith.constant 1.000000e+00 : f32
    %629 = vector.broadcast %cst_422 : f32 to vector<2x8x512xf32>
    %630 = arith.addf %629, %628 : vector<2x8x512xf32>
    %cst_423 = arith.constant 1.000000e+00 : f32
    %631 = vector.broadcast %cst_423 : f32 to vector<2x8x512xf32>
    %632 = arith.divf %631, %630 : vector<2x8x512xf32>
    %c0_424 = arith.constant 0 : index
    %c0_425 = arith.constant 0 : index
    %c0_426 = arith.constant 0 : index
    %633 = vector.load %arg4[%c0_424, %c0_425, %c0_426] : memref<1x2x8xf32, #tpu.memory_space<vmem>>, vector<1x2x8xf32>
    %634 = vector.shape_cast %633 : vector<1x2x8xf32> to vector<2x8xf32>
    %cst_427 = arith.constant dense<0.000000e+00> : vector<2x8xf32>
    %635 = vector.multi_reduction <add>, %632, %cst_427 [2] : vector<2x8x512xf32> to vector<2x8xf32>
    %636 = arith.addf %634, %635 : vector<2x8xf32>
    %c0_428 = arith.constant 0 : index
    %c0_429 = arith.constant 0 : index
    %c0_430 = arith.constant 0 : index
    %637 = vector.load %arg4[%c0_428, %c0_429, %c0_430] : memref<1x2x8xf32, #tpu.memory_space<vmem>>, vector<1x2x8xf32>
    %638 = vector.shape_cast %637 : vector<1x2x8xf32> to vector<2x8xf32>
    %639 = vector.shape_cast %636 : vector<2x8xf32> to vector<1x2x8xf32>
    tpu.vector_store %arg4[%c0_428, %c0_429, %c0_430], %639 {strides = array<i32>} : memref<1x2x8xf32, #tpu.memory_space<vmem>>, vector<1x2x8xf32>,
    %c0_431 = arith.constant 0 : index
    %c0_432 = arith.constant 0 : index
    %c2048 = arith.constant 2048 : index
    %640 = vector.load %arg1[%c0_431, %c0_432, %c2048] : memref<9x2x2560xi8, #tpu.memory_space<vmem>>, vector<1x2x512xi8>
    %641 = vector.shape_cast %640 : vector<1x2x512xi8> to vector<2x512xi8>
    %642 = arith.sitofp %641 : vector<2x512xi8> to vector<2x512xf32>
    %643 = vector.shape_cast %642 : vector<2x512xf32> to vector<2x1x512xf32>
    %c0_433 = arith.constant 0 : index
    %c0_434 = arith.constant 0 : index
    %c0_435 = arith.constant 0 : index
    %c0_436 = arith.constant 0 : index
    %644 = vector.load %arg2[%c0_433, %c0_434, %c0_435, %c0_436] : memref<1x9x8x1xf32, #tpu.memory_space<vmem>>, vector<1x1x8x1xf32>
    %645 = vector.shape_cast %644 : vector<1x1x8x1xf32> to vector<8x1xf32>
    %646 = vector.shape_cast %645 : vector<8x1xf32> to vector<1x8x1xf32>
    %c0_437 = arith.constant 0 : index
    %c0_438 = arith.constant 0 : index
    %c0_439 = arith.constant 0 : index
    %c0_440 = arith.constant 0 : index
    %647 = vector.load %arg3[%c0_437, %c0_438, %c0_439, %c0_440] : memref<1x9x8x1xf32, #tpu.memory_space<vmem>>, vector<1x1x8x1xf32>
    %648 = vector.shape_cast %647 : vector<1x1x8x1xf32> to vector<8x1xf32>
    %649 = vector.shape_cast %648 : vector<8x1xf32> to vector<1x8x1xf32>
    %650 = vector.broadcast %643 : vector<2x1x512xf32> to vector<2x8x512xf32>
    %651 = vector.broadcast %649 : vector<1x8x1xf32> to vector<2x8x512xf32>
    %652 = arith.mulf %650, %651 : vector<2x8x512xf32>
    %653 = vector.broadcast %646 : vector<1x8x1xf32> to vector<2x8x512xf32>
    %654 = arith.addf %653, %652 : vector<2x8x512xf32>
    %c1_441 = arith.constant 1 : index
    %c0_442 = arith.constant 0 : index
    %c2048_443 = arith.constant 2048 : index
    %655 = vector.load %arg1[%c1_441, %c0_442, %c2048_443] : memref<9x2x2560xi8, #tpu.memory_space<vmem>>, vector<1x2x512xi8>
    %656 = vector.shape_cast %655 : vector<1x2x512xi8> to vector<2x512xi8>
    %657 = arith.sitofp %656 : vector<2x512xi8> to vector<2x512xf32>
    %658 = vector.shape_cast %657 : vector<2x512xf32> to vector<2x1x512xf32>
    %c0_444 = arith.constant 0 : index
    %c1_445 = arith.constant 1 : index
    %c0_446 = arith.constant 0 : index
    %c0_447 = arith.constant 0 : index
    %659 = vector.load %arg2[%c0_444, %c1_445, %c0_446, %c0_447] : memref<1x9x8x1xf32, #tpu.memory_space<vmem>>, vector<1x1x8x1xf32>
    %660 = vector.shape_cast %659 : vector<1x1x8x1xf32> to vector<8x1xf32>
    %661 = vector.shape_cast %660 : vector<8x1xf32> to vector<1x8x1xf32>
    %c0_448 = arith.constant 0 : index
    %c1_449 = arith.constant 1 : index
    %c0_450 = arith.constant 0 : index
    %c0_451 = arith.constant 0 : index
    %662 = vector.load %arg3[%c0_448, %c1_449, %c0_450, %c0_451] : memref<1x9x8x1xf32, #tpu.memory_space<vmem>>, vector<1x1x8x1xf32>
    %663 = vector.shape_cast %662 : vector<1x1x8x1xf32> to vector<8x1xf32>
    %664 = vector.shape_cast %663 : vector<8x1xf32> to vector<1x8x1xf32>
    %665 = vector.broadcast %658 : vector<2x1x512xf32> to vector<2x8x512xf32>
    %666 = vector.broadcast %664 : vector<1x8x1xf32> to vector<2x8x512xf32>
    %667 = arith.mulf %665, %666 : vector<2x8x512xf32>
    %668 = vector.broadcast %661 : vector<1x8x1xf32> to vector<2x8x512xf32>
    %669 = arith.addf %668, %667 : vector<2x8x512xf32>
    %670 = arith.mulf %654, %669 : vector<2x8x512xf32>
    %c2_452 = arith.constant 2 : index
    %c0_453 = arith.constant 0 : index
    %c2048_454 = arith.constant 2048 : index
    %671 = vector.load %arg1[%c2_452, %c0_453, %c2048_454] : memref<9x2x2560xi8, #tpu.memory_space<vmem>>, vector<1x2x512xi8>
    %672 = vector.shape_cast %671 : vector<1x2x512xi8> to vector<2x512xi8>
    %673 = arith.sitofp %672 : vector<2x512xi8> to vector<2x512xf32>
    %674 = vector.shape_cast %673 : vector<2x512xf32> to vector<2x1x512xf32>
    %c0_455 = arith.constant 0 : index
    %c2_456 = arith.constant 2 : index
    %c0_457 = arith.constant 0 : index
    %c0_458 = arith.constant 0 : index
    %675 = vector.load %arg2[%c0_455, %c2_456, %c0_457, %c0_458] : memref<1x9x8x1xf32, #tpu.memory_space<vmem>>, vector<1x1x8x1xf32>
    %676 = vector.shape_cast %675 : vector<1x1x8x1xf32> to vector<8x1xf32>
    %677 = vector.shape_cast %676 : vector<8x1xf32> to vector<1x8x1xf32>
    %c0_459 = arith.constant 0 : index
    %c2_460 = arith.constant 2 : index
    %c0_461 = arith.constant 0 : index
    %c0_462 = arith.constant 0 : index
    %678 = vector.load %arg3[%c0_459, %c2_460, %c0_461, %c0_462] : memref<1x9x8x1xf32, #tpu.memory_space<vmem>>, vector<1x1x8x1xf32>
    %679 = vector.shape_cast %678 : vector<1x1x8x1xf32> to vector<8x1xf32>
    %680 = vector.shape_cast %679 : vector<8x1xf32> to vector<1x8x1xf32>
    %681 = vector.broadcast %674 : vector<2x1x512xf32> to vector<2x8x512xf32>
    %682 = vector.broadcast %680 : vector<1x8x1xf32> to vector<2x8x512xf32>
    %683 = arith.mulf %681, %682 : vector<2x8x512xf32>
    %684 = vector.broadcast %677 : vector<1x8x1xf32> to vector<2x8x512xf32>
    %685 = arith.addf %684, %683 : vector<2x8x512xf32>
    %686 = arith.mulf %670, %685 : vector<2x8x512xf32>
    %c3_463 = arith.constant 3 : index
    %c0_464 = arith.constant 0 : index
    %c2048_465 = arith.constant 2048 : index
    %687 = vector.load %arg1[%c3_463, %c0_464, %c2048_465] : memref<9x2x2560xi8, #tpu.memory_space<vmem>>, vector<1x2x512xi8>
    %688 = vector.shape_cast %687 : vector<1x2x512xi8> to vector<2x512xi8>
    %689 = arith.sitofp %688 : vector<2x512xi8> to vector<2x512xf32>
    %690 = vector.shape_cast %689 : vector<2x512xf32> to vector<2x1x512xf32>
    %c0_466 = arith.constant 0 : index
    %c3_467 = arith.constant 3 : index
    %c0_468 = arith.constant 0 : index
    %c0_469 = arith.constant 0 : index
    %691 = vector.load %arg2[%c0_466, %c3_467, %c0_468, %c0_469] : memref<1x9x8x1xf32, #tpu.memory_space<vmem>>, vector<1x1x8x1xf32>
    %692 = vector.shape_cast %691 : vector<1x1x8x1xf32> to vector<8x1xf32>
    %693 = vector.shape_cast %692 : vector<8x1xf32> to vector<1x8x1xf32>
    %c0_470 = arith.constant 0 : index
    %c3_471 = arith.constant 3 : index
    %c0_472 = arith.constant 0 : index
    %c0_473 = arith.constant 0 : index
    %694 = vector.load %arg3[%c0_470, %c3_471, %c0_472, %c0_473] : memref<1x9x8x1xf32, #tpu.memory_space<vmem>>, vector<1x1x8x1xf32>
    %695 = vector.shape_cast %694 : vector<1x1x8x1xf32> to vector<8x1xf32>
    %696 = vector.shape_cast %695 : vector<8x1xf32> to vector<1x8x1xf32>
    %697 = vector.broadcast %690 : vector<2x1x512xf32> to vector<2x8x512xf32>
    %698 = vector.broadcast %696 : vector<1x8x1xf32> to vector<2x8x512xf32>
    %699 = arith.mulf %697, %698 : vector<2x8x512xf32>
    %700 = vector.broadcast %693 : vector<1x8x1xf32> to vector<2x8x512xf32>
    %701 = arith.addf %700, %699 : vector<2x8x512xf32>
    %702 = arith.mulf %686, %701 : vector<2x8x512xf32>
    %c4_474 = arith.constant 4 : index
    %c0_475 = arith.constant 0 : index
    %c2048_476 = arith.constant 2048 : index
    %703 = vector.load %arg1[%c4_474, %c0_475, %c2048_476] : memref<9x2x2560xi8, #tpu.memory_space<vmem>>, vector<1x2x512xi8>
    %704 = vector.shape_cast %703 : vector<1x2x512xi8> to vector<2x512xi8>
    %705 = arith.sitofp %704 : vector<2x512xi8> to vector<2x512xf32>
    %706 = vector.shape_cast %705 : vector<2x512xf32> to vector<2x1x512xf32>
    %c0_477 = arith.constant 0 : index
    %c4_478 = arith.constant 4 : index
    %c0_479 = arith.constant 0 : index
    %c0_480 = arith.constant 0 : index
    %707 = vector.load %arg2[%c0_477, %c4_478, %c0_479, %c0_480] : memref<1x9x8x1xf32, #tpu.memory_space<vmem>>, vector<1x1x8x1xf32>
    %708 = vector.shape_cast %707 : vector<1x1x8x1xf32> to vector<8x1xf32>
    %709 = vector.shape_cast %708 : vector<8x1xf32> to vector<1x8x1xf32>
    %c0_481 = arith.constant 0 : index
    %c4_482 = arith.constant 4 : index
    %c0_483 = arith.constant 0 : index
    %c0_484 = arith.constant 0 : index
    %710 = vector.load %arg3[%c0_481, %c4_482, %c0_483, %c0_484] : memref<1x9x8x1xf32, #tpu.memory_space<vmem>>, vector<1x1x8x1xf32>
    %711 = vector.shape_cast %710 : vector<1x1x8x1xf32> to vector<8x1xf32>
    %712 = vector.shape_cast %711 : vector<8x1xf32> to vector<1x8x1xf32>
    %713 = vector.broadcast %706 : vector<2x1x512xf32> to vector<2x8x512xf32>
    %714 = vector.broadcast %712 : vector<1x8x1xf32> to vector<2x8x512xf32>
    %715 = arith.mulf %713, %714 : vector<2x8x512xf32>
    %716 = vector.broadcast %709 : vector<1x8x1xf32> to vector<2x8x512xf32>
    %717 = arith.addf %716, %715 : vector<2x8x512xf32>
    %718 = arith.mulf %702, %717 : vector<2x8x512xf32>
    %c5_485 = arith.constant 5 : index
    %c0_486 = arith.constant 0 : index
    %c2048_487 = arith.constant 2048 : index
    %719 = vector.load %arg1[%c5_485, %c0_486, %c2048_487] : memref<9x2x2560xi8, #tpu.memory_space<vmem>>, vector<1x2x512xi8>
    %720 = vector.shape_cast %719 : vector<1x2x512xi8> to vector<2x512xi8>
    %721 = arith.sitofp %720 : vector<2x512xi8> to vector<2x512xf32>
    %722 = vector.shape_cast %721 : vector<2x512xf32> to vector<2x1x512xf32>
    %c0_488 = arith.constant 0 : index
    %c5_489 = arith.constant 5 : index
    %c0_490 = arith.constant 0 : index
    %c0_491 = arith.constant 0 : index
    %723 = vector.load %arg2[%c0_488, %c5_489, %c0_490, %c0_491] : memref<1x9x8x1xf32, #tpu.memory_space<vmem>>, vector<1x1x8x1xf32>
    %724 = vector.shape_cast %723 : vector<1x1x8x1xf32> to vector<8x1xf32>
    %725 = vector.shape_cast %724 : vector<8x1xf32> to vector<1x8x1xf32>
    %c0_492 = arith.constant 0 : index
    %c5_493 = arith.constant 5 : index
    %c0_494 = arith.constant 0 : index
    %c0_495 = arith.constant 0 : index
    %726 = vector.load %arg3[%c0_492, %c5_493, %c0_494, %c0_495] : memref<1x9x8x1xf32, #tpu.memory_space<vmem>>, vector<1x1x8x1xf32>
    %727 = vector.shape_cast %726 : vector<1x1x8x1xf32> to vector<8x1xf32>
    %728 = vector.shape_cast %727 : vector<8x1xf32> to vector<1x8x1xf32>
    %729 = vector.broadcast %722 : vector<2x1x512xf32> to vector<2x8x512xf32>
    %730 = vector.broadcast %728 : vector<1x8x1xf32> to vector<2x8x512xf32>
    %731 = arith.mulf %729, %730 : vector<2x8x512xf32>
    %732 = vector.broadcast %725 : vector<1x8x1xf32> to vector<2x8x512xf32>
    %733 = arith.addf %732, %731 : vector<2x8x512xf32>
    %734 = arith.mulf %718, %733 : vector<2x8x512xf32>
    %c6_496 = arith.constant 6 : index
    %c0_497 = arith.constant 0 : index
    %c2048_498 = arith.constant 2048 : index
    %735 = vector.load %arg1[%c6_496, %c0_497, %c2048_498] : memref<9x2x2560xi8, #tpu.memory_space<vmem>>, vector<1x2x512xi8>
    %736 = vector.shape_cast %735 : vector<1x2x512xi8> to vector<2x512xi8>
    %737 = arith.sitofp %736 : vector<2x512xi8> to vector<2x512xf32>
    %738 = vector.shape_cast %737 : vector<2x512xf32> to vector<2x1x512xf32>
    %c0_499 = arith.constant 0 : index
    %c6_500 = arith.constant 6 : index
    %c0_501 = arith.constant 0 : index
    %c0_502 = arith.constant 0 : index
    %739 = vector.load %arg2[%c0_499, %c6_500, %c0_501, %c0_502] : memref<1x9x8x1xf32, #tpu.memory_space<vmem>>, vector<1x1x8x1xf32>
    %740 = vector.shape_cast %739 : vector<1x1x8x1xf32> to vector<8x1xf32>
    %741 = vector.shape_cast %740 : vector<8x1xf32> to vector<1x8x1xf32>
    %c0_503 = arith.constant 0 : index
    %c6_504 = arith.constant 6 : index
    %c0_505 = arith.constant 0 : index
    %c0_506 = arith.constant 0 : index
    %742 = vector.load %arg3[%c0_503, %c6_504, %c0_505, %c0_506] : memref<1x9x8x1xf32, #tpu.memory_space<vmem>>, vector<1x1x8x1xf32>
    %743 = vector.shape_cast %742 : vector<1x1x8x1xf32> to vector<8x1xf32>
    %744 = vector.shape_cast %743 : vector<8x1xf32> to vector<1x8x1xf32>
    %745 = vector.broadcast %738 : vector<2x1x512xf32> to vector<2x8x512xf32>
    %746 = vector.broadcast %744 : vector<1x8x1xf32> to vector<2x8x512xf32>
    %747 = arith.mulf %745, %746 : vector<2x8x512xf32>
    %748 = vector.broadcast %741 : vector<1x8x1xf32> to vector<2x8x512xf32>
    %749 = arith.addf %748, %747 : vector<2x8x512xf32>
    %750 = arith.mulf %734, %749 : vector<2x8x512xf32>
    %c7_507 = arith.constant 7 : index
    %c0_508 = arith.constant 0 : index
    %c2048_509 = arith.constant 2048 : index
    %751 = vector.load %arg1[%c7_507, %c0_508, %c2048_509] : memref<9x2x2560xi8, #tpu.memory_space<vmem>>, vector<1x2x512xi8>
    %752 = vector.shape_cast %751 : vector<1x2x512xi8> to vector<2x512xi8>
    %753 = arith.sitofp %752 : vector<2x512xi8> to vector<2x512xf32>
    %754 = vector.shape_cast %753 : vector<2x512xf32> to vector<2x1x512xf32>
    %c0_510 = arith.constant 0 : index
    %c7_511 = arith.constant 7 : index
    %c0_512 = arith.constant 0 : index
    %c0_513 = arith.constant 0 : index
    %755 = vector.load %arg2[%c0_510, %c7_511, %c0_512, %c0_513] : memref<1x9x8x1xf32, #tpu.memory_space<vmem>>, vector<1x1x8x1xf32>
    %756 = vector.shape_cast %755 : vector<1x1x8x1xf32> to vector<8x1xf32>
    %757 = vector.shape_cast %756 : vector<8x1xf32> to vector<1x8x1xf32>
    %c0_514 = arith.constant 0 : index
    %c7_515 = arith.constant 7 : index
    %c0_516 = arith.constant 0 : index
    %c0_517 = arith.constant 0 : index
    %758 = vector.load %arg3[%c0_514, %c7_515, %c0_516, %c0_517] : memref<1x9x8x1xf32, #tpu.memory_space<vmem>>, vector<1x1x8x1xf32>
    %759 = vector.shape_cast %758 : vector<1x1x8x1xf32> to vector<8x1xf32>
    %760 = vector.shape_cast %759 : vector<8x1xf32> to vector<1x8x1xf32>
    %761 = vector.broadcast %754 : vector<2x1x512xf32> to vector<2x8x512xf32>
    %762 = vector.broadcast %760 : vector<1x8x1xf32> to vector<2x8x512xf32>
    %763 = arith.mulf %761, %762 : vector<2x8x512xf32>
    %764 = vector.broadcast %757 : vector<1x8x1xf32> to vector<2x8x512xf32>
    %765 = arith.addf %764, %763 : vector<2x8x512xf32>
    %766 = arith.mulf %750, %765 : vector<2x8x512xf32>
    %c8_518 = arith.constant 8 : index
    %c0_519 = arith.constant 0 : index
    %c2048_520 = arith.constant 2048 : index
    %767 = vector.load %arg1[%c8_518, %c0_519, %c2048_520] : memref<9x2x2560xi8, #tpu.memory_space<vmem>>, vector<1x2x512xi8>
    %768 = vector.shape_cast %767 : vector<1x2x512xi8> to vector<2x512xi8>
    %769 = arith.sitofp %768 : vector<2x512xi8> to vector<2x512xf32>
    %770 = vector.shape_cast %769 : vector<2x512xf32> to vector<2x1x512xf32>
    %c0_521 = arith.constant 0 : index
    %c8_522 = arith.constant 8 : index
    %c0_523 = arith.constant 0 : index
    %c0_524 = arith.constant 0 : index
    %771 = vector.load %arg2[%c0_521, %c8_522, %c0_523, %c0_524] : memref<1x9x8x1xf32, #tpu.memory_space<vmem>>, vector<1x1x8x1xf32>
    %772 = vector.shape_cast %771 : vector<1x1x8x1xf32> to vector<8x1xf32>
    %773 = vector.shape_cast %772 : vector<8x1xf32> to vector<1x8x1xf32>
    %c0_525 = arith.constant 0 : index
    %c8_526 = arith.constant 8 : index
    %c0_527 = arith.constant 0 : index
    %c0_528 = arith.constant 0 : index
    %774 = vector.load %arg3[%c0_525, %c8_526, %c0_527, %c0_528] : memref<1x9x8x1xf32, #tpu.memory_space<vmem>>, vector<1x1x8x1xf32>
    %775 = vector.shape_cast %774 : vector<1x1x8x1xf32> to vector<8x1xf32>
    %776 = vector.shape_cast %775 : vector<8x1xf32> to vector<1x8x1xf32>
    %777 = vector.broadcast %770 : vector<2x1x512xf32> to vector<2x8x512xf32>
    %778 = vector.broadcast %776 : vector<1x8x1xf32> to vector<2x8x512xf32>
    %779 = arith.mulf %777, %778 : vector<2x8x512xf32>
    %780 = vector.broadcast %773 : vector<1x8x1xf32> to vector<2x8x512xf32>
    %781 = arith.addf %780, %779 : vector<2x8x512xf32>
    %782 = arith.mulf %766, %781 : vector<2x8x512xf32>
    %cst_529 = arith.constant 5.000000e-01 : f32
    %783 = vector.broadcast %cst_529 : f32 to vector<2x8x512xf32>
    %784 = arith.subf %783, %782 : vector<2x8x512xf32>
    %cst_530 = arith.constant 1.000000e+01 : f32
    %785 = vector.broadcast %cst_530 : f32 to vector<2x8x512xf32>
    %786 = arith.mulf %784, %785 : vector<2x8x512xf32>
    %787 = math.exp %786 : vector<2x8x512xf32>
    %cst_531 = arith.constant 1.000000e+00 : f32
    %788 = vector.broadcast %cst_531 : f32 to vector<2x8x512xf32>
    %789 = arith.addf %788, %787 : vector<2x8x512xf32>
    %cst_532 = arith.constant 1.000000e+00 : f32
    %790 = vector.broadcast %cst_532 : f32 to vector<2x8x512xf32>
    %791 = arith.divf %790, %789 : vector<2x8x512xf32>
    %792 = tpu.iota {dimensions = array<i32: 2>} : vector<1x1x512xi32>
    %c68_i32 = arith.constant 68 : i32
    %793 = vector.broadcast %c68_i32 : i32 to vector<1x1x512xi32>
    %794 = arith.cmpi slt, %792, %793 : vector<1x1x512xi32>
    %795 = arith.extui %794 : vector<1x1x512xi1> to vector<1x1x512xi32>
    %796 = arith.sitofp %795 : vector<1x1x512xi32> to vector<1x1x512xf32>
    %c0_533 = arith.constant 0 : index
    %c0_534 = arith.constant 0 : index
    %c0_535 = arith.constant 0 : index
    %797 = vector.load %arg4[%c0_533, %c0_534, %c0_535] : memref<1x2x8xf32, #tpu.memory_space<vmem>>, vector<1x2x8xf32>
    %798 = vector.shape_cast %797 : vector<1x2x8xf32> to vector<2x8xf32>
    %799 = vector.broadcast %796 : vector<1x1x512xf32> to vector<2x8x512xf32>
    %800 = arith.mulf %791, %799 : vector<2x8x512xf32>
    %cst_536 = arith.constant dense<0.000000e+00> : vector<2x8xf32>
    %801 = vector.multi_reduction <add>, %800, %cst_536 [2] : vector<2x8x512xf32> to vector<2x8xf32>
    %802 = arith.addf %798, %801 : vector<2x8xf32>
    %c0_537 = arith.constant 0 : index
    %c0_538 = arith.constant 0 : index
    %c0_539 = arith.constant 0 : index
    %803 = vector.load %arg4[%c0_537, %c0_538, %c0_539] : memref<1x2x8xf32, #tpu.memory_space<vmem>>, vector<1x2x8xf32>
    %804 = vector.shape_cast %803 : vector<1x2x8xf32> to vector<2x8xf32>
    %805 = vector.shape_cast %802 : vector<2x8xf32> to vector<1x2x8xf32>
    tpu.vector_store %arg4[%c0_537, %c0_538, %c0_539], %805 {strides = array<i32>} : memref<1x2x8xf32, #tpu.memory_space<vmem>>, vector<1x2x8xf32>,
    return
  }
  func.func @transform_0(%arg0: i32) -> (i32, i32, i32) {
    %c0_i32 = arith.constant 0 : i32
    %c0_i32_0 = arith.constant 0 : i32
    %c0_i32_1 = arith.constant 0 : i32
    return %c0_i32, %c0_i32_0, %arg0 : i32, i32, i32
  }
  func.func @transform_1(%arg0: i32) -> (i32, i32, i32, i32) {
    %c0_i32 = arith.constant 0 : i32
    %c0_i32_0 = arith.constant 0 : i32
    %c0_i32_1 = arith.constant 0 : i32
    %c0_i32_2 = arith.constant 0 : i32
    %c0_i32_3 = arith.constant 0 : i32
    return %c0_i32, %c0_i32_0, %c0_i32_1, %c0_i32_2 : i32, i32, i32, i32
  }
  func.func @transform_2(%arg0: i32) -> (i32, i32, i32, i32) {
    %c0_i32 = arith.constant 0 : i32
    %c0_i32_0 = arith.constant 0 : i32
    %c0_i32_1 = arith.constant 0 : i32
    %c0_i32_2 = arith.constant 0 : i32
    %c0_i32_3 = arith.constant 0 : i32
    return %c0_i32, %c0_i32_0, %c0_i32_1, %c0_i32_2 : i32, i32, i32, i32
  }
  func.func @transform_3(%arg0: i32) -> (i32, i32, i32) {
    %c0_i32 = arith.constant 0 : i32
    %c0_i32_0 = arith.constant 0 : i32
    %c0_i32_1 = arith.constant 0 : i32
    return %arg0, %c0_i32, %c0_i32_0 : i32, i32, i32
  }
}

</mosaic_0001>

<llo_original>
// kernel: tpu_custom_call.1
$region0: #{tpu_custom_call.1}
  #allocation0 [shape = 'u32[]', space=smem, size = 0x4, offset = 0x4, fixed_abs, tag = 'smem constant byte address 0x4 - core index']
  #allocation1 [shape = 'u32[144,128]{1,0:T(1,128)}', space=vmem, size = 0x12000, scoped, tag = 'internal scratch']
  %s0 = inlined_call_operand.vmem [shape: s8[9,2,2560], index: 0, kind: input, shape index: {}]
  %s1 = inlined_call_operand.vmem [shape: f32[1,9,8,1], index: 1, kind: input, shape index: {}]
  %s2 = inlined_call_operand.vmem [shape: f32[1,9,8,1], index: 2, kind: input, shape index: {}]
  %s3 = inlined_call_operand.hbm [shape: f32[1,2,8], index: 3, kind: output, shape index: {}]
  %s4 = sld [smem:[#allocation0]]
  $region22: #{tpu_custom_call.1} parent=0
    _
  %s6 = ssub.s32 1, %s4
  %s7 = scalar_select 0, %s6, %s4
  $region1: #{tpu_custom_call.1} parent=0
    #allocation2 [shape = 'u8[1024]{0}', space=vmem, size = 0x400, scoped, tag = 'output window, operand 0, single buffered']
    #allocation3 [shape = 's32[1]{0}', space=sflag, size = 0x4, scoped, tag = 'scoped memory for tpu_custom_call.1']
    %8 = vsyncpa [#allocation3], 0
    // Predicated region
    $region2: #{tpu_custom_call.1} parent=1 // pred_check
      _
    $region3: #{tpu_custom_call.1} parent=1 // pred_check_branch
      %10 = sbr.rel (0) target = $region5
    $region4: #{tpu_custom_call.1} parent=1 // pred_region
      _
    $region5: #{tpu_custom_call.1} parent=1 // pred_fallthru
      _
    // Predicated region
    $region6: #{tpu_custom_call.1} parent=1 // pred_check
      _
    $region7: #{tpu_custom_call.1} parent=1 // pred_check_branch
      %12 = sbr.rel (0) target = $region9
    $region8: #{tpu_custom_call.1} parent=1 // pred_region
      _
    $region9: #{tpu_custom_call.1} parent=1 // pred_fallthru
      _
    // Predicated region
    $region10: #{tpu_custom_call.1} parent=1 // pred_check
      _
    $region11: #{tpu_custom_call.1} parent=1 // pred_check_branch
      %14 = sbr.rel (0) target = $region13
    $region12: #{tpu_custom_call.1} parent=1 // pred_region
      _
    $region13: #{tpu_custom_call.1} parent=1 // pred_fallthru
      _
    %vm15 = vcmask 58368
    %16 = vst.msk [vmem:[#allocation2] sm:$0x3] %vm15, 0.0
    %v17 = vld [vmem:[%s0] sm:$0xf]
    %v18 = vunpack.c.0.s8 %v17
    %v19 = vunpack.c.1.s8 %v17
    %v20 = vcvt.s32.f32 %v18
    %v21 = vcvt.s32.f32 %v19
    %v25 = vunpack.c.l.s4 1966171168
    %v26 = vunpack.c.0.s8 %v25
    %v27 = vlaneseq
    %v28 = vshrl.u32 %v27, 7
    %v29 = vsub.s32 %v26, %v28
    %v30 = vrot.slane %v20, %v29
    %v32 = vunpack.c.l.s4 1966171168
    %v33 = vunpack.c.0.s8 %v32
    %v34 = vlaneseq
    %v35 = vshrl.u32 %v34, 7
    %v36 = vsub.s32 %v33, %v35
    %v37 = vrot.slane %v21, %v36
    %v38 = vcombine.low %v30, %v37
    %v39 = vcombine.high %v30, %v37
    %v41 = vunpack.c.l.s4 1966171168
    %v42 = vunpack.c.0.s8 %v41
    %v43 = vlaneseq
    %v44 = vshrl.u32 %v43, 7
    %v45 = vsub.s32 %v42, %v44
    %v46 = vrot.slane %v38, %v45
    %v48 = vunpack.c.l.s4 1966171168
    %v49 = vunpack.c.0.s8 %v48
    %v50 = vlaneseq
    %v51 = vshrl.u32 %v50, 7
    %v52 = vsub.s32 %v49, %v51
    %v53 = vrot.slane %v39, %v52
    %v54 = vld [vmem:[%s1] sm:$0xff]
    %v55 = vld [vmem:[%s2] sm:$0xff]
    %v56 = vlaneseq
    %v57 = vshrl.u32 %v56, 7
    %v58 = vsub.s32 0, %v57
    %v59 = vrot.slane %v46, %v58
    %v60 = vlaneseq
    %v61 = vshrl.u32 %v60, 7
    %v62 = vsub.s32 1, %v61
    %v63 = vrot.slane %v46, %v62
    %v64 = vlaneseq
    %v65 = vshrl.u32 %v64, 7
    %v66 = vsub.s32 2, %v65
    %v67 = vrot.slane %v46, %v66
    %v68 = vlaneseq
    %v69 = vshrl.u32 %v68, 7
    %v70 = vsub.s32 3, %v69
    %v71 = vrot.slane %v46, %v70
    %v72 = vlaneseq
    %v73 = vshrl.u32 %v72, 7
    %v74 = vsub.s32 0, %v73
    %v75 = vrot.slane %v53, %v74
    %v76 = vlaneseq
    %v77 = vshrl.u32 %v76, 7
    %v78 = vsub.s32 1, %v77
    %v79 = vrot.slane %v53, %v78
    %v80 = vlaneseq
    %v81 = vshrl.u32 %v80, 7
    %v82 = vsub.s32 2, %v81
    %v83 = vrot.slane %v53, %v82
    %v84 = vlaneseq
    %v85 = vshrl.u32 %v84, 7
    %v86 = vsub.s32 3, %v85
    %v87 = vrot.slane %v53, %v86
    %97 = vset.pattern.permute.xlu0 0
    %98 = vperm.xlu0 %97, %v55
    %v99 = vpop.permute.xlu0 %98
    %v101 = vmul.f32 %v59, %v99
    %v102 = vmul.f32 %v63, %v99
    %v103 = vmul.f32 %v67, %v99
    %v104 = vmul.f32 %v71, %v99
    %v105 = vmul.f32 %v75, %v99
    %v106 = vmul.f32 %v79, %v99
    %v107 = vmul.f32 %v83, %v99
    %v108 = vmul.f32 %v87, %v99
    %110 = vset.pattern.permute.xlu0 0
    %111 = vperm.xlu0 %110, %v54
    %v112 = vpop.permute.xlu0 %111
    %v114 = vadd.f32 %v112, %v101
    %v115 = vadd.f32 %v112, %v102
    %v116 = vadd.f32 %v112, %v103
    %v117 = vadd.f32 %v112, %v104
    %v118 = vadd.f32 %v112, %v105
    %v119 = vadd.f32 %v112, %v106
    %v120 = vadd.f32 %v112, %v107
    %v121 = vadd.f32 %v112, %v108
    %s122 = scalar_lea.vmem %s0, 20
    %v123 = vld [vmem:[%s122] sm:$0xf]
    %v124 = vunpack.c.0.s8 %v123
    %v125 = vunpack.c.1.s8 %v123
    %v126 = vcvt.s32.f32 %v124
    %v127 = vcvt.s32.f32 %v125
    %v131 = vunpack.c.l.s4 1966171168
    %v132 = vunpack.c.0.s8 %v131
    %v133 = vlaneseq
    %v134 = vshrl.u32 %v133, 7
    %v135 = vsub.s32 %v132, %v134
    %v136 = vrot.slane %v126, %v135
    %v138 = vunpack.c.l.s4 1966171168
    %v139 = vunpack.c.0.s8 %v138
    %v140 = vlaneseq
    %v141 = vshrl.u32 %v140, 7
    %v142 = vsub.s32 %v139, %v141
    %v143 = vrot.slane %v127, %v142
    %v144 = vcombine.low %v136, %v143
    %v145 = vcombine.high %v136, %v143
    %v147 = vunpack.c.l.s4 1966171168
    %v148 = vunpack.c.0.s8 %v147
    %v149 = vlaneseq
    %v150 = vshrl.u32 %v149, 7
    %v151 = vsub.s32 %v148, %v150
    %v152 = vrot.slane %v144, %v151
    %v154 = vunpack.c.l.s4 1966171168
    %v155 = vunpack.c.0.s8 %v154
    %v156 = vlaneseq
    %v157 = vshrl.u32 %v156, 7
    %v158 = vsub.s32 %v155, %v157
    %v159 = vrot.slane %v145, %v158
    %s160 = scalar_lea.vmem %s1, 8
    %v161 = vld [vmem:[%s160] sm:$0xff]
    %s162 = scalar_lea.vmem %s2, 8
    %v163 = vld [vmem:[%s162] sm:$0xff]
    %v164 = vlaneseq
    %v165 = vshrl.u32 %v164, 7
    %v166 = vsub.s32 0, %v165
    %v167 = vrot.slane %v152, %v166
    %v168 = vlaneseq
    %v169 = vshrl.u32 %v168, 7
    %v170 = vsub.s32 1, %v169
    %v171 = vrot.slane %v152, %v170
    %v172 = vlaneseq
    %v173 = vshrl.u32 %v172, 7
    %v174 = vsub.s32 2, %v173
    %v175 = vrot.slane %v152, %v174
    %v176 = vlaneseq
    %v177 = vshrl.u32 %v176, 7
    %v178 = vsub.s32 3, %v177
    %v179 = vrot.slane %v152, %v178
    %v180 = vlaneseq
    %v181 = vshrl.u32 %v180, 7
    %v182 = vsub.s32 0, %v181
    %v183 = vrot.slane %v159, %v182
    %v184 = vlaneseq
    %v185 = vshrl.u32 %v184, 7
    %v186 = vsub.s32 1, %v185
    %v187 = vrot.slane %v159, %v186
    %v188 = vlaneseq
    %v189 = vshrl.u32 %v188, 7
    %v190 = vsub.s32 2, %v189
    %v191 = vrot.slane %v159, %v190
    %v192 = vlaneseq
    %v193 = vshrl.u32 %v192, 7
    %v194 = vsub.s32 3, %v193
    %v195 = vrot.slane %v159, %v194
    %205 = vset.pattern.permute.xlu0 0
    %206 = vperm.xlu0 %205, %v163
    %v207 = vpop.permute.xlu0 %206
    %v209 = vmul.f32 %v167, %v207
    %v210 = vmul.f32 %v171, %v207
    %v211 = vmul.f32 %v175, %v207
    %v212 = vmul.f32 %v179, %v207
    %v213 = vmul.f32 %v183, %v207
    %v214 = vmul.f32 %v187, %v207
    %v215 = vmul.f32 %v191, %v207
    %v216 = vmul.f32 %v195, %v207
    %218 = vset.pattern.permute.xlu0 0
    %219 = vperm.xlu0 %218, %v161
    %v220 = vpop.permute.xlu0 %219
    %v222 = vadd.f32 %v220, %v209
    %v223 = vadd.f32 %v220, %v210
    %v224 = vadd.f32 %v220, %v211
    %v225 = vadd.f32 %v220, %v212
    %v226 = vadd.f32 %v220, %v213
    %v227 = vadd.f32 %v220, %v214
    %v228 = vadd.f32 %v220, %v215
    %v229 = vadd.f32 %v220, %v216
    %v230 = vmul.f32 %v114, %v222
    %v231 = vmul.f32 %v115, %v223
    %v232 = vmul.f32 %v116, %v224
    %v233 = vmul.f32 %v117, %v225
    %v234 = vmul.f32 %v118, %v226
    %v235 = vmul.f32 %v119, %v227
    %v236 = vmul.f32 %v120, %v228
    %v237 = vmul.f32 %v121, %v229
    %s238 = scalar_lea.vmem %s0, 40
    %v239 = vld [vmem:[%s238] sm:$0xf]
    %v240 = vunpack.c.0.s8 %v239
    %v241 = vunpack.c.1.s8 %v239
    %v242 = vcvt.s32.f32 %v240
    %v243 = vcvt.s32.f32 %v241
    %v247 = vunpack.c.l.s4 1966171168
    %v248 = vunpack.c.0.s8 %v247
    %v249 = vlaneseq
    %v250 = vshrl.u32 %v249, 7
    %v251 = vsub.s32 %v248, %v250
    %v252 = vrot.slane %v242, %v251
    %v254 = vunpack.c.l.s4 1966171168
    %v255 = vunpack.c.0.s8 %v254
    %v256 = vlaneseq
    %v257 = vshrl.u32 %v256, 7
    %v258 = vsub.s32 %v255, %v257
    %v259 = vrot.slane %v243, %v258
    %v260 = vcombine.low %v252, %v259
    %v261 = vcombine.high %v252, %v259
    %v263 = vunpack.c.l.s4 1966171168
    %v264 = vunpack.c.0.s8 %v263
    %v265 = vlaneseq
    %v266 = vshrl.u32 %v265, 7
    %v267 = vsub.s32 %v264, %v266
    %v268 = vrot.slane %v260, %v267
    %v270 = vunpack.c.l.s4 1966171168
    %v271 = vunpack.c.0.s8 %v270
    %v272 = vlaneseq
    %v273 = vshrl.u32 %v272, 7
    %v274 = vsub.s32 %v271, %v273
    %v275 = vrot.slane %v261, %v274
    %s276 = scalar_lea.vmem %s1, 16
    %v277 = vld [vmem:[%s276] sm:$0xff]
    %s278 = scalar_lea.vmem %s2, 16
    %v279 = vld [vmem:[%s278] sm:$0xff]
    %v280 = vlaneseq
    %v281 = vshrl.u32 %v280, 7
    %v282 = vsub.s32 0, %v281
    %v283 = vrot.slane %v268, %v282
    %v284 = vlaneseq
    %v285 = vshrl.u32 %v284, 7
    %v286 = vsub.s32 1, %v285
    %v287 = vrot.slane %v268, %v286
    %v288 = vlaneseq
    %v289 = vshrl.u32 %v288, 7
    %v290 = vsub.s32 2, %v289
    %v291 = vrot.slane %v268, %v290
    %v292 = vlaneseq
    %v293 = vshrl.u32 %v292, 7
    %v294 = vsub.s32 3, %v293
    %v295 = vrot.slane %v268, %v294
    %v296 = vlaneseq
    %v297 = vshrl.u32 %v296, 7
    %v298 = vsub.s32 0, %v297
    %v299 = vrot.slane %v275, %v298
    %v300 = vlaneseq
    %v301 = vshrl.u32 %v300, 7
    %v302 = vsub.s32 1, %v301
    %v303 = vrot.slane %v275, %v302
    %v304 = vlaneseq
    %v305 = vshrl.u32 %v304, 7
    %v306 = vsub.s32 2, %v305
    %v307 = vrot.slane %v275, %v306
    %v308 = vlaneseq
    %v309 = vshrl.u32 %v308, 7
    %v310 = vsub.s32 3, %v309
    %v311 = vrot.slane %v275, %v310
    %321 = vset.pattern.permute.xlu0 0
    %322 = vperm.xlu0 %321, %v279
    %v323 = vpop.permute.xlu0 %322
    %v325 = vmul.f32 %v283, %v323
    %v326 = vmul.f32 %v287, %v323
    %v327 = vmul.f32 %v291, %v323
    %v328 = vmul.f32 %v295, %v323
    %v329 = vmul.f32 %v299, %v323
    %v330 = vmul.f32 %v303, %v323
    %v331 = vmul.f32 %v307, %v323
    %v332 = vmul.f32 %v311, %v323
    %334 = vset.pattern.permute.xlu0 0
    %335 = vperm.xlu0 %334, %v277
    %v336 = vpop.permute.xlu0 %335
    %v338 = vadd.f32 %v336, %v325
    %v339 = vadd.f32 %v336, %v326
    %v340 = vadd.f32 %v336, %v327
    %v341 = vadd.f32 %v336, %v328
    %v342 = vadd.f32 %v336, %v329
    %v343 = vadd.f32 %v336, %v330
    %v344 = vadd.f32 %v336, %v331
    %v345 = vadd.f32 %v336, %v332
    %v346 = vmul.f32 %v230, %v338
    %v347 = vmul.f32 %v231, %v339
    %v348 = vmul.f32 %v232, %v340
    %v349 = vmul.f32 %v233, %v341
    %v350 = vmul.f32 %v234, %v342
    %v351 = vmul.f32 %v235, %v343
    %v352 = vmul.f32 %v236, %v344
    %v353 = vmul.f32 %v237, %v345
    %s354 = scalar_lea.vmem %s0, 60
    %v355 = vld [vmem:[%s354] sm:$0xf]
    %v356 = vunpack.c.0.s8 %v355
    %v357 = vunpack.c.1.s8 %v355
    %v358 = vcvt.s32.f32 %v356
    %v359 = vcvt.s32.f32 %v357
    %v363 = vunpack.c.l.s4 1966171168
    %v364 = vunpack.c.0.s8 %v363
    %v365 = vlaneseq
    %v366 = vshrl.u32 %v365, 7
    %v367 = vsub.s32 %v364, %v366
    %v368 = vrot.slane %v358, %v367
    %v370 = vunpack.c.l.s4 1966171168
    %v371 = vunpack.c.0.s8 %v370
    %v372 = vlaneseq
    %v373 = vshrl.u32 %v372, 7
    %v374 = vsub.s32 %v371, %v373
    %v375 = vrot.slane %v359, %v374
    %v376 = vcombine.low %v368, %v375
    %v377 = vcombine.high %v368, %v375
    %v379 = vunpack.c.l.s4 1966171168
    %v380 = vunpack.c.0.s8 %v379
    %v381 = vlaneseq
    %v382 = vshrl.u32 %v381, 7
    %v383 = vsub.s32 %v380, %v382
    %v384 = vrot.slane %v376, %v383
    %v386 = vunpack.c.l.s4 1966171168
    %v387 = vunpack.c.0.s8 %v386
    %v388 = vlaneseq
    %v389 = vshrl.u32 %v388, 7
    %v390 = vsub.s32 %v387, %v389
    %v391 = vrot.slane %v377, %v390
    %s392 = scalar_lea.vmem %s1, 24
    %v393 = vld [vmem:[%s392] sm:$0xff]
    %s394 = scalar_lea.vmem %s2, 24
    %v395 = vld [vmem:[%s394] sm:$0xff]
    %v396 = vlaneseq
    %v397 = vshrl.u32 %v396, 7
    %v398 = vsub.s32 0, %v397
    %v399 = vrot.slane %v384, %v398
    %v400 = vlaneseq
    %v401 = vshrl.u32 %v400, 7
    %v402 = vsub.s32 1, %v401
    %v403 = vrot.slane %v384, %v402
    %v404 = vlaneseq
    %v405 = vshrl.u32 %v404, 7
    %v406 = vsub.s32 2, %v405
    %v407 = vrot.slane %v384, %v406
    %v408 = vlaneseq
    %v409 = vshrl.u32 %v408, 7
    %v410 = vsub.s32 3, %v409
    %v411 = vrot.slane %v384, %v410
    %v412 = vlaneseq
    %v413 = vshrl.u32 %v412, 7
    %v414 = vsub.s32 0, %v413
    %v415 = vrot.slane %v391, %v414
    %v416 = vlaneseq
    %v417 = vshrl.u32 %v416, 7
    %v418 = vsub.s32 1, %v417
    %v419 = vrot.slane %v391, %v418
    %v420 = vlaneseq
    %v421 = vshrl.u32 %v420, 7
    %v422 = vsub.s32 2, %v421
    %v423 = vrot.slane %v391, %v422
    %v424 = vlaneseq
    %v425 = vshrl.u32 %v424, 7
    %v426 = vsub.s32 3, %v425
    %v427 = vrot.slane %v391, %v426
    %437 = vset.pattern.permute.xlu0 0
    %438 = vperm.xlu0 %437, %v395
    %v439 = vpop.permute.xlu0 %438
    %v441 = vmul.f32 %v399, %v439
    %v442 = vmul.f32 %v403, %v439
    %v443 = vmul.f32 %v407, %v439
    %v444 = vmul.f32 %v411, %v439
    %v445 = vmul.f32 %v415, %v439
    %v446 = vmul.f32 %v419, %v439
    %v447 = vmul.f32 %v423, %v439
    %v448 = vmul.f32 %v427, %v439
    %450 = vset.pattern.permute.xlu0 0
    %451 = vperm.xlu0 %450, %v393
    %v452 = vpop.permute.xlu0 %451
    %v454 = vadd.f32 %v452, %v441
    %v455 = vadd.f32 %v452, %v442
    %v456 = vadd.f32 %v452, %v443
    %v457 = vadd.f32 %v452, %v444
    %v458 = vadd.f32 %v452, %v445
    %v459 = vadd.f32 %v452, %v446
    %v460 = vadd.f32 %v452, %v447
    %v461 = vadd.f32 %v452, %v448
    %v462 = vmul.f32 %v346, %v454
    %v463 = vmul.f32 %v347, %v455
    %v464 = vmul.f32 %v348, %v456
    %v465 = vmul.f32 %v349, %v457
    %v466 = vmul.f32 %v350, %v458
    %v467 = vmul.f32 %v351, %v459
    %v468 = vmul.f32 %v352, %v460
    %v469 = vmul.f32 %v353, %v461
    %s470 = scalar_lea.vmem %s0, 80
    %v471 = vld [vmem:[%s470] sm:$0xf]
    %v472 = vunpack.c.0.s8 %v471
    %v473 = vunpack.c.1.s8 %v471
    %v474 = vcvt.s32.f32 %v472
    %v475 = vcvt.s32.f32 %v473
    %v479 = vunpack.c.l.s4 1966171168
    %v480 = vunpack.c.0.s8 %v479
    %v481 = vlaneseq
    %v482 = vshrl.u32 %v481, 7
    %v483 = vsub.s32 %v480, %v482
    %v484 = vrot.slane %v474, %v483
    %v486 = vunpack.c.l.s4 1966171168
    %v487 = vunpack.c.0.s8 %v486
    %v488 = vlaneseq
    %v489 = vshrl.u32 %v488, 7
    %v490 = vsub.s32 %v487, %v489
    %v491 = vrot.slane %v475, %v490
    %v492 = vcombine.low %v484, %v491
    %v493 = vcombine.high %v484, %v491
    %v495 = vunpack.c.l.s4 1966171168
    %v496 = vunpack.c.0.s8 %v495
    %v497 = vlaneseq
    %v498 = vshrl.u32 %v497, 7
    %v499 = vsub.s32 %v496, %v498
    %v500 = vrot.slane %v492, %v499
    %v502 = vunpack.c.l.s4 1966171168
    %v503 = vunpack.c.0.s8 %v502
    %v504 = vlaneseq
    %v505 = vshrl.u32 %v504, 7
    %v506 = vsub.s32 %v503, %v505
    %v507 = vrot.slane %v493, %v506
    %s508 = scalar_lea.vmem %s1, 32
    %v509 = vld [vmem:[%s508] sm:$0xff]
    %s510 = scalar_lea.vmem %s2, 32
    %v511 = vld [vmem:[%s510] sm:$0xff]
    %v512 = vlaneseq
    %v513 = vshrl.u32 %v512, 7
    %v514 = vsub.s32 0, %v513
    %v515 = vrot.slane %v500, %v514
    %v516 = vlaneseq
    %v517 = vshrl.u32 %v516, 7
    %v518 = vsub.s32 1, %v517
    %v519 = vrot.slane %v500, %v518
    %v520 = vlaneseq
    %v521 = vshrl.u32 %v520, 7
    %v522 = vsub.s32 2, %v521
    %v523 = vrot.slane %v500, %v522
    %v524 = vlaneseq
    %v525 = vshrl.u32 %v524, 7
    %v526 = vsub.s32 3, %v525
    %v527 = vrot.slane %v500, %v526
    %v528 = vlaneseq
    %v529 = vshrl.u32 %v528, 7
    %v530 = vsub.s32 0, %v529
    %v531 = vrot.slane %v507, %v530
    %v532 = vlaneseq
    %v533 = vshrl.u32 %v532, 7
    %v534 = vsub.s32 1, %v533
    %v535 = vrot.slane %v507, %v534
    %v536 = vlaneseq
    %v537 = vshrl.u32 %v536, 7
    %v538 = vsub.s32 2, %v537
    %v539 = vrot.slane %v507, %v538
    %v540 = vlaneseq
    %v541 = vshrl.u32 %v540, 7
    %v542 = vsub.s32 3, %v541
    %v543 = vrot.slane %v507, %v542
    %553 = vset.pattern.permute.xlu0 0
    %554 = vperm.xlu0 %553, %v511
    %v555 = vpop.permute.xlu0 %554
    %v557 = vmul.f32 %v515, %v555
    %v558 = vmul.f32 %v519, %v555
    %v559 = vmul.f32 %v523, %v555
    %v560 = vmul.f32 %v527, %v555
    %v561 = vmul.f32 %v531, %v555
    %v562 = vmul.f32 %v535, %v555
    %v563 = vmul.f32 %v539, %v555
    %v564 = vmul.f32 %v543, %v555
    %566 = vset.pattern.permute.xlu0 0
    %567 = vperm.xlu0 %566, %v509
    %v568 = vpop.permute.xlu0 %567
    %v570 = vadd.f32 %v568, %v557
    %v571 = vadd.f32 %v568, %v558
    %v572 = vadd.f32 %v568, %v559
    %v573 = vadd.f32 %v568, %v560
    %v574 = vadd.f32 %v568, %v561
    %v575 = vadd.f32 %v568, %v562
    %v576 = vadd.f32 %v568, %v563
    %v577 = vadd.f32 %v568, %v564
    %v578 = vmul.f32 %v462, %v570
    %v579 = vmul.f32 %v463, %v571
    %v580 = vmul.f32 %v464, %v572
    %v581 = vmul.f32 %v465, %v573
    %v582 = vmul.f32 %v466, %v574
    %v583 = vmul.f32 %v467, %v575
    %v584 = vmul.f32 %v468, %v576
    %v585 = vmul.f32 %v469, %v577
    %s586 = scalar_lea.vmem %s0, 100
    %v587 = vld [vmem:[%s586] sm:$0xf]
    %v588 = vunpack.c.0.s8 %v587
    %v589 = vunpack.c.1.s8 %v587
    %v590 = vcvt.s32.f32 %v588
    %v591 = vcvt.s32.f32 %v589
    %v595 = vunpack.c.l.s4 1966171168
    %v596 = vunpack.c.0.s8 %v595
    %v597 = vlaneseq
    %v598 = vshrl.u32 %v597, 7
    %v599 = vsub.s32 %v596, %v598
    %v600 = vrot.slane %v590, %v599
    %v602 = vunpack.c.l.s4 1966171168
    %v603 = vunpack.c.0.s8 %v602
    %v604 = vlaneseq
    %v605 = vshrl.u32 %v604, 7
    %v606 = vsub.s32 %v603, %v605
    %v607 = vrot.slane %v591, %v606
    %v608 = vcombine.low %v600, %v607
    %v609 = vcombine.high %v600, %v607
    %v611 = vunpack.c.l.s4 1966171168
    %v612 = vunpack.c.0.s8 %v611
    %v613 = vlaneseq
    %v614 = vshrl.u32 %v613, 7
    %v615 = vsub.s32 %v612, %v614
    %v616 = vrot.slane %v608, %v615
    %v618 = vunpack.c.l.s4 1966171168
    %v619 = vunpack.c.0.s8 %v618
    %v620 = vlaneseq
    %v621 = vshrl.u32 %v620, 7
    %v622 = vsub.s32 %v619, %v621
    %v623 = vrot.slane %v609, %v622
    %s624 = scalar_lea.vmem %s1, 40
    %v625 = vld [vmem:[%s624] sm:$0xff]
    %s626 = scalar_lea.vmem %s2, 40
    %v627 = vld [vmem:[%s626] sm:$0xff]
    %v628 = vlaneseq
    %v629 = vshrl.u32 %v628, 7
    %v630 = vsub.s32 0, %v629
    %v631 = vrot.slane %v616, %v630
    %v632 = vlaneseq
    %v633 = vshrl.u32 %v632, 7
    %v634 = vsub.s32 1, %v633
    %v635 = vrot.slane %v616, %v634
    %v636 = vlaneseq
    %v637 = vshrl.u32 %v636, 7
    %v638 = vsub.s32 2, %v637
    %v639 = vrot.slane %v616, %v638
    %v640 = vlaneseq
    %v641 = vshrl.u32 %v640, 7
    %v642 = vsub.s32 3, %v641
    %v643 = vrot.slane %v616, %v642
    %v644 = vlaneseq
    %v645 = vshrl.u32 %v644, 7
    %v646 = vsub.s32 0, %v645
    %v647 = vrot.slane %v623, %v646
    %v648 = vlaneseq
    %v649 = vshrl.u32 %v648, 7
    %v650 = vsub.s32 1, %v649
    %v651 = vrot.slane %v623, %v650
    %v652 = vlaneseq
    %v653 = vshrl.u32 %v652, 7
    %v654 = vsub.s32 2, %v653
    %v655 = vrot.slane %v623, %v654
    %v656 = vlaneseq
    %v657 = vshrl.u32 %v656, 7
    %v658 = vsub.s32 3, %v657
    %v659 = vrot.slane %v623, %v658
    %669 = vset.pattern.permute.xlu0 0
    %670 = vperm.xlu0 %669, %v627
    %v671 = vpop.permute.xlu0 %670
    %v673 = vmul.f32 %v631, %v671
    %v674 = vmul.f32 %v635, %v671
    %v675 = vmul.f32 %v639, %v671
    %v676 = vmul.f32 %v643, %v671
    %v677 = vmul.f32 %v647, %v671
    %v678 = vmul.f32 %v651, %v671
    %v679 = vmul.f32 %v655, %v671
    %v680 = vmul.f32 %v659, %v671
    %682 = vset.pattern.permute.xlu0 0
    %683 = vperm.xlu0 %682, %v625
    %v684 = vpop.permute.xlu0 %683
    %v686 = vadd.f32 %v684, %v673
    %v687 = vadd.f32 %v684, %v674
    %v688 = vadd.f32 %v684, %v675
    %v689 = vadd.f32 %v684, %v676
    %v690 = vadd.f32 %v684, %v677
    %v691 = vadd.f32 %v684, %v678
    %v692 = vadd.f32 %v684, %v679
    %v693 = vadd.f32 %v684, %v680
    %v694 = vmul.f32 %v578, %v686
    %v695 = vmul.f32 %v579, %v687
    %v696 = vmul.f32 %v580, %v688
    %v697 = vmul.f32 %v581, %v689
    %v698 = vmul.f32 %v582, %v690
    %v699 = vmul.f32 %v583, %v691
    %v700 = vmul.f32 %v584, %v692
    %v701 = vmul.f32 %v585, %v693
    %s702 = scalar_lea.vmem %s0, 120
    %v703 = vld [vmem:[%s702] sm:$0xf]
    %v704 = vunpack.c.0.s8 %v703
    %v705 = vunpack.c.1.s8 %v703
    %v706 = vcvt.s32.f32 %v704
    %v707 = vcvt.s32.f32 %v705
    %v711 = vunpack.c.l.s4 1966171168
    %v712 = vunpack.c.0.s8 %v711
    %v713 = vlaneseq
    %v714 = vshrl.u32 %v713, 7
    %v715 = vsub.s32 %v712, %v714
    %v716 = vrot.slane %v706, %v715
    %v718 = vunpack.c.l.s4 1966171168
    %v719 = vunpack.c.0.s8 %v718
    %v720 = vlaneseq
    %v721 = vshrl.u32 %v720, 7
    %v722 = vsub.s32 %v719, %v721
    %v723 = vrot.slane %v707, %v722
    %v724 = vcombine.low %v716, %v723
    %v725 = vcombine.high %v716, %v723
    %v727 = vunpack.c.l.s4 1966171168
    %v728 = vunpack.c.0.s8 %v727
    %v729 = vlaneseq
    %v730 = vshrl.u32 %v729, 7
    %v731 = vsub.s32 %v728, %v730
    %v732 = vrot.slane %v724, %v731
    %v734 = vunpack.c.l.s4 1966171168
    %v735 = vunpack.c.0.s8 %v734
    %v736 = vlaneseq
    %v737 = vshrl.u32 %v736, 7
    %v738 = vsub.s32 %v735, %v737
    %v739 = vrot.slane %v725, %v738
    %s740 = scalar_lea.vmem %s1, 48
    %v741 = vld [vmem:[%s740] sm:$0xff]
    %s742 = scalar_lea.vmem %s2, 48
    %v743 = vld [vmem:[%s742] sm:$0xff]
    %v744 = vlaneseq
    %v745 = vshrl.u32 %v744, 7
    %v746 = vsub.s32 0, %v745
    %v747 = vrot.slane %v732, %v746
    %v748 = vlaneseq
    %v749 = vshrl.u32 %v748, 7
    %v750 = vsub.s32 1, %v749
    %v751 = vrot.slane %v732, %v750
    %v752 = vlaneseq
    %v753 = vshrl.u32 %v752, 7
    %v754 = vsub.s32 2, %v753
    %v755 = vrot.slane %v732, %v754
    %v756 = vlaneseq
    %v757 = vshrl.u32 %v756, 7
    %v758 = vsub.s32 3, %v757
    %v759 = vrot.slane %v732, %v758
    %v760 = vlaneseq
    %v761 = vshrl.u32 %v760, 7
    %v762 = vsub.s32 0, %v761
    %v763 = vrot.slane %v739, %v762
    %v764 = vlaneseq
    %v765 = vshrl.u32 %v764, 7
    %v766 = vsub.s32 1, %v765
    %v767 = vrot.slane %v739, %v766
    %v768 = vlaneseq
    %v769 = vshrl.u32 %v768, 7
    %v770 = vsub.s32 2, %v769
    %v771 = vrot.slane %v739, %v770
    %v772 = vlaneseq
    %v773 = vshrl.u32 %v772, 7
    %v774 = vsub.s32 3, %v773
    %v775 = vrot.slane %v739, %v774
    %785 = vset.pattern.permute.xlu0 0
    %786 = vperm.xlu0 %785, %v743
    %v787 = vpop.permute.xlu0 %786
    %v789 = vmul.f32 %v747, %v787
    %v790 = vmul.f32 %v751, %v787
    %v791 = vmul.f32 %v755, %v787
    %v792 = vmul.f32 %v759, %v787
    %v793 = vmul.f32 %v763, %v787
    %v794 = vmul.f32 %v767, %v787
    %v795 = vmul.f32 %v771, %v787
    %v796 = vmul.f32 %v775, %v787
    %798 = vset.pattern.permute.xlu0 0
    %799 = vperm.xlu0 %798, %v741
    %v800 = vpop.permute.xlu0 %799
    %v802 = vadd.f32 %v800, %v789
    %v803 = vadd.f32 %v800, %v790
    %v804 = vadd.f32 %v800, %v791
    %v805 = vadd.f32 %v800, %v792
    %v806 = vadd.f32 %v800, %v793
    %v807 = vadd.f32 %v800, %v794
    %v808 = vadd.f32 %v800, %v795
    %v809 = vadd.f32 %v800, %v796
    %v810 = vmul.f32 %v694, %v802
    %v811 = vmul.f32 %v695, %v803
    %v812 = vmul.f32 %v696, %v804
    %v813 = vmul.f32 %v697, %v805
    %v814 = vmul.f32 %v698, %v806
    %v815 = vmul.f32 %v699, %v807
    %v816 = vmul.f32 %v700, %v808
    %v817 = vmul.f32 %v701, %v809
    %s818 = scalar_lea.vmem %s0, 140
    %v819 = vld [vmem:[%s818] sm:$0xf]
    %v820 = vunpack.c.0.s8 %v819
    %v821 = vunpack.c.1.s8 %v819
    %v822 = vcvt.s32.f32 %v820
    %v823 = vcvt.s32.f32 %v821
    %v827 = vunpack.c.l.s4 1966171168
    %v828 = vunpack.c.0.s8 %v827
    %v829 = vlaneseq
    %v830 = vshrl.u32 %v829, 7
    %v831 = vsub.s32 %v828, %v830
    %v832 = vrot.slane %v822, %v831
    %v834 = vunpack.c.l.s4 1966171168
    %v835 = vunpack.c.0.s8 %v834
    %v836 = vlaneseq
    %v837 = vshrl.u32 %v836, 7
    %v838 = vsub.s32 %v835, %v837
    %v839 = vrot.slane %v823, %v838
    %v840 = vcombine.low %v832, %v839
    %v841 = vcombine.high %v832, %v839
    %v843 = vunpack.c.l.s4 1966171168
    %v844 = vunpack.c.0.s8 %v843
    %v845 = vlaneseq
    %v846 = vshrl.u32 %v845, 7
    %v847 = vsub.s32 %v844, %v846
    %v848 = vrot.slane %v840, %v847
    %v850 = vunpack.c.l.s4 1966171168
    %v851 = vunpack.c.0.s8 %v850
    %v852 = vlaneseq
    %v853 = vshrl.u32 %v852, 7
    %v854 = vsub.s32 %v851, %v853
    %v855 = vrot.slane %v841, %v854
    %s856 = scalar_lea.vmem %s1, 56
    %v857 = vld [vmem:[%s856] sm:$0xff]
    %s858 = scalar_lea.vmem %s2, 56
    %v859 = vld [vmem:[%s858] sm:$0xff]
    %v860 = vlaneseq
    %v861 = vshrl.u32 %v860, 7
    %v862 = vsub.s32 0, %v861
    %v863 = vrot.slane %v848, %v862
    %v864 = vlaneseq
    %v865 = vshrl.u32 %v864, 7
    %v866 = vsub.s32 1, %v865
    %v867 = vrot.slane %v848, %v866
    %v868 = vlaneseq
    %v869 = vshrl.u32 %v868, 7
    %v870 = vsub.s32 2, %v869
    %v871 = vrot.slane %v848, %v870
    %v872 = vlaneseq
    %v873 = vshrl.u32 %v872, 7
    %v874 = vsub.s32 3, %v873
    %v875 = vrot.slane %v848, %v874
    %v876 = vlaneseq
    %v877 = vshrl.u32 %v876, 7
    %v878 = vsub.s32 0, %v877
    %v879 = vrot.slane %v855, %v878
    %v880 = vlaneseq
    %v881 = vshrl.u32 %v880, 7
    %v882 = vsub.s32 1, %v881
    %v883 = vrot.slane %v855, %v882
    %v884 = vlaneseq
    %v885 = vshrl.u32 %v884, 7
    %v886 = vsub.s32 2, %v885
    %v887 = vrot.slane %v855, %v886
    %v888 = vlaneseq
    %v889 = vshrl.u32 %v888, 7
    %v890 = vsub.s32 3, %v889
    %v891 = vrot.slane %v855, %v890
    %901 = vset.pattern.permute.xlu0 0
    %902 = vperm.xlu0 %901, %v859
    %v903 = vpop.permute.xlu0 %902
    %v905 = vmul.f32 %v863, %v903
    %v906 = vmul.f32 %v867, %v903
    %v907 = vmul.f32 %v871, %v903
    %v908 = vmul.f32 %v875, %v903
    %v909 = vmul.f32 %v879, %v903
    %v910 = vmul.f32 %v883, %v903
    %v911 = vmul.f32 %v887, %v903
    %v912 = vmul.f32 %v891, %v903
    %914 = vset.pattern.permute.xlu0 0
    %915 = vperm.xlu0 %914, %v857
    %v916 = vpop.permute.xlu0 %915
    %v918 = vadd.f32 %v916, %v905
    %v919 = vadd.f32 %v916, %v906
    %v920 = vadd.f32 %v916, %v907
    %v921 = vadd.f32 %v916, %v908
    %v922 = vadd.f32 %v916, %v909
    %v923 = vadd.f32 %v916, %v910
    %v924 = vadd.f32 %v916, %v911
    %v925 = vadd.f32 %v916, %v912
    %v926 = vmul.f32 %v810, %v918
    %v927 = vmul.f32 %v811, %v919
    %v928 = vmul.f32 %v812, %v920
    %v929 = vmul.f32 %v813, %v921
    %v930 = vmul.f32 %v814, %v922
    %v931 = vmul.f32 %v815, %v923
    %v932 = vmul.f32 %v816, %v924
    %v933 = vmul.f32 %v817, %v925
    %s934 = scalar_lea.vmem %s0, 160
    %v935 = vld [vmem:[%s934] sm:$0xf]
    %v936 = vunpack.c.0.s8 %v935
    %v937 = vunpack.c.1.s8 %v935
    %v938 = vcvt.s32.f32 %v936
    %v939 = vcvt.s32.f32 %v937
    %v943 = vunpack.c.l.s4 1966171168
    %v944 = vunpack.c.0.s8 %v943
    %v945 = vlaneseq
    %v946 = vshrl.u32 %v945, 7
    %v947 = vsub.s32 %v944, %v946
    %v948 = vrot.slane %v938, %v947
    %v950 = vunpack.c.l.s4 1966171168
    %v951 = vunpack.c.0.s8 %v950
    %v952 = vlaneseq
    %v953 = vshrl.u32 %v952, 7
    %v954 = vsub.s32 %v951, %v953
    %v955 = vrot.slane %v939, %v954
    %v956 = vcombine.low %v948, %v955
    %v957 = vcombine.high %v948, %v955
    %v959 = vunpack.c.l.s4 1966171168
    %v960 = vunpack.c.0.s8 %v959
    %v961 = vlaneseq
    %v962 = vshrl.u32 %v961, 7
    %v963 = vsub.s32 %v960, %v962
    %v964 = vrot.slane %v956, %v963
    %v966 = vunpack.c.l.s4 1966171168
    %v967 = vunpack.c.0.s8 %v966
    %v968 = vlaneseq
    %v969 = vshrl.u32 %v968, 7
    %v970 = vsub.s32 %v967, %v969
    %v971 = vrot.slane %v957, %v970
    %s972 = scalar_lea.vmem %s1, 64
    %v973 = vld [vmem:[%s972] sm:$0xff]
    %s974 = scalar_lea.vmem %s2, 64
    %v975 = vld [vmem:[%s974] sm:$0xff]
    %v976 = vlaneseq
    %v977 = vshrl.u32 %v976, 7
    %v978 = vsub.s32 0, %v977
    %v979 = vrot.slane %v964, %v978
    %v980 = vlaneseq
    %v981 = vshrl.u32 %v980, 7
    %v982 = vsub.s32 1, %v981
    %v983 = vrot.slane %v964, %v982
    %v984 = vlaneseq
    %v985 = vshrl.u32 %v984, 7
    %v986 = vsub.s32 2, %v985
    %v987 = vrot.slane %v964, %v986
    %v988 = vlaneseq
    %v989 = vshrl.u32 %v988, 7
    %v990 = vsub.s32 3, %v989
    %v991 = vrot.slane %v964, %v990
    %v992 = vlaneseq
    %v993 = vshrl.u32 %v992, 7
    %v994 = vsub.s32 0, %v993
    %v995 = vrot.slane %v971, %v994
    %v996 = vlaneseq
    %v997 = vshrl.u32 %v996, 7
    %v998 = vsub.s32 1, %v997
    %v999 = vrot.slane %v971, %v998
    %v1000 = vlaneseq
    %v1001 = vshrl.u32 %v1000, 7
    %v1002 = vsub.s32 2, %v1001
    %v1003 = vrot.slane %v971, %v1002
    %v1004 = vlaneseq
    %v1005 = vshrl.u32 %v1004, 7
    %v1006 = vsub.s32 3, %v1005
    %v1007 = vrot.slane %v971, %v1006
    %1017 = vset.pattern.permute.xlu0 0
    %1018 = vperm.xlu0 %1017, %v975
    %v1019 = vpop.permute.xlu0 %1018
    %v1021 = vmul.f32 %v979, %v1019
    %v1022 = vmul.f32 %v983, %v1019
    %v1023 = vmul.f32 %v987, %v1019
    %v1024 = vmul.f32 %v991, %v1019
    %v1025 = vmul.f32 %v995, %v1019
    %v1026 = vmul.f32 %v999, %v1019
    %v1027 = vmul.f32 %v1003, %v1019
    %v1028 = vmul.f32 %v1007, %v1019
    %1030 = vset.pattern.permute.xlu0 0
    %1031 = vperm.xlu0 %1030, %v973
    %v1032 = vpop.permute.xlu0 %1031
    %v1034 = vadd.f32 %v1032, %v1021
    %v1035 = vadd.f32 %v1032, %v1022
    %v1036 = vadd.f32 %v1032, %v1023
    %v1037 = vadd.f32 %v1032, %v1024
    %v1038 = vadd.f32 %v1032, %v1025
    %v1039 = vadd.f32 %v1032, %v1026
    %v1040 = vadd.f32 %v1032, %v1027
    %v1041 = vadd.f32 %v1032, %v1028
    %v1042 = vmul.f32 %v926, %v1034
    %v1043 = vmul.f32 %v927, %v1035
    %v1044 = vmul.f32 %v928, %v1036
    %v1045 = vmul.f32 %v929, %v1037
    %v1046 = vmul.f32 %v930, %v1038
    %v1047 = vmul.f32 %v931, %v1039
    %v1048 = vmul.f32 %v932, %v1040
    %v1049 = vmul.f32 %v933, %v1041
    %v1050 = vsub.f32 0.5, %v1042
    %v1051 = vsub.f32 0.5, %v1043
    %v1052 = vsub.f32 0.5, %v1044
    %v1053 = vsub.f32 0.5, %v1045
    %v1054 = vsub.f32 0.5, %v1046
    %v1055 = vsub.f32 0.5, %v1047
    %v1056 = vsub.f32 0.5, %v1048
    %v1057 = vsub.f32 0.5, %v1049
    %v1058 = vmul.f32 %v1050, 10.0
    %v1059 = vmul.f32 %v1051, 10.0
    %v1060 = vmul.f32 %v1052, 10.0
    %v1061 = vmul.f32 %v1053, 10.0
    %v1062 = vmul.f32 %v1054, 10.0
    %v1063 = vmul.f32 %v1055, 10.0
    %v1064 = vmul.f32 %v1056, 10.0
    %v1065 = vmul.f32 %v1057, 10.0
    %v1066 = vmul.f32 %v1058, 1.442695
    %v1067 = vpow.pop %v1066
    %v1068 = vmul.f32 %v1059, 1.442695
    %v1069 = vpow.pop %v1068
    %v1070 = vmul.f32 %v1060, 1.442695
    %v1071 = vpow.pop %v1070
    %v1072 = vmul.f32 %v1061, 1.442695
    %v1073 = vpow.pop %v1072
    %v1074 = vmul.f32 %v1062, 1.442695
    %v1075 = vpow.pop %v1074
    %v1076 = vmul.f32 %v1063, 1.442695
    %v1077 = vpow.pop %v1076
    %v1078 = vmul.f32 %v1064, 1.442695
    %v1079 = vpow.pop %v1078
    %v1080 = vmul.f32 %v1065, 1.442695
    %v1081 = vpow.pop %v1080
    %v1082 = vadd.f32 %v1067, 1.0
    %v1083 = vadd.f32 %v1069, 1.0
    %v1084 = vadd.f32 %v1071, 1.0
    %v1085 = vadd.f32 %v1073, 1.0
    %v1086 = vadd.f32 %v1075, 1.0
    %v1087 = vadd.f32 %v1077, 1.0
    %v1088 = vadd.f32 %v1079, 1.0
    %v1089 = vadd.f32 %v1081, 1.0
    %v1090 = vrcp.pop %v1082
    %v1091 = vmul.f32 1.0, %v1090
    %v1092 = vrcp.pop %v1083
    %v1093 = vmul.f32 1.0, %v1092
    %v1094 = vrcp.pop %v1084
    %v1095 = vmul.f32 1.0, %v1094
    %v1096 = vrcp.pop %v1085
    %v1097 = vmul.f32 1.0, %v1096
    %v1098 = vrcp.pop %v1086
    %v1099 = vmul.f32 1.0, %v1098
    %v1100 = vrcp.pop %v1087
    %v1101 = vmul.f32 1.0, %v1100
    %v1102 = vrcp.pop %v1088
    %v1103 = vmul.f32 1.0, %v1102
    %v1104 = vrcp.pop %v1089
    %v1105 = vmul.f32 1.0, %v1104
    %v1106 = vld [vmem:[#allocation2] sm:$0x3]
    %v1107 = vadd.f32 %v1091, %v1093
    %v1108 = vadd.f32 %v1107, %v1095
    %v1109 = vadd.f32 %v1108, %v1097
    %1110 = vadd.xlane.f32.xlu0 %v1109
    %v1111 = vpop.xlane.xlu0 %1110
    %v1112 = vadd.f32 %v1099, %v1101
    %v1113 = vadd.f32 %v1112, %v1103
    %v1114 = vadd.f32 %v1113, %v1105
    %1115 = vadd.xlane.f32.xlu0 %v1114
    %v1116 = vpop.xlane.xlu0 %1115
    %v1119 = vlaneseq
    %v1120 = vand.u32 %v1119, 127
    %v1121 = vlaneseq
    %v1122 = vshrl.u32 %v1121, 7
    %v1123 = vsub.s32 %v1120, %v1122
    %v1124 = vrot.slane %v1111, %v1123
    %v1125 = vlaneseq
    %v1126 = vshrl.u32 %v1125, 7
    %v1127 = vsub.s32 %v1120, %v1126
    %v1128 = vrot.slane %v1116, %v1127
    %vm1129 = vcmask 1041409
    %v1130 = vsel %vm1129, %v1128, %v1124
    %v1132 = vadd.f32 %v1106, %v1130
    %1133 = vst.msk [vmem:[#allocation2] sm:$0x3] %vm15, %v1132
    %v1134 = vld [vmem:[%s0 + $0x4] sm:$0xf]
    %v1135 = vunpack.c.0.s8 %v1134
    %v1136 = vunpack.c.1.s8 %v1134
    %v1137 = vcvt.s32.f32 %v1135
    %v1138 = vcvt.s32.f32 %v1136
    %v1142 = vunpack.c.l.s4 1966171168
    %v1143 = vunpack.c.0.s8 %v1142
    %v1144 = vlaneseq
    %v1145 = vshrl.u32 %v1144, 7
    %v1146 = vsub.s32 %v1143, %v1145
    %v1147 = vrot.slane %v1137, %v1146
    %v1149 = vunpack.c.l.s4 1966171168
    %v1150 = vunpack.c.0.s8 %v1149
    %v1151 = vlaneseq
    %v1152 = vshrl.u32 %v1151, 7
    %v1153 = vsub.s32 %v1150, %v1152
    %v1154 = vrot.slane %v1138, %v1153
    %v1155 = vcombine.low %v1147, %v1154
    %v1156 = vcombine.high %v1147, %v1154
    %v1158 = vunpack.c.l.s4 1966171168
    %v1159 = vunpack.c.0.s8 %v1158
    %v1160 = vlaneseq
    %v1161 = vshrl.u32 %v1160, 7
    %v1162 = vsub.s32 %v1159, %v1161
    %v1163 = vrot.slane %v1155, %v1162
    %v1165 = vunpack.c.l.s4 1966171168
    %v1166 = vunpack.c.0.s8 %v1165
    %v1167 = vlaneseq
    %v1168 = vshrl.u32 %v1167, 7
    %v1169 = vsub.s32 %v1166, %v1168
    %v1170 = vrot.slane %v1156, %v1169
    %v1171 = vld [vmem:[%s1] sm:$0xff]
    %v1172 = vld [vmem:[%s2] sm:$0xff]
    %v1173 = vlaneseq
    %v1174 = vshrl.u32 %v1173, 7
    %v1175 = vsub.s32 0, %v1174
    %v1176 = vrot.slane %v1163, %v1175
    %v1177 = vlaneseq
    %v1178 = vshrl.u32 %v1177, 7
    %v1179 = vsub.s32 1, %v1178
    %v1180 = vrot.slane %v1163, %v1179
    %v1181 = vlaneseq
    %v1182 = vshrl.u32 %v1181, 7
    %v1183 = vsub.s32 2, %v1182
    %v1184 = vrot.slane %v1163, %v1183
    %v1185 = vlaneseq
    %v1186 = vshrl.u32 %v1185, 7
    %v1187 = vsub.s32 3, %v1186
    %v1188 = vrot.slane %v1163, %v1187
    %v1189 = vlaneseq
    %v1190 = vshrl.u32 %v1189, 7
    %v1191 = vsub.s32 0, %v1190
    %v1192 = vrot.slane %v1170, %v1191
    %v1193 = vlaneseq
    %v1194 = vshrl.u32 %v1193, 7
    %v1195 = vsub.s32 1, %v1194
    %v1196 = vrot.slane %v1170, %v1195
    %v1197 = vlaneseq
    %v1198 = vshrl.u32 %v1197, 7
    %v1199 = vsub.s32 2, %v1198
    %v1200 = vrot.slane %v1170, %v1199
    %v1201 = vlaneseq
    %v1202 = vshrl.u32 %v1201, 7
    %v1203 = vsub.s32 3, %v1202
    %v1204 = vrot.slane %v1170, %v1203
    %1214 = vset.pattern.permute.xlu0 0
    %1215 = vperm.xlu0 %1214, %v1172
    %v1216 = vpop.permute.xlu0 %1215
    %v1218 = vmul.f32 %v1176, %v1216
    %v1219 = vmul.f32 %v1180, %v1216
    %v1220 = vmul.f32 %v1184, %v1216
    %v1221 = vmul.f32 %v1188, %v1216
    %v1222 = vmul.f32 %v1192, %v1216
    %v1223 = vmul.f32 %v1196, %v1216
    %v1224 = vmul.f32 %v1200, %v1216
    %v1225 = vmul.f32 %v1204, %v1216
    %1227 = vset.pattern.permute.xlu0 0
    %1228 = vperm.xlu0 %1227, %v1171
    %v1229 = vpop.permute.xlu0 %1228
    %v1231 = vadd.f32 %v1229, %v1218
    %v1232 = vadd.f32 %v1229, %v1219
    %v1233 = vadd.f32 %v1229, %v1220
    %v1234 = vadd.f32 %v1229, %v1221
    %v1235 = vadd.f32 %v1229, %v1222
    %v1236 = vadd.f32 %v1229, %v1223
    %v1237 = vadd.f32 %v1229, %v1224
    %v1238 = vadd.f32 %v1229, %v1225
    %v1239 = vld [vmem:[%s122 + $0x4] sm:$0xf]
    %v1240 = vunpack.c.0.s8 %v1239
    %v1241 = vunpack.c.1.s8 %v1239
    %v1242 = vcvt.s32.f32 %v1240
    %v1243 = vcvt.s32.f32 %v1241
    %v1247 = vunpack.c.l.s4 1966171168
    %v1248 = vunpack.c.0.s8 %v1247
    %v1249 = vlaneseq
    %v1250 = vshrl.u32 %v1249, 7
    %v1251 = vsub.s32 %v1248, %v1250
    %v1252 = vrot.slane %v1242, %v1251
    %v1254 = vunpack.c.l.s4 1966171168
    %v1255 = vunpack.c.0.s8 %v1254
    %v1256 = vlaneseq
    %v1257 = vshrl.u32 %v1256, 7
    %v1258 = vsub.s32 %v1255, %v1257
    %v1259 = vrot.slane %v1243, %v1258
    %v1260 = vcombine.low %v1252, %v1259
    %v1261 = vcombine.high %v1252, %v1259
    %v1263 = vunpack.c.l.s4 1966171168
    %v1264 = vunpack.c.0.s8 %v1263
    %v1265 = vlaneseq
    %v1266 = vshrl.u32 %v1265, 7
    %v1267 = vsub.s32 %v1264, %v1266
    %v1268 = vrot.slane %v1260, %v1267
    %v1270 = vunpack.c.l.s4 1966171168
    %v1271 = vunpack.c.0.s8 %v1270
    %v1272 = vlaneseq
    %v1273 = vshrl.u32 %v1272, 7
    %v1274 = vsub.s32 %v1271, %v1273
    %v1275 = vrot.slane %v1261, %v1274
    %v1276 = vld [vmem:[%s160] sm:$0xff]
    %v1277 = vld [vmem:[%s162] sm:$0xff]
    %v1278 = vlaneseq
    %v1279 = vshrl.u32 %v1278, 7
    %v1280 = vsub.s32 0, %v1279
    %v1281 = vrot.slane %v1268, %v1280
    %v1282 = vlaneseq
    %v1283 = vshrl.u32 %v1282, 7
    %v1284 = vsub.s32 1, %v1283
    %v1285 = vrot.slane %v1268, %v1284
    %v1286 = vlaneseq
    %v1287 = vshrl.u32 %v1286, 7
    %v1288 = vsub.s32 2, %v1287
    %v1289 = vrot.slane %v1268, %v1288
    %v1290 = vlaneseq
    %v1291 = vshrl.u32 %v1290, 7
    %v1292 = vsub.s32 3, %v1291
    %v1293 = vrot.slane %v1268, %v1292
    %v1294 = vlaneseq
    %v1295 = vshrl.u32 %v1294, 7
    %v1296 = vsub.s32 0, %v1295
    %v1297 = vrot.slane %v1275, %v1296
    %v1298 = vlaneseq
    %v1299 = vshrl.u32 %v1298, 7
    %v1300 = vsub.s32 1, %v1299
    %v1301 = vrot.slane %v1275, %v1300
    %v1302 = vlaneseq
    %v1303 = vshrl.u32 %v1302, 7
    %v1304 = vsub.s32 2, %v1303
    %v1305 = vrot.slane %v1275, %v1304
    %v1306 = vlaneseq
    %v1307 = vshrl.u32 %v1306, 7
    %v1308 = vsub.s32 3, %v1307
    %v1309 = vrot.slane %v1275, %v1308
    %1319 = vset.pattern.permute.xlu0 0
    %1320 = vperm.xlu0 %1319, %v1277
    %v1321 = vpop.permute.xlu0 %1320
    %v1323 = vmul.f32 %v1281, %v1321
    %v1324 = vmul.f32 %v1285, %v1321
    %v1325 = vmul.f32 %v1289, %v1321
    %v1326 = vmul.f32 %v1293, %v1321
    %v1327 = vmul.f32 %v1297, %v1321
    %v1328 = vmul.f32 %v1301, %v1321
    %v1329 = vmul.f32 %v1305, %v1321
    %v1330 = vmul.f32 %v1309, %v1321
    %1332 = vset.pattern.permute.xlu0 0
    %1333 = vperm.xlu0 %1332, %v1276
    %v1334 = vpop.permute.xlu0 %1333
    %v1336 = vadd.f32 %v1334, %v1323
    %v1337 = vadd.f32 %v1334, %v1324
    %v1338 = vadd.f32 %v1334, %v1325
    %v1339 = vadd.f32 %v1334, %v1326
    %v1340 = vadd.f32 %v1334, %v1327
    %v1341 = vadd.f32 %v1334, %v1328
    %v1342 = vadd.f32 %v1334, %v1329
    %v1343 = vadd.f32 %v1334, %v1330
    %v1344 = vmul.f32 %v1231, %v1336
    %v1345 = vmul.f32 %v1232, %v1337
    %v1346 = vmul.f32 %v1233, %v1338
    %v1347 = vmul.f32 %v1234, %v1339
    %v1348 = vmul.f32 %v1235, %v1340
    %v1349 = vmul.f32 %v1236, %v1341
    %v1350 = vmul.f32 %v1237, %v1342
    %v1351 = vmul.f32 %v1238, %v1343
    %v1352 = vld [vmem:[%s238 + $0x4] sm:$0xf]
    %v1353 = vunpack.c.0.s8 %v1352
    %v1354 = vunpack.c.1.s8 %v1352
    %v1355 = vcvt.s32.f32 %v1353
    %v1356 = vcvt.s32.f32 %v1354
    %v1360 = vunpack.c.l.s4 1966171168
    %v1361 = vunpack.c.0.s8 %v1360
    %v1362 = vlaneseq
    %v1363 = vshrl.u32 %v1362, 7
    %v1364 = vsub.s32 %v1361, %v1363
    %v1365 = vrot.slane %v1355, %v1364
    %v1367 = vunpack.c.l.s4 1966171168
    %v1368 = vunpack.c.0.s8 %v1367
    %v1369 = vlaneseq
    %v1370 = vshrl.u32 %v1369, 7
    %v1371 = vsub.s32 %v1368, %v1370
    %v1372 = vrot.slane %v1356, %v1371
    %v1373 = vcombine.low %v1365, %v1372
    %v1374 = vcombine.high %v1365, %v1372
    %v1376 = vunpack.c.l.s4 1966171168
    %v1377 = vunpack.c.0.s8 %v1376
    %v1378 = vlaneseq
    %v1379 = vshrl.u32 %v1378, 7
    %v1380 = vsub.s32 %v1377, %v1379
    %v1381 = vrot.slane %v1373, %v1380
    %v1383 = vunpack.c.l.s4 1966171168
    %v1384 = vunpack.c.0.s8 %v1383
    %v1385 = vlaneseq
    %v1386 = vshrl.u32 %v1385, 7
    %v1387 = vsub.s32 %v1384, %v1386
    %v1388 = vrot.slane %v1374, %v1387
    %v1389 = vld [vmem:[%s276] sm:$0xff]
    %v1390 = vld [vmem:[%s278] sm:$0xff]
    %v1391 = vlaneseq
    %v1392 = vshrl.u32 %v1391, 7
    %v1393 = vsub.s32 0, %v1392
    %v1394 = vrot.slane %v1381, %v1393
    %v1395 = vlaneseq
    %v1396 = vshrl.u32 %v1395, 7
    %v1397 = vsub.s32 1, %v1396
    %v1398 = vrot.slane %v1381, %v1397
    %v1399 = vlaneseq
    %v1400 = vshrl.u32 %v1399, 7
    %v1401 = vsub.s32 2, %v1400
    %v1402 = vrot.slane %v1381, %v1401
    %v1403 = vlaneseq
    %v1404 = vshrl.u32 %v1403, 7
    %v1405 = vsub.s32 3, %v1404
    %v1406 = vrot.slane %v1381, %v1405
    %v1407 = vlaneseq
    %v1408 = vshrl.u32 %v1407, 7
    %v1409 = vsub.s32 0, %v1408
    %v1410 = vrot.slane %v1388, %v1409
    %v1411 = vlaneseq
    %v1412 = vshrl.u32 %v1411, 7
    %v1413 = vsub.s32 1, %v1412
    %v1414 = vrot.slane %v1388, %v1413
    %v1415 = vlaneseq
    %v1416 = vshrl.u32 %v1415, 7
    %v1417 = vsub.s32 2, %v1416
    %v1418 = vrot.slane %v1388, %v1417
    %v1419 = vlaneseq
    %v1420 = vshrl.u32 %v1419, 7
    %v1421 = vsub.s32 3, %v1420
    %v1422 = vrot.slane %v1388, %v1421
    %1432 = vset.pattern.permute.xlu0 0
    %1433 = vperm.xlu0 %1432, %v1390
    %v1434 = vpop.permute.xlu0 %1433
    %v1436 = vmul.f32 %v1394, %v1434
    %v1437 = vmul.f32 %v1398, %v1434
    %v1438 = vmul.f32 %v1402, %v1434
    %v1439 = vmul.f32 %v1406, %v1434
    %v1440 = vmul.f32 %v1410, %v1434
    %v1441 = vmul.f32 %v1414, %v1434
    %v1442 = vmul.f32 %v1418, %v1434
    %v1443 = vmul.f32 %v1422, %v1434
    %1445 = vset.pattern.permute.xlu0 0
    %1446 = vperm.xlu0 %1445, %v1389
    %v1447 = vpop.permute.xlu0 %1446
    %v1449 = vadd.f32 %v1447, %v1436
    %v1450 = vadd.f32 %v1447, %v1437
    %v1451 = vadd.f32 %v1447, %v1438
    %v1452 = vadd.f32 %v1447, %v1439
    %v1453 = vadd.f32 %v1447, %v1440
    %v1454 = vadd.f32 %v1447, %v1441
    %v1455 = vadd.f32 %v1447, %v1442
    %v1456 = vadd.f32 %v1447, %v1443
    %v1457 = vmul.f32 %v1344, %v1449
    %v1458 = vmul.f32 %v1345, %v1450
    %v1459 = vmul.f32 %v1346, %v1451
    %v1460 = vmul.f32 %v1347, %v1452
    %v1461 = vmul.f32 %v1348, %v1453
    %v1462 = vmul.f32 %v1349, %v1454
    %v1463 = vmul.f32 %v1350, %v1455
    %v1464 = vmul.f32 %v1351, %v1456
    %v1465 = vld [vmem:[%s354 + $0x4] sm:$0xf]
    %v1466 = vunpack.c.0.s8 %v1465
    %v1467 = vunpack.c.1.s8 %v1465
    %v1468 = vcvt.s32.f32 %v1466
    %v1469 = vcvt.s32.f32 %v1467
    %v1473 = vunpack.c.l.s4 1966171168
    %v1474 = vunpack.c.0.s8 %v1473
    %v1475 = vlaneseq
    %v1476 = vshrl.u32 %v1475, 7
    %v1477 = vsub.s32 %v1474, %v1476
    %v1478 = vrot.slane %v1468, %v1477
    %v1480 = vunpack.c.l.s4 1966171168
    %v1481 = vunpack.c.0.s8 %v1480
    %v1482 = vlaneseq
    %v1483 = vshrl.u32 %v1482, 7
    %v1484 = vsub.s32 %v1481, %v1483
    %v1485 = vrot.slane %v1469, %v1484
    %v1486 = vcombine.low %v1478, %v1485
    %v1487 = vcombine.high %v1478, %v1485
    %v1489 = vunpack.c.l.s4 1966171168
    %v1490 = vunpack.c.0.s8 %v1489
    %v1491 = vlaneseq
    %v1492 = vshrl.u32 %v1491, 7
    %v1493 = vsub.s32 %v1490, %v1492
    %v1494 = vrot.slane %v1486, %v1493
    %v1496 = vunpack.c.l.s4 1966171168
    %v1497 = vunpack.c.0.s8 %v1496
    %v1498 = vlaneseq
    %v1499 = vshrl.u32 %v1498, 7
    %v1500 = vsub.s32 %v1497, %v1499
    %v1501 = vrot.slane %v1487, %v1500
    %v1502 = vld [vmem:[%s392] sm:$0xff]
    %v1503 = vld [vmem:[%s394] sm:$0xff]
    %v1504 = vlaneseq
    %v1505 = vshrl.u32 %v1504, 7
    %v1506 = vsub.s32 0, %v1505
    %v1507 = vrot.slane %v1494, %v1506
    %v1508 = vlaneseq
    %v1509 = vshrl.u32 %v1508, 7
    %v1510 = vsub.s32 1, %v1509
    %v1511 = vrot.slane %v1494, %v1510
    %v1512 = vlaneseq
    %v1513 = vshrl.u32 %v1512, 7
    %v1514 = vsub.s32 2, %v1513
    %v1515 = vrot.slane %v1494, %v1514
    %v1516 = vlaneseq
    %v1517 = vshrl.u32 %v1516, 7
    %v1518 = vsub.s32 3, %v1517
    %v1519 = vrot.slane %v1494, %v1518
    %v1520 = vlaneseq
    %v1521 = vshrl.u32 %v1520, 7
    %v1522 = vsub.s32 0, %v1521
    %v1523 = vrot.slane %v1501, %v1522
    %v1524 = vlaneseq
    %v1525 = vshrl.u32 %v1524, 7
    %v1526 = vsub.s32 1, %v1525
    %v1527 = vrot.slane %v1501, %v1526
    %v1528 = vlaneseq
    %v1529 = vshrl.u32 %v1528, 7
    %v1530 = vsub.s32 2, %v1529
    %v1531 = vrot.slane %v1501, %v1530
    %v1532 = vlaneseq
    %v1533 = vshrl.u32 %v1532, 7
    %v1534 = vsub.s32 3, %v1533
    %v1535 = vrot.slane %v1501, %v1534
    %1545 = vset.pattern.permute.xlu0 0
    %1546 = vperm.xlu0 %1545, %v1503
    %v1547 = vpop.permute.xlu0 %1546
    %v1549 = vmul.f32 %v1507, %v1547
    %v1550 = vmul.f32 %v1511, %v1547
    %v1551 = vmul.f32 %v1515, %v1547
    %v1552 = vmul.f32 %v1519, %v1547
    %v1553 = vmul.f32 %v1523, %v1547
    %v1554 = vmul.f32 %v1527, %v1547
    %v1555 = vmul.f32 %v1531, %v1547
    %v1556 = vmul.f32 %v1535, %v1547
    %1558 = vset.pattern.permute.xlu0 0
    %1559 = vperm.xlu0 %1558, %v1502
    %v1560 = vpop.permute.xlu0 %1559
    %v1562 = vadd.f32 %v1560, %v1549
    %v1563 = vadd.f32 %v1560, %v1550
    %v1564 = vadd.f32 %v1560, %v1551
    %v1565 = vadd.f32 %v1560, %v1552
    %v1566 = vadd.f32 %v1560, %v1553
    %v1567 = vadd.f32 %v1560, %v1554
    %v1568 = vadd.f32 %v1560, %v1555
    %v1569 = vadd.f32 %v1560, %v1556
    %v1570 = vmul.f32 %v1457, %v1562
    %v1571 = vmul.f32 %v1458, %v1563
    %v1572 = vmul.f32 %v1459, %v1564
    %v1573 = vmul.f32 %v1460, %v1565
    %v1574 = vmul.f32 %v1461, %v1566
    %v1575 = vmul.f32 %v1462, %v1567
    %v1576 = vmul.f32 %v1463, %v1568
    %v1577 = vmul.f32 %v1464, %v1569
    %v1578 = vld [vmem:[%s470 + $0x4] sm:$0xf]
    %v1579 = vunpack.c.0.s8 %v1578
    %v1580 = vunpack.c.1.s8 %v1578
    %v1581 = vcvt.s32.f32 %v1579
    %v1582 = vcvt.s32.f32 %v1580
    %v1586 = vunpack.c.l.s4 1966171168
    %v1587 = vunpack.c.0.s8 %v1586
    %v1588 = vlaneseq
    %v1589 = vshrl.u32 %v1588, 7
    %v1590 = vsub.s32 %v1587, %v1589
    %v1591 = vrot.slane %v1581, %v1590
    %v1593 = vunpack.c.l.s4 1966171168
    %v1594 = vunpack.c.0.s8 %v1593
    %v1595 = vlaneseq
    %v1596 = vshrl.u32 %v1595, 7
    %v1597 = vsub.s32 %v1594, %v1596
    %v1598 = vrot.slane %v1582, %v1597
    %v1599 = vcombine.low %v1591, %v1598
    %v1600 = vcombine.high %v1591, %v1598
    %v1602 = vunpack.c.l.s4 1966171168
    %v1603 = vunpack.c.0.s8 %v1602
    %v1604 = vlaneseq
    %v1605 = vshrl.u32 %v1604, 7
    %v1606 = vsub.s32 %v1603, %v1605
    %v1607 = vrot.slane %v1599, %v1606
    %v1609 = vunpack.c.l.s4 1966171168
    %v1610 = vunpack.c.0.s8 %v1609
    %v1611 = vlaneseq
    %v1612 = vshrl.u32 %v1611, 7
    %v1613 = vsub.s32 %v1610, %v1612
    %v1614 = vrot.slane %v1600, %v1613
    %v1615 = vld [vmem:[%s508] sm:$0xff]
    %v1616 = vld [vmem:[%s510] sm:$0xff]
    %v1617 = vlaneseq
    %v1618 = vshrl.u32 %v1617, 7
    %v1619 = vsub.s32 0, %v1618
    %v1620 = vrot.slane %v1607, %v1619
    %v1621 = vlaneseq
    %v1622 = vshrl.u32 %v1621, 7
    %v1623 = vsub.s32 1, %v1622
    %v1624 = vrot.slane %v1607, %v1623
    %v1625 = vlaneseq
    %v1626 = vshrl.u32 %v1625, 7
    %v1627 = vsub.s32 2, %v1626
    %v1628 = vrot.slane %v1607, %v1627
    %v1629 = vlaneseq
    %v1630 = vshrl.u32 %v1629, 7
    %v1631 = vsub.s32 3, %v1630
    %v1632 = vrot.slane %v1607, %v1631
    %v1633 = vlaneseq
    %v1634 = vshrl.u32 %v1633, 7
    %v1635 = vsub.s32 0, %v1634
    %v1636 = vrot.slane %v1614, %v1635
    %v1637 = vlaneseq
    %v1638 = vshrl.u32 %v1637, 7
    %v1639 = vsub.s32 1, %v1638
    %v1640 = vrot.slane %v1614, %v1639
    %v1641 = vlaneseq
    %v1642 = vshrl.u32 %v1641, 7
    %v1643 = vsub.s32 2, %v1642
    %v1644 = vrot.slane %v1614, %v1643
    %v1645 = vlaneseq
    %v1646 = vshrl.u32 %v1645, 7
    %v1647 = vsub.s32 3, %v1646
    %v1648 = vrot.slane %v1614, %v1647
    %1658 = vset.pattern.permute.xlu0 0
    %1659 = vperm.xlu0 %1658, %v1616
    %v1660 = vpop.permute.xlu0 %1659
    %v1662 = vmul.f32 %v1620, %v1660
    %v1663 = vmul.f32 %v1624, %v1660
    %v1664 = vmul.f32 %v1628, %v1660
    %v1665 = vmul.f32 %v1632, %v1660
    %v1666 = vmul.f32 %v1636, %v1660
    %v1667 = vmul.f32 %v1640, %v1660
    %v1668 = vmul.f32 %v1644, %v1660
    %v1669 = vmul.f32 %v1648, %v1660
    %1671 = vset.pattern.permute.xlu0 0
    %1672 = vperm.xlu0 %1671, %v1615
    %v1673 = vpop.permute.xlu0 %1672
    %v1675 = vadd.f32 %v1673, %v1662
    %v1676 = vadd.f32 %v1673, %v1663
    %v1677 = vadd.f32 %v1673, %v1664
    %v1678 = vadd.f32 %v1673, %v1665
    %v1679 = vadd.f32 %v1673, %v1666
    %v1680 = vadd.f32 %v1673, %v1667
    %v1681 = vadd.f32 %v1673, %v1668
    %v1682 = vadd.f32 %v1673, %v1669
    %v1683 = vmul.f32 %v1570, %v1675
    %v1684 = vmul.f32 %v1571, %v1676
    %v1685 = vmul.f32 %v1572, %v1677
    %v1686 = vmul.f32 %v1573, %v1678
    %v1687 = vmul.f32 %v1574, %v1679
    %v1688 = vmul.f32 %v1575, %v1680
    %v1689 = vmul.f32 %v1576, %v1681
    %v1690 = vmul.f32 %v1577, %v1682
    %v1691 = vld [vmem:[%s586 + $0x4] sm:$0xf]
    %v1692 = vunpack.c.0.s8 %v1691
    %v1693 = vunpack.c.1.s8 %v1691
    %v1694 = vcvt.s32.f32 %v1692
    %v1695 = vcvt.s32.f32 %v1693
    %v1699 = vunpack.c.l.s4 1966171168
    %v1700 = vunpack.c.0.s8 %v1699
    %v1701 = vlaneseq
    %v1702 = vshrl.u32 %v1701, 7
    %v1703 = vsub.s32 %v1700, %v1702
    %v1704 = vrot.slane %v1694, %v1703
    %v1706 = vunpack.c.l.s4 1966171168
    %v1707 = vunpack.c.0.s8 %v1706
    %v1708 = vlaneseq
    %v1709 = vshrl.u32 %v1708, 7
    %v1710 = vsub.s32 %v1707, %v1709
    %v1711 = vrot.slane %v1695, %v1710
    %v1712 = vcombine.low %v1704, %v1711
    %v1713 = vcombine.high %v1704, %v1711
    %v1715 = vunpack.c.l.s4 1966171168
    %v1716 = vunpack.c.0.s8 %v1715
    %v1717 = vlaneseq
    %v1718 = vshrl.u32 %v1717, 7
    %v1719 = vsub.s32 %v1716, %v1718
    %v1720 = vrot.slane %v1712, %v1719
    %v1722 = vunpack.c.l.s4 1966171168
    %v1723 = vunpack.c.0.s8 %v1722
    %v1724 = vlaneseq
    %v1725 = vshrl.u32 %v1724, 7
    %v1726 = vsub.s32 %v1723, %v1725
    %v1727 = vrot.slane %v1713, %v1726
    %v1728 = vld [vmem:[%s624] sm:$0xff]
    %v1729 = vld [vmem:[%s626] sm:$0xff]
    %v1730 = vlaneseq
    %v1731 = vshrl.u32 %v1730, 7
    %v1732 = vsub.s32 0, %v1731
    %v1733 = vrot.slane %v1720, %v1732
    %v1734 = vlaneseq
    %v1735 = vshrl.u32 %v1734, 7
    %v1736 = vsub.s32 1, %v1735
    %v1737 = vrot.slane %v1720, %v1736
    %v1738 = vlaneseq
    %v1739 = vshrl.u32 %v1738, 7
    %v1740 = vsub.s32 2, %v1739
    %v1741 = vrot.slane %v1720, %v1740
    %v1742 = vlaneseq
    %v1743 = vshrl.u32 %v1742, 7
    %v1744 = vsub.s32 3, %v1743
    %v1745 = vrot.slane %v1720, %v1744
    %v1746 = vlaneseq
    %v1747 = vshrl.u32 %v1746, 7
    %v1748 = vsub.s32 0, %v1747
    %v1749 = vrot.slane %v1727, %v1748
    %v1750 = vlaneseq
    %v1751 = vshrl.u32 %v1750, 7
    %v1752 = vsub.s32 1, %v1751
    %v1753 = vrot.slane %v1727, %v1752
    %v1754 = vlaneseq
    %v1755 = vshrl.u32 %v1754, 7
    %v1756 = vsub.s32 2, %v1755
    %v1757 = vrot.slane %v1727, %v1756
    %v1758 = vlaneseq
    %v1759 = vshrl.u32 %v1758, 7
    %v1760 = vsub.s32 3, %v1759
    %v1761 = vrot.slane %v1727, %v1760
    %1771 = vset.pattern.permute.xlu0 0
    %1772 = vperm.xlu0 %1771, %v1729
    %v1773 = vpop.permute.xlu0 %1772
    %v1775 = vmul.f32 %v1733, %v1773
    %v1776 = vmul.f32 %v1737, %v1773
    %v1777 = vmul.f32 %v1741, %v1773
    %v1778 = vmul.f32 %v1745, %v1773
    %v1779 = vmul.f32 %v1749, %v1773
    %v1780 = vmul.f32 %v1753, %v1773
    %v1781 = vmul.f32 %v1757, %v1773
    %v1782 = vmul.f32 %v1761, %v1773
    %1784 = vset.pattern.permute.xlu0 0
    %1785 = vperm.xlu0 %1784, %v1728
    %v1786 = vpop.permute.xlu0 %1785
    %v1788 = vadd.f32 %v1786, %v1775
    %v1789 = vadd.f32 %v1786, %v1776
    %v1790 = vadd.f32 %v1786, %v1777
    %v1791 = vadd.f32 %v1786, %v1778
    %v1792 = vadd.f32 %v1786, %v1779
    %v1793 = vadd.f32 %v1786, %v1780
    %v1794 = vadd.f32 %v1786, %v1781
    %v1795 = vadd.f32 %v1786, %v1782
    %v1796 = vmul.f32 %v1683, %v1788
    %v1797 = vmul.f32 %v1684, %v1789
    %v1798 = vmul.f32 %v1685, %v1790
    %v1799 = vmul.f32 %v1686, %v1791
    %v1800 = vmul.f32 %v1687, %v1792
    %v1801 = vmul.f32 %v1688, %v1793
    %v1802 = vmul.f32 %v1689, %v1794
    %v1803 = vmul.f32 %v1690, %v1795
    %v1804 = vld [vmem:[%s702 + $0x4] sm:$0xf]
    %v1805 = vunpack.c.0.s8 %v1804
    %v1806 = vunpack.c.1.s8 %v1804
    %v1807 = vcvt.s32.f32 %v1805
    %v1808 = vcvt.s32.f32 %v1806
    %v1812 = vunpack.c.l.s4 1966171168
    %v1813 = vunpack.c.0.s8 %v1812
    %v1814 = vlaneseq
    %v1815 = vshrl.u32 %v1814, 7
    %v1816 = vsub.s32 %v1813, %v1815
    %v1817 = vrot.slane %v1807, %v1816
    %v1819 = vunpack.c.l.s4 1966171168
    %v1820 = vunpack.c.0.s8 %v1819
    %v1821 = vlaneseq
    %v1822 = vshrl.u32 %v1821, 7
    %v1823 = vsub.s32 %v1820, %v1822
    %v1824 = vrot.slane %v1808, %v1823
    %v1825 = vcombine.low %v1817, %v1824
    %v1826 = vcombine.high %v1817, %v1824
    %v1828 = vunpack.c.l.s4 1966171168
    %v1829 = vunpack.c.0.s8 %v1828
    %v1830 = vlaneseq
    %v1831 = vshrl.u32 %v1830, 7
    %v1832 = vsub.s32 %v1829, %v1831
    %v1833 = vrot.slane %v1825, %v1832
    %v1835 = vunpack.c.l.s4 1966171168
    %v1836 = vunpack.c.0.s8 %v1835
    %v1837 = vlaneseq
    %v1838 = vshrl.u32 %v1837, 7
    %v1839 = vsub.s32 %v1836, %v1838
    %v1840 = vrot.slane %v1826, %v1839
    %v1841 = vld [vmem:[%s740] sm:$0xff]
    %v1842 = vld [vmem:[%s742] sm:$0xff]
    %v1843 = vlaneseq
    %v1844 = vshrl.u32 %v1843, 7
    %v1845 = vsub.s32 0, %v1844
    %v1846 = vrot.slane %v1833, %v1845
    %v1847 = vlaneseq
    %v1848 = vshrl.u32 %v1847, 7
    %v1849 = vsub.s32 1, %v1848
    %v1850 = vrot.slane %v1833, %v1849
    %v1851 = vlaneseq
    %v1852 = vshrl.u32 %v1851, 7
    %v1853 = vsub.s32 2, %v1852
    %v1854 = vrot.slane %v1833, %v1853
    %v1855 = vlaneseq
    %v1856 = vshrl.u32 %v1855, 7
    %v1857 = vsub.s32 3, %v1856
    %v1858 = vrot.slane %v1833, %v1857
    %v1859 = vlaneseq
    %v1860 = vshrl.u32 %v1859, 7
    %v1861 = vsub.s32 0, %v1860
    %v1862 = vrot.slane %v1840, %v1861
    %v1863 = vlaneseq
    %v1864 = vshrl.u32 %v1863, 7
    %v1865 = vsub.s32 1, %v1864
    %v1866 = vrot.slane %v1840, %v1865
    %v1867 = vlaneseq
    %v1868 = vshrl.u32 %v1867, 7
    %v1869 = vsub.s32 2, %v1868
    %v1870 = vrot.slane %v1840, %v1869
    %v1871 = vlaneseq
    %v1872 = vshrl.u32 %v1871, 7
    %v1873 = vsub.s32 3, %v1872
    %v1874 = vrot.slane %v1840, %v1873
    %1884 = vset.pattern.permute.xlu0 0
    %1885 = vperm.xlu0 %1884, %v1842
    %v1886 = vpop.permute.xlu0 %1885
    %v1888 = vmul.f32 %v1846, %v1886
    %v1889 = vmul.f32 %v1850, %v1886
    %v1890 = vmul.f32 %v1854, %v1886
    %v1891 = vmul.f32 %v1858, %v1886
    %v1892 = vmul.f32 %v1862, %v1886
    %v1893 = vmul.f32 %v1866, %v1886
    %v1894 = vmul.f32 %v1870, %v1886
    %v1895 = vmul.f32 %v1874, %v1886
    %1897 = vset.pattern.permute.xlu0 0
    %1898 = vperm.xlu0 %1897, %v1841
    %v1899 = vpop.permute.xlu0 %1898
    %v1901 = vadd.f32 %v1899, %v1888
    %v1902 = vadd.f32 %v1899, %v1889
    %v1903 = vadd.f32 %v1899, %v1890
    %v1904 = vadd.f32 %v1899, %v1891
    %v1905 = vadd.f32 %v1899, %v1892
    %v1906 = vadd.f32 %v1899, %v1893
    %v1907 = vadd.f32 %v1899, %v1894
    %v1908 = vadd.f32 %v1899, %v1895
    %v1909 = vmul.f32 %v1796, %v1901
    %v1910 = vmul.f32 %v1797, %v1902
    %v1911 = vmul.f32 %v1798, %v1903
    %v1912 = vmul.f32 %v1799, %v1904
    %v1913 = vmul.f32 %v1800, %v1905
    %v1914 = vmul.f32 %v1801, %v1906
    %v1915 = vmul.f32 %v1802, %v1907
    %v1916 = vmul.f32 %v1803, %v1908
    %v1917 = vld [vmem:[%s818 + $0x4] sm:$0xf]
    %v1918 = vunpack.c.0.s8 %v1917
    %v1919 = vunpack.c.1.s8 %v1917
    %v1920 = vcvt.s32.f32 %v1918
    %v1921 = vcvt.s32.f32 %v1919
    %v1925 = vunpack.c.l.s4 1966171168
    %v1926 = vunpack.c.0.s8 %v1925
    %v1927 = vlaneseq
    %v1928 = vshrl.u32 %v1927, 7
    %v1929 = vsub.s32 %v1926, %v1928
    %v1930 = vrot.slane %v1920, %v1929
    %v1932 = vunpack.c.l.s4 1966171168
    %v1933 = vunpack.c.0.s8 %v1932
    %v1934 = vlaneseq
    %v1935 = vshrl.u32 %v1934, 7
    %v1936 = vsub.s32 %v1933, %v1935
    %v1937 = vrot.slane %v1921, %v1936
    %v1938 = vcombine.low %v1930, %v1937
    %v1939 = vcombine.high %v1930, %v1937
    %v1941 = vunpack.c.l.s4 1966171168
    %v1942 = vunpack.c.0.s8 %v1941
    %v1943 = vlaneseq
    %v1944 = vshrl.u32 %v1943, 7
    %v1945 = vsub.s32 %v1942, %v1944
    %v1946 = vrot.slane %v1938, %v1945
    %v1948 = vunpack.c.l.s4 1966171168
    %v1949 = vunpack.c.0.s8 %v1948
    %v1950 = vlaneseq
    %v1951 = vshrl.u32 %v1950, 7
    %v1952 = vsub.s32 %v1949, %v1951
    %v1953 = vrot.slane %v1939, %v1952
    %v1954 = vld [vmem:[%s856] sm:$0xff]
    %v1955 = vld [vmem:[%s858] sm:$0xff]
    %v1956 = vlaneseq
    %v1957 = vshrl.u32 %v1956, 7
    %v1958 = vsub.s32 0, %v1957
    %v1959 = vrot.slane %v1946, %v1958
    %v1960 = vlaneseq
    %v1961 = vshrl.u32 %v1960, 7
    %v1962 = vsub.s32 1, %v1961
    %v1963 = vrot.slane %v1946, %v1962
    %v1964 = vlaneseq
    %v1965 = vshrl.u32 %v1964, 7
    %v1966 = vsub.s32 2, %v1965
    %v1967 = vrot.slane %v1946, %v1966
    %v1968 = vlaneseq
    %v1969 = vshrl.u32 %v1968, 7
    %v1970 = vsub.s32 3, %v1969
    %v1971 = vrot.slane %v1946, %v1970
    %v1972 = vlaneseq
    %v1973 = vshrl.u32 %v1972, 7
    %v1974 = vsub.s32 0, %v1973
    %v1975 = vrot.slane %v1953, %v1974
    %v1976 = vlaneseq
    %v1977 = vshrl.u32 %v1976, 7
    %v1978 = vsub.s32 1, %v1977
    %v1979 = vrot.slane %v1953, %v1978
    %v1980 = vlaneseq
    %v1981 = vshrl.u32 %v1980, 7
    %v1982 = vsub.s32 2, %v1981
    %v1983 = vrot.slane %v1953, %v1982
    %v1984 = vlaneseq
    %v1985 = vshrl.u32 %v1984, 7
    %v1986 = vsub.s32 3, %v1985
    %v1987 = vrot.slane %v1953, %v1986
    %1997 = vset.pattern.permute.xlu0 0
    %1998 = vperm.xlu0 %1997, %v1955
    %v1999 = vpop.permute.xlu0 %1998
    %v2001 = vmul.f32 %v1959, %v1999
    %v2002 = vmul.f32 %v1963, %v1999
    %v2003 = vmul.f32 %v1967, %v1999
    %v2004 = vmul.f32 %v1971, %v1999
    %v2005 = vmul.f32 %v1975, %v1999
    %v2006 = vmul.f32 %v1979, %v1999
    %v2007 = vmul.f32 %v1983, %v1999
    %v2008 = vmul.f32 %v1987, %v1999
    %2010 = vset.pattern.permute.xlu0 0
    %2011 = vperm.xlu0 %2010, %v1954
    %v2012 = vpop.permute.xlu0 %2011
    %v2014 = vadd.f32 %v2012, %v2001
    %v2015 = vadd.f32 %v2012, %v2002
    %v2016 = vadd.f32 %v2012, %v2003
    %v2017 = vadd.f32 %v2012, %v2004
    %v2018 = vadd.f32 %v2012, %v2005
    %v2019 = vadd.f32 %v2012, %v2006
    %v2020 = vadd.f32 %v2012, %v2007
    %v2021 = vadd.f32 %v2012, %v2008
    %v2022 = vmul.f32 %v1909, %v2014
    %v2023 = vmul.f32 %v1910, %v2015
    %v2024 = vmul.f32 %v1911, %v2016
    %v2025 = vmul.f32 %v1912, %v2017
    %v2026 = vmul.f32 %v1913, %v2018
    %v2027 = vmul.f32 %v1914, %v2019
    %v2028 = vmul.f32 %v1915, %v2020
    %v2029 = vmul.f32 %v1916, %v2021
    %v2030 = vld [vmem:[%s934 + $0x4] sm:$0xf]
    %v2031 = vunpack.c.0.s8 %v2030
    %v2032 = vunpack.c.1.s8 %v2030
    %v2033 = vcvt.s32.f32 %v2031
    %v2034 = vcvt.s32.f32 %v2032
    %v2038 = vunpack.c.l.s4 1966171168
    %v2039 = vunpack.c.0.s8 %v2038
    %v2040 = vlaneseq
    %v2041 = vshrl.u32 %v2040, 7
    %v2042 = vsub.s32 %v2039, %v2041
    %v2043 = vrot.slane %v2033, %v2042
    %v2045 = vunpack.c.l.s4 1966171168
    %v2046 = vunpack.c.0.s8 %v2045
    %v2047 = vlaneseq
    %v2048 = vshrl.u32 %v2047, 7
    %v2049 = vsub.s32 %v2046, %v2048
    %v2050 = vrot.slane %v2034, %v2049
    %v2051 = vcombine.low %v2043, %v2050
    %v2052 = vcombine.high %v2043, %v2050
    %v2054 = vunpack.c.l.s4 1966171168
    %v2055 = vunpack.c.0.s8 %v2054
    %v2056 = vlaneseq
    %v2057 = vshrl.u32 %v2056, 7
    %v2058 = vsub.s32 %v2055, %v2057
    %v2059 = vrot.slane %v2051, %v2058
    %v2061 = vunpack.c.l.s4 1966171168
    %v2062 = vunpack.c.0.s8 %v2061
    %v2063 = vlaneseq
    %v2064 = vshrl.u32 %v2063, 7
    %v2065 = vsub.s32 %v2062, %v2064
    %v2066 = vrot.slane %v2052, %v2065
    %v2067 = vld [vmem:[%s972] sm:$0xff]
    %v2068 = vld [vmem:[%s974] sm:$0xff]
    %v2069 = vlaneseq
    %v2070 = vshrl.u32 %v2069, 7
    %v2071 = vsub.s32 0, %v2070
    %v2072 = vrot.slane %v2059, %v2071
    %v2073 = vlaneseq
    %v2074 = vshrl.u32 %v2073, 7
    %v2075 = vsub.s32 1, %v2074
    %v2076 = vrot.slane %v2059, %v2075
    %v2077 = vlaneseq
    %v2078 = vshrl.u32 %v2077, 7
    %v2079 = vsub.s32 2, %v2078
    %v2080 = vrot.slane %v2059, %v2079
    %v2081 = vlaneseq
    %v2082 = vshrl.u32 %v2081, 7
    %v2083 = vsub.s32 3, %v2082
    %v2084 = vrot.slane %v2059, %v2083
    %v2085 = vlaneseq
    %v2086 = vshrl.u32 %v2085, 7
    %v2087 = vsub.s32 0, %v2086
    %v2088 = vrot.slane %v2066, %v2087
    %v2089 = vlaneseq
    %v2090 = vshrl.u32 %v2089, 7
    %v2091 = vsub.s32 1, %v2090
    %v2092 = vrot.slane %v2066, %v2091
    %v2093 = vlaneseq
    %v2094 = vshrl.u32 %v2093, 7
    %v2095 = vsub.s32 2, %v2094
    %v2096 = vrot.slane %v2066, %v2095
    %v2097 = vlaneseq
    %v2098 = vshrl.u32 %v2097, 7
    %v2099 = vsub.s32 3, %v2098
    %v2100 = vrot.slane %v2066, %v2099
    %2110 = vset.pattern.permute.xlu0 0
    %2111 = vperm.xlu0 %2110, %v2068
    %v2112 = vpop.permute.xlu0 %2111
    %v2114 = vmul.f32 %v2072, %v2112
    %v2115 = vmul.f32 %v2076, %v2112
    %v2116 = vmul.f32 %v2080, %v2112
    %v2117 = vmul.f32 %v2084, %v2112
    %v2118 = vmul.f32 %v2088, %v2112
    %v2119 = vmul.f32 %v2092, %v2112
    %v2120 = vmul.f32 %v2096, %v2112
    %v2121 = vmul.f32 %v2100, %v2112
    %2123 = vset.pattern.permute.xlu0 0
    %2124 = vperm.xlu0 %2123, %v2067
    %v2125 = vpop.permute.xlu0 %2124
    %v2127 = vadd.f32 %v2125, %v2114
    %v2128 = vadd.f32 %v2125, %v2115
    %v2129 = vadd.f32 %v2125, %v2116
    %v2130 = vadd.f32 %v2125, %v2117
    %v2131 = vadd.f32 %v2125, %v2118
    %v2132 = vadd.f32 %v2125, %v2119
    %v2133 = vadd.f32 %v2125, %v2120
    %v2134 = vadd.f32 %v2125, %v2121
    %v2135 = vmul.f32 %v2022, %v2127
    %v2136 = vmul.f32 %v2023, %v2128
    %v2137 = vmul.f32 %v2024, %v2129
    %v2138 = vmul.f32 %v2025, %v2130
    %v2139 = vmul.f32 %v2026, %v2131
    %v2140 = vmul.f32 %v2027, %v2132
    %v2141 = vmul.f32 %v2028, %v2133
    %v2142 = vmul.f32 %v2029, %v2134
    %v2143 = vsub.f32 0.5, %v2135
    %v2144 = vsub.f32 0.5, %v2136
    %v2145 = vsub.f32 0.5, %v2137
    %v2146 = vsub.f32 0.5, %v2138
    %v2147 = vsub.f32 0.5, %v2139
    %v2148 = vsub.f32 0.5, %v2140
    %v2149 = vsub.f32 0.5, %v2141
    %v2150 = vsub.f32 0.5, %v2142
    %v2151 = vmul.f32 %v2143, 10.0
    %v2152 = vmul.f32 %v2144, 10.0
    %v2153 = vmul.f32 %v2145, 10.0
    %v2154 = vmul.f32 %v2146, 10.0
    %v2155 = vmul.f32 %v2147, 10.0
    %v2156 = vmul.f32 %v2148, 10.0
    %v2157 = vmul.f32 %v2149, 10.0
    %v2158 = vmul.f32 %v2150, 10.0
    %v2159 = vmul.f32 %v2151, 1.442695
    %v2160 = vpow.pop %v2159
    %v2161 = vmul.f32 %v2152, 1.442695
    %v2162 = vpow.pop %v2161
    %v2163 = vmul.f32 %v2153, 1.442695
    %v2164 = vpow.pop %v2163
    %v2165 = vmul.f32 %v2154, 1.442695
    %v2166 = vpow.pop %v2165
    %v2167 = vmul.f32 %v2155, 1.442695
    %v2168 = vpow.pop %v2167
    %v2169 = vmul.f32 %v2156, 1.442695
    %v2170 = vpow.pop %v2169
    %v2171 = vmul.f32 %v2157, 1.442695
    %v2172 = vpow.pop %v2171
    %v2173 = vmul.f32 %v2158, 1.442695
    %v2174 = vpow.pop %v2173
    %v2175 = vadd.f32 %v2160, 1.0
    %v2176 = vadd.f32 %v2162, 1.0
    %v2177 = vadd.f32 %v2164, 1.0
    %v2178 = vadd.f32 %v2166, 1.0
    %v2179 = vadd.f32 %v2168, 1.0
    %v2180 = vadd.f32 %v2170, 1.0
    %v2181 = vadd.f32 %v2172, 1.0
    %v2182 = vadd.f32 %v2174, 1.0
    %v2183 = vrcp.pop %v2175
    %v2184 = vmul.f32 1.0, %v2183
    %v2185 = vrcp.pop %v2176
    %v2186 = vmul.f32 1.0, %v2185
    %v2187 = vrcp.pop %v2177
    %v2188 = vmul.f32 1.0, %v2187
    %v2189 = vrcp.pop %v2178
    %v2190 = vmul.f32 1.0, %v2189
    %v2191 = vrcp.pop %v2179
    %v2192 = vmul.f32 1.0, %v2191
    %v2193 = vrcp.pop %v2180
    %v2194 = vmul.f32 1.0, %v2193
    %v2195 = vrcp.pop %v2181
    %v2196 = vmul.f32 1.0, %v2195
    %v2197 = vrcp.pop %v2182
    %v2198 = vmul.f32 1.0, %v2197
    %v2199 = vld [vmem:[#allocation2] sm:$0x3]
    %v2200 = vadd.f32 %v2184, %v2186
    %v2201 = vadd.f32 %v2200, %v2188
    %v2202 = vadd.f32 %v2201, %v2190
    %2203 = vadd.xlane.f32.xlu0 %v2202
    %v2204 = vpop.xlane.xlu0 %2203
    %v2205 = vadd.f32 %v2192, %v2194
    %v2206 = vadd.f32 %v2205, %v2196
    %v2207 = vadd.f32 %v2206, %v2198
    %2208 = vadd.xlane.f32.xlu0 %v2207
    %v2209 = vpop.xlane.xlu0 %2208
    %v2212 = vlaneseq
    %v2213 = vshrl.u32 %v2212, 7
    %v2214 = vsub.s32 %v1120, %v2213
    %v2215 = vrot.slane %v2204, %v2214
    %v2216 = vlaneseq
    %v2217 = vshrl.u32 %v2216, 7
    %v2218 = vsub.s32 %v1120, %v2217
    %v2219 = vrot.slane %v2209, %v2218
    %v2220 = vsel %vm1129, %v2219, %v2215
    %v2222 = vadd.f32 %v2199, %v2220
    %2223 = vst.msk [vmem:[#allocation2] sm:$0x3] %vm15, %v2222
    %v2224 = vld [vmem:[%s0 + $0x8] sm:$0xf]
    %v2225 = vunpack.c.0.s8 %v2224
    %v2226 = vunpack.c.1.s8 %v2224
    %v2227 = vcvt.s32.f32 %v2225
    %v2228 = vcvt.s32.f32 %v2226
    %v2232 = vunpack.c.l.s4 1966171168
    %v2233 = vunpack.c.0.s8 %v2232
    %v2234 = vlaneseq
    %v2235 = vshrl.u32 %v2234, 7
    %v2236 = vsub.s32 %v2233, %v2235
    %v2237 = vrot.slane %v2227, %v2236
    %v2239 = vunpack.c.l.s4 1966171168
    %v2240 = vunpack.c.0.s8 %v2239
    %v2241 = vlaneseq
    %v2242 = vshrl.u32 %v2241, 7
    %v2243 = vsub.s32 %v2240, %v2242
    %v2244 = vrot.slane %v2228, %v2243
    %v2245 = vcombine.low %v2237, %v2244
    %v2246 = vcombine.high %v2237, %v2244
    %v2248 = vunpack.c.l.s4 1966171168
    %v2249 = vunpack.c.0.s8 %v2248
    %v2250 = vlaneseq
    %v2251 = vshrl.u32 %v2250, 7
    %v2252 = vsub.s32 %v2249, %v2251
    %v2253 = vrot.slane %v2245, %v2252
    %v2255 = vunpack.c.l.s4 1966171168
    %v2256 = vunpack.c.0.s8 %v2255
    %v2257 = vlaneseq
    %v2258 = vshrl.u32 %v2257, 7
    %v2259 = vsub.s32 %v2256, %v2258
    %v2260 = vrot.slane %v2246, %v2259
    %v2261 = vld [vmem:[%s1] sm:$0xff]
    %v2262 = vld [vmem:[%s2] sm:$0xff]
    %v2263 = vlaneseq
    %v2264 = vshrl.u32 %v2263, 7
    %v2265 = vsub.s32 0, %v2264
    %v2266 = vrot.slane %v2253, %v2265
    %v2267 = vlaneseq
    %v2268 = vshrl.u32 %v2267, 7
    %v2269 = vsub.s32 1, %v2268
    %v2270 = vrot.slane %v2253, %v2269
    %v2271 = vlaneseq
    %v2272 = vshrl.u32 %v2271, 7
    %v2273 = vsub.s32 2, %v2272
    %v2274 = vrot.slane %v2253, %v2273
    %v2275 = vlaneseq
    %v2276 = vshrl.u32 %v2275, 7
    %v2277 = vsub.s32 3, %v2276
    %v2278 = vrot.slane %v2253, %v2277
    %v2279 = vlaneseq
    %v2280 = vshrl.u32 %v2279, 7
    %v2281 = vsub.s32 0, %v2280
    %v2282 = vrot.slane %v2260, %v2281
    %v2283 = vlaneseq
    %v2284 = vshrl.u32 %v2283, 7
    %v2285 = vsub.s32 1, %v2284
    %v2286 = vrot.slane %v2260, %v2285
    %v2287 = vlaneseq
    %v2288 = vshrl.u32 %v2287, 7
    %v2289 = vsub.s32 2, %v2288
    %v2290 = vrot.slane %v2260, %v2289
    %v2291 = vlaneseq
    %v2292 = vshrl.u32 %v2291, 7
    %v2293 = vsub.s32 3, %v2292
    %v2294 = vrot.slane %v2260, %v2293
    %2304 = vset.pattern.permute.xlu0 0
    %2305 = vperm.xlu0 %2304, %v2262
    %v2306 = vpop.permute.xlu0 %2305
    %v2308 = vmul.f32 %v2266, %v2306
    %v2309 = vmul.f32 %v2270, %v2306
    %v2310 = vmul.f32 %v2274, %v2306
    %v2311 = vmul.f32 %v2278, %v2306
    %v2312 = vmul.f32 %v2282, %v2306
    %v2313 = vmul.f32 %v2286, %v2306
    %v2314 = vmul.f32 %v2290, %v2306
    %v2315 = vmul.f32 %v2294, %v2306
    %2317 = vset.pattern.permute.xlu0 0
    %2318 = vperm.xlu0 %2317, %v2261
    %v2319 = vpop.permute.xlu0 %2318
    %v2321 = vadd.f32 %v2319, %v2308
    %v2322 = vadd.f32 %v2319, %v2309
    %v2323 = vadd.f32 %v2319, %v2310
    %v2324 = vadd.f32 %v2319, %v2311
    %v2325 = vadd.f32 %v2319, %v2312
    %v2326 = vadd.f32 %v2319, %v2313
    %v2327 = vadd.f32 %v2319, %v2314
    %v2328 = vadd.f32 %v2319, %v2315
    %v2329 = vld [vmem:[%s122 + $0x8] sm:$0xf]
    %v2330 = vunpack.c.0.s8 %v2329
    %v2331 = vunpack.c.1.s8 %v2329
    %v2332 = vcvt.s32.f32 %v2330
    %v2333 = vcvt.s32.f32 %v2331
    %v2337 = vunpack.c.l.s4 1966171168
    %v2338 = vunpack.c.0.s8 %v2337
    %v2339 = vlaneseq
    %v2340 = vshrl.u32 %v2339, 7
    %v2341 = vsub.s32 %v2338, %v2340
    %v2342 = vrot.slane %v2332, %v2341
    %v2344 = vunpack.c.l.s4 1966171168
    %v2345 = vunpack.c.0.s8 %v2344
    %v2346 = vlaneseq
    %v2347 = vshrl.u32 %v2346, 7
    %v2348 = vsub.s32 %v2345, %v2347
    %v2349 = vrot.slane %v2333, %v2348
    %v2350 = vcombine.low %v2342, %v2349
    %v2351 = vcombine.high %v2342, %v2349
    %v2353 = vunpack.c.l.s4 1966171168
    %v2354 = vunpack.c.0.s8 %v2353
    %v2355 = vlaneseq
    %v2356 = vshrl.u32 %v2355, 7
    %v2357 = vsub.s32 %v2354, %v2356
    %v2358 = vrot.slane %v2350, %v2357
    %v2360 = vunpack.c.l.s4 1966171168
    %v2361 = vunpack.c.0.s8 %v2360
    %v2362 = vlaneseq
    %v2363 = vshrl.u32 %v2362, 7
    %v2364 = vsub.s32 %v2361, %v2363
    %v2365 = vrot.slane %v2351, %v2364
    %v2366 = vld [vmem:[%s160] sm:$0xff]
    %v2367 = vld [vmem:[%s162] sm:$0xff]
    %v2368 = vlaneseq
    %v2369 = vshrl.u32 %v2368, 7
    %v2370 = vsub.s32 0, %v2369
    %v2371 = vrot.slane %v2358, %v2370
    %v2372 = vlaneseq
    %v2373 = vshrl.u32 %v2372, 7
    %v2374 = vsub.s32 1, %v2373
    %v2375 = vrot.slane %v2358, %v2374
    %v2376 = vlaneseq
    %v2377 = vshrl.u32 %v2376, 7
    %v2378 = vsub.s32 2, %v2377
    %v2379 = vrot.slane %v2358, %v2378
    %v2380 = vlaneseq
    %v2381 = vshrl.u32 %v2380, 7
    %v2382 = vsub.s32 3, %v2381
    %v2383 = vrot.slane %v2358, %v2382
    %v2384 = vlaneseq
    %v2385 = vshrl.u32 %v2384, 7
    %v2386 = vsub.s32 0, %v2385
    %v2387 = vrot.slane %v2365, %v2386
    %v2388 = vlaneseq
    %v2389 = vshrl.u32 %v2388, 7
    %v2390 = vsub.s32 1, %v2389
    %v2391 = vrot.slane %v2365, %v2390
    %v2392 = vlaneseq
    %v2393 = vshrl.u32 %v2392, 7
    %v2394 = vsub.s32 2, %v2393
    %v2395 = vrot.slane %v2365, %v2394
    %v2396 = vlaneseq
    %v2397 = vshrl.u32 %v2396, 7
    %v2398 = vsub.s32 3, %v2397
    %v2399 = vrot.slane %v2365, %v2398
    %2409 = vset.pattern.permute.xlu0 0
    %2410 = vperm.xlu0 %2409, %v2367
    %v2411 = vpop.permute.xlu0 %2410
    %v2413 = vmul.f32 %v2371, %v2411
    %v2414 = vmul.f32 %v2375, %v2411
    %v2415 = vmul.f32 %v2379, %v2411
    %v2416 = vmul.f32 %v2383, %v2411
    %v2417 = vmul.f32 %v2387, %v2411
    %v2418 = vmul.f32 %v2391, %v2411
    %v2419 = vmul.f32 %v2395, %v2411
    %v2420 = vmul.f32 %v2399, %v2411
    %2422 = vset.pattern.permute.xlu0 0
    %2423 = vperm.xlu0 %2422, %v2366
    %v2424 = vpop.permute.xlu0 %2423
    %v2426 = vadd.f32 %v2424, %v2413
    %v2427 = vadd.f32 %v2424, %v2414
    %v2428 = vadd.f32 %v2424, %v2415
    %v2429 = vadd.f32 %v2424, %v2416
    %v2430 = vadd.f32 %v2424, %v2417
    %v2431 = vadd.f32 %v2424, %v2418
    %v2432 = vadd.f32 %v2424, %v2419
    %v2433 = vadd.f32 %v2424, %v2420
    %v2434 = vmul.f32 %v2321, %v2426
    %v2435 = vmul.f32 %v2322, %v2427
    %v2436 = vmul.f32 %v2323, %v2428
    %v2437 = vmul.f32 %v2324, %v2429
    %v2438 = vmul.f32 %v2325, %v2430
    %v2439 = vmul.f32 %v2326, %v2431
    %v2440 = vmul.f32 %v2327, %v2432
    %v2441 = vmul.f32 %v2328, %v2433
    %v2442 = vld [vmem:[%s238 + $0x8] sm:$0xf]
    %v2443 = vunpack.c.0.s8 %v2442
    %v2444 = vunpack.c.1.s8 %v2442
    %v2445 = vcvt.s32.f32 %v2443
    %v2446 = vcvt.s32.f32 %v2444
    %v2450 = vunpack.c.l.s4 1966171168
    %v2451 = vunpack.c.0.s8 %v2450
    %v2452 = vlaneseq
    %v2453 = vshrl.u32 %v2452, 7
    %v2454 = vsub.s32 %v2451, %v2453
    %v2455 = vrot.slane %v2445, %v2454
    %v2457 = vunpack.c.l.s4 1966171168
    %v2458 = vunpack.c.0.s8 %v2457
    %v2459 = vlaneseq
    %v2460 = vshrl.u32 %v2459, 7
    %v2461 = vsub.s32 %v2458, %v2460
    %v2462 = vrot.slane %v2446, %v2461
    %v2463 = vcombine.low %v2455, %v2462
    %v2464 = vcombine.high %v2455, %v2462
    %v2466 = vunpack.c.l.s4 1966171168
    %v2467 = vunpack.c.0.s8 %v2466
    %v2468 = vlaneseq
    %v2469 = vshrl.u32 %v2468, 7
    %v2470 = vsub.s32 %v2467, %v2469
    %v2471 = vrot.slane %v2463, %v2470
    %v2473 = vunpack.c.l.s4 1966171168
    %v2474 = vunpack.c.0.s8 %v2473
    %v2475 = vlaneseq
    %v2476 = vshrl.u32 %v2475, 7
    %v2477 = vsub.s32 %v2474, %v2476
    %v2478 = vrot.slane %v2464, %v2477
    %v2479 = vld [vmem:[%s276] sm:$0xff]
    %v2480 = vld [vmem:[%s278] sm:$0xff]
    %v2481 = vlaneseq
    %v2482 = vshrl.u32 %v2481, 7
    %v2483 = vsub.s32 0, %v2482
    %v2484 = vrot.slane %v2471, %v2483
    %v2485 = vlaneseq
    %v2486 = vshrl.u32 %v2485, 7
    %v2487 = vsub.s32 1, %v2486
    %v2488 = vrot.slane %v2471, %v2487
    %v2489 = vlaneseq
    %v2490 = vshrl.u32 %v2489, 7
    %v2491 = vsub.s32 2, %v2490
    %v2492 = vrot.slane %v2471, %v2491
    %v2493 = vlaneseq
    %v2494 = vshrl.u32 %v2493, 7
    %v2495 = vsub.s32 3, %v2494
    %v2496 = vrot.slane %v2471, %v2495
    %v2497 = vlaneseq
    %v2498 = vshrl.u32 %v2497, 7
    %v2499 = vsub.s32 0, %v2498
    %v2500 = vrot.slane %v2478, %v2499
    %v2501 = vlaneseq
    %v2502 = vshrl.u32 %v2501, 7
    %v2503 = vsub.s32 1, %v2502
    %v2504 = vrot.slane %v2478, %v2503
    %v2505 = vlaneseq
    %v2506 = vshrl.u32 %v2505, 7
    %v2507 = vsub.s32 2, %v2506
    %v2508 = vrot.slane %v2478, %v2507
    %v2509 = vlaneseq
    %v2510 = vshrl.u32 %v2509, 7
    %v2511 = vsub.s32 3, %v2510
    %v2512 = vrot.slane %v2478, %v2511
    %2522 = vset.pattern.permute.xlu0 0
    %2523 = vperm.xlu0 %2522, %v2480
    %v2524 = vpop.permute.xlu0 %2523
    %v2526 = vmul.f32 %v2484, %v2524
    %v2527 = vmul.f32 %v2488, %v2524
    %v2528 = vmul.f32 %v2492, %v2524
    %v2529 = vmul.f32 %v2496, %v2524
    %v2530 = vmul.f32 %v2500, %v2524
    %v2531 = vmul.f32 %v2504, %v2524
    %v2532 = vmul.f32 %v2508, %v2524
    %v2533 = vmul.f32 %v2512, %v2524
    %2535 = vset.pattern.permute.xlu0 0
    %2536 = vperm.xlu0 %2535, %v2479
    %v2537 = vpop.permute.xlu0 %2536
    %v2539 = vadd.f32 %v2537, %v2526
    %v2540 = vadd.f32 %v2537, %v2527
    %v2541 = vadd.f32 %v2537, %v2528
    %v2542 = vadd.f32 %v2537, %v2529
    %v2543 = vadd.f32 %v2537, %v2530
    %v2544 = vadd.f32 %v2537, %v2531
    %v2545 = vadd.f32 %v2537, %v2532
    %v2546 = vadd.f32 %v2537, %v2533
    %v2547 = vmul.f32 %v2434, %v2539
    %v2548 = vmul.f32 %v2435, %v2540
    %v2549 = vmul.f32 %v2436, %v2541
    %v2550 = vmul.f32 %v2437, %v2542
    %v2551 = vmul.f32 %v2438, %v2543
    %v2552 = vmul.f32 %v2439, %v2544
    %v2553 = vmul.f32 %v2440, %v2545
    %v2554 = vmul.f32 %v2441, %v2546
    %v2555 = vld [vmem:[%s354 + $0x8] sm:$0xf]
    %v2556 = vunpack.c.0.s8 %v2555
    %v2557 = vunpack.c.1.s8 %v2555
    %v2558 = vcvt.s32.f32 %v2556
    %v2559 = vcvt.s32.f32 %v2557
    %v2563 = vunpack.c.l.s4 1966171168
    %v2564 = vunpack.c.0.s8 %v2563
    %v2565 = vlaneseq
    %v2566 = vshrl.u32 %v2565, 7
    %v2567 = vsub.s32 %v2564, %v2566
    %v2568 = vrot.slane %v2558, %v2567
    %v2570 = vunpack.c.l.s4 1966171168
    %v2571 = vunpack.c.0.s8 %v2570
    %v2572 = vlaneseq
    %v2573 = vshrl.u32 %v2572, 7
    %v2574 = vsub.s32 %v2571, %v2573
    %v2575 = vrot.slane %v2559, %v2574
    %v2576 = vcombine.low %v2568, %v2575
    %v2577 = vcombine.high %v2568, %v2575
    %v2579 = vunpack.c.l.s4 1966171168
    %v2580 = vunpack.c.0.s8 %v2579
    %v2581 = vlaneseq
    %v2582 = vshrl.u32 %v2581, 7
    %v2583 = vsub.s32 %v2580, %v2582
    %v2584 = vrot.slane %v2576, %v2583
    %v2586 = vunpack.c.l.s4 1966171168
    %v2587 = vunpack.c.0.s8 %v2586
    %v2588 = vlaneseq
    %v2589 = vshrl.u32 %v2588, 7
    %v2590 = vsub.s32 %v2587, %v2589
    %v2591 = vrot.slane %v2577, %v2590
    %v2592 = vld [vmem:[%s392] sm:$0xff]
    %v2593 = vld [vmem:[%s394] sm:$0xff]
    %v2594 = vlaneseq
    %v2595 = vshrl.u32 %v2594, 7
    %v2596 = vsub.s32 0, %v2595
    %v2597 = vrot.slane %v2584, %v2596
    %v2598 = vlaneseq
    %v2599 = vshrl.u32 %v2598, 7
    %v2600 = vsub.s32 1, %v2599
    %v2601 = vrot.slane %v2584, %v2600
    %v2602 = vlaneseq
    %v2603 = vshrl.u32 %v2602, 7
    %v2604 = vsub.s32 2, %v2603
    %v2605 = vrot.slane %v2584, %v2604
    %v2606 = vlaneseq
    %v2607 = vshrl.u32 %v2606, 7
    %v2608 = vsub.s32 3, %v2607
    %v2609 = vrot.slane %v2584, %v2608
    %v2610 = vlaneseq
    %v2611 = vshrl.u32 %v2610, 7
    %v2612 = vsub.s32 0, %v2611
    %v2613 = vrot.slane %v2591, %v2612
    %v2614 = vlaneseq
    %v2615 = vshrl.u32 %v2614, 7
    %v2616 = vsub.s32 1, %v2615
    %v2617 = vrot.slane %v2591, %v2616
    %v2618 = vlaneseq
    %v2619 = vshrl.u32 %v2618, 7
    %v2620 = vsub.s32 2, %v2619
    %v2621 = vrot.slane %v2591, %v2620
    %v2622 = vlaneseq
    %v2623 = vshrl.u32 %v2622, 7
    %v2624 = vsub.s32 3, %v2623
    %v2625 = vrot.slane %v2591, %v2624
    %2635 = vset.pattern.permute.xlu0 0
    %2636 = vperm.xlu0 %2635, %v2593
    %v2637 = vpop.permute.xlu0 %2636
    %v2639 = vmul.f32 %v2597, %v2637
    %v2640 = vmul.f32 %v2601, %v2637
    %v2641 = vmul.f32 %v2605, %v2637
    %v2642 = vmul.f32 %v2609, %v2637
    %v2643 = vmul.f32 %v2613, %v2637
    %v2644 = vmul.f32 %v2617, %v2637
    %v2645 = vmul.f32 %v2621, %v2637
    %v2646 = vmul.f32 %v2625, %v2637
    %2648 = vset.pattern.permute.xlu0 0
    %2649 = vperm.xlu0 %2648, %v2592
    %v2650 = vpop.permute.xlu0 %2649
    %v2652 = vadd.f32 %v2650, %v2639
    %v2653 = vadd.f32 %v2650, %v2640
    %v2654 = vadd.f32 %v2650, %v2641
    %v2655 = vadd.f32 %v2650, %v2642
    %v2656 = vadd.f32 %v2650, %v2643
    %v2657 = vadd.f32 %v2650, %v2644
    %v2658 = vadd.f32 %v2650, %v2645
    %v2659 = vadd.f32 %v2650, %v2646
    %v2660 = vmul.f32 %v2547, %v2652
    %v2661 = vmul.f32 %v2548, %v2653
    %v2662 = vmul.f32 %v2549, %v2654
    %v2663 = vmul.f32 %v2550, %v2655
    %v2664 = vmul.f32 %v2551, %v2656
    %v2665 = vmul.f32 %v2552, %v2657
    %v2666 = vmul.f32 %v2553, %v2658
    %v2667 = vmul.f32 %v2554, %v2659
    %v2668 = vld [vmem:[%s470 + $0x8] sm:$0xf]
    %v2669 = vunpack.c.0.s8 %v2668
    %v2670 = vunpack.c.1.s8 %v2668
    %v2671 = vcvt.s32.f32 %v2669
    %v2672 = vcvt.s32.f32 %v2670
    %v2676 = vunpack.c.l.s4 1966171168
    %v2677 = vunpack.c.0.s8 %v2676
    %v2678 = vlaneseq
    %v2679 = vshrl.u32 %v2678, 7
    %v2680 = vsub.s32 %v2677, %v2679
    %v2681 = vrot.slane %v2671, %v2680
    %v2683 = vunpack.c.l.s4 1966171168
    %v2684 = vunpack.c.0.s8 %v2683
    %v2685 = vlaneseq
    %v2686 = vshrl.u32 %v2685, 7
    %v2687 = vsub.s32 %v2684, %v2686
    %v2688 = vrot.slane %v2672, %v2687
    %v2689 = vcombine.low %v2681, %v2688
    %v2690 = vcombine.high %v2681, %v2688
    %v2692 = vunpack.c.l.s4 1966171168
    %v2693 = vunpack.c.0.s8 %v2692
    %v2694 = vlaneseq
    %v2695 = vshrl.u32 %v2694, 7
    %v2696 = vsub.s32 %v2693, %v2695
    %v2697 = vrot.slane %v2689, %v2696
    %v2699 = vunpack.c.l.s4 1966171168
    %v2700 = vunpack.c.0.s8 %v2699
    %v2701 = vlaneseq
    %v2702 = vshrl.u32 %v2701, 7
    %v2703 = vsub.s32 %v2700, %v2702
    %v2704 = vrot.slane %v2690, %v2703
    %v2705 = vld [vmem:[%s508] sm:$0xff]
    %v2706 = vld [vmem:[%s510] sm:$0xff]
    %v2707 = vlaneseq
    %v2708 = vshrl.u32 %v2707, 7
    %v2709 = vsub.s32 0, %v2708
    %v2710 = vrot.slane %v2697, %v2709
    %v2711 = vlaneseq
    %v2712 = vshrl.u32 %v2711, 7
    %v2713 = vsub.s32 1, %v2712
    %v2714 = vrot.slane %v2697, %v2713
    %v2715 = vlaneseq
    %v2716 = vshrl.u32 %v2715, 7
    %v2717 = vsub.s32 2, %v2716
    %v2718 = vrot.slane %v2697, %v2717
    %v2719 = vlaneseq
    %v2720 = vshrl.u32 %v2719, 7
    %v2721 = vsub.s32 3, %v2720
    %v2722 = vrot.slane %v2697, %v2721
    %v2723 = vlaneseq
    %v2724 = vshrl.u32 %v2723, 7
    %v2725 = vsub.s32 0, %v2724
    %v2726 = vrot.slane %v2704, %v2725
    %v2727 = vlaneseq
    %v2728 = vshrl.u32 %v2727, 7
    %v2729 = vsub.s32 1, %v2728
    %v2730 = vrot.slane %v2704, %v2729
    %v2731 = vlaneseq
    %v2732 = vshrl.u32 %v2731, 7
    %v2733 = vsub.s32 2, %v2732
    %v2734 = vrot.slane %v2704, %v2733
    %v2735 = vlaneseq
    %v2736 = vshrl.u32 %v2735, 7
    %v2737 = vsub.s32 3, %v2736
    %v2738 = vrot.slane %v2704, %v2737
    %2748 = vset.pattern.permute.xlu0 0
    %2749 = vperm.xlu0 %2748, %v2706
    %v2750 = vpop.permute.xlu0 %2749
    %v2752 = vmul.f32 %v2710, %v2750
    %v2753 = vmul.f32 %v2714, %v2750
    %v2754 = vmul.f32 %v2718, %v2750
    %v2755 = vmul.f32 %v2722, %v2750
    %v2756 = vmul.f32 %v2726, %v2750
    %v2757 = vmul.f32 %v2730, %v2750
    %v2758 = vmul.f32 %v2734, %v2750
    %v2759 = vmul.f32 %v2738, %v2750
    %2761 = vset.pattern.permute.xlu0 0
    %2762 = vperm.xlu0 %2761, %v2705
    %v2763 = vpop.permute.xlu0 %2762
    %v2765 = vadd.f32 %v2763, %v2752
    %v2766 = vadd.f32 %v2763, %v2753
    %v2767 = vadd.f32 %v2763, %v2754
    %v2768 = vadd.f32 %v2763, %v2755
    %v2769 = vadd.f32 %v2763, %v2756
    %v2770 = vadd.f32 %v2763, %v2757
    %v2771 = vadd.f32 %v2763, %v2758
    %v2772 = vadd.f32 %v2763, %v2759
    %v2773 = vmul.f32 %v2660, %v2765
    %v2774 = vmul.f32 %v2661, %v2766
    %v2775 = vmul.f32 %v2662, %v2767
    %v2776 = vmul.f32 %v2663, %v2768
    %v2777 = vmul.f32 %v2664, %v2769
    %v2778 = vmul.f32 %v2665, %v2770
    %v2779 = vmul.f32 %v2666, %v2771
    %v2780 = vmul.f32 %v2667, %v2772
    %v2781 = vld [vmem:[%s586 + $0x8] sm:$0xf]
    %v2782 = vunpack.c.0.s8 %v2781
    %v2783 = vunpack.c.1.s8 %v2781
    %v2784 = vcvt.s32.f32 %v2782
    %v2785 = vcvt.s32.f32 %v2783
    %v2789 = vunpack.c.l.s4 1966171168
    %v2790 = vunpack.c.0.s8 %v2789
    %v2791 = vlaneseq
    %v2792 = vshrl.u32 %v2791, 7
    %v2793 = vsub.s32 %v2790, %v2792
    %v2794 = vrot.slane %v2784, %v2793
    %v2796 = vunpack.c.l.s4 1966171168
    %v2797 = vunpack.c.0.s8 %v2796
    %v2798 = vlaneseq
    %v2799 = vshrl.u32 %v2798, 7
    %v2800 = vsub.s32 %v2797, %v2799
    %v2801 = vrot.slane %v2785, %v2800
    %v2802 = vcombine.low %v2794, %v2801
    %v2803 = vcombine.high %v2794, %v2801
    %v2805 = vunpack.c.l.s4 1966171168
    %v2806 = vunpack.c.0.s8 %v2805
    %v2807 = vlaneseq
    %v2808 = vshrl.u32 %v2807, 7
    %v2809 = vsub.s32 %v2806, %v2808
    %v2810 = vrot.slane %v2802, %v2809
    %v2812 = vunpack.c.l.s4 1966171168
    %v2813 = vunpack.c.0.s8 %v2812
    %v2814 = vlaneseq
    %v2815 = vshrl.u32 %v2814, 7
    %v2816 = vsub.s32 %v2813, %v2815
    %v2817 = vrot.slane %v2803, %v2816
    %v2818 = vld [vmem:[%s624] sm:$0xff]
    %v2819 = vld [vmem:[%s626] sm:$0xff]
    %v2820 = vlaneseq
    %v2821 = vshrl.u32 %v2820, 7
    %v2822 = vsub.s32 0, %v2821
    %v2823 = vrot.slane %v2810, %v2822
    %v2824 = vlaneseq
    %v2825 = vshrl.u32 %v2824, 7
    %v2826 = vsub.s32 1, %v2825
    %v2827 = vrot.slane %v2810, %v2826
    %v2828 = vlaneseq
    %v2829 = vshrl.u32 %v2828, 7
    %v2830 = vsub.s32 2, %v2829
    %v2831 = vrot.slane %v2810, %v2830
    %v2832 = vlaneseq
    %v2833 = vshrl.u32 %v2832, 7
    %v2834 = vsub.s32 3, %v2833
    %v2835 = vrot.slane %v2810, %v2834
    %v2836 = vlaneseq
    %v2837 = vshrl.u32 %v2836, 7
    %v2838 = vsub.s32 0, %v2837
    %v2839 = vrot.slane %v2817, %v2838
    %v2840 = vlaneseq
    %v2841 = vshrl.u32 %v2840, 7
    %v2842 = vsub.s32 1, %v2841
    %v2843 = vrot.slane %v2817, %v2842
    %v2844 = vlaneseq
    %v2845 = vshrl.u32 %v2844, 7
    %v2846 = vsub.s32 2, %v2845
    %v2847 = vrot.slane %v2817, %v2846
    %v2848 = vlaneseq
    %v2849 = vshrl.u32 %v2848, 7
    %v2850 = vsub.s32 3, %v2849
    %v2851 = vrot.slane %v2817, %v2850
    %2861 = vset.pattern.permute.xlu0 0
    %2862 = vperm.xlu0 %2861, %v2819
    %v2863 = vpop.permute.xlu0 %2862
    %v2865 = vmul.f32 %v2823, %v2863
    %v2866 = vmul.f32 %v2827, %v2863
    %v2867 = vmul.f32 %v2831, %v2863
    %v2868 = vmul.f32 %v2835, %v2863
    %v2869 = vmul.f32 %v2839, %v2863
    %v2870 = vmul.f32 %v2843, %v2863
    %v2871 = vmul.f32 %v2847, %v2863
    %v2872 = vmul.f32 %v2851, %v2863
    %2874 = vset.pattern.permute.xlu0 0
    %2875 = vperm.xlu0 %2874, %v2818
    %v2876 = vpop.permute.xlu0 %2875
    %v2878 = vadd.f32 %v2876, %v2865
    %v2879 = vadd.f32 %v2876, %v2866
    %v2880 = vadd.f32 %v2876, %v2867
    %v2881 = vadd.f32 %v2876, %v2868
    %v2882 = vadd.f32 %v2876, %v2869
    %v2883 = vadd.f32 %v2876, %v2870
    %v2884 = vadd.f32 %v2876, %v2871
    %v2885 = vadd.f32 %v2876, %v2872
    %v2886 = vmul.f32 %v2773, %v2878
    %v2887 = vmul.f32 %v2774, %v2879
    %v2888 = vmul.f32 %v2775, %v2880
    %v2889 = vmul.f32 %v2776, %v2881
    %v2890 = vmul.f32 %v2777, %v2882
    %v2891 = vmul.f32 %v2778, %v2883
    %v2892 = vmul.f32 %v2779, %v2884
    %v2893 = vmul.f32 %v2780, %v2885
    %v2894 = vld [vmem:[%s702 + $0x8] sm:$0xf]
    %v2895 = vunpack.c.0.s8 %v2894
    %v2896 = vunpack.c.1.s8 %v2894
    %v2897 = vcvt.s32.f32 %v2895
    %v2898 = vcvt.s32.f32 %v2896
    %v2902 = vunpack.c.l.s4 1966171168
    %v2903 = vunpack.c.0.s8 %v2902
    %v2904 = vlaneseq
    %v2905 = vshrl.u32 %v2904, 7
    %v2906 = vsub.s32 %v2903, %v2905
    %v2907 = vrot.slane %v2897, %v2906
    %v2909 = vunpack.c.l.s4 1966171168
    %v2910 = vunpack.c.0.s8 %v2909
    %v2911 = vlaneseq
    %v2912 = vshrl.u32 %v2911, 7
    %v2913 = vsub.s32 %v2910, %v2912
    %v2914 = vrot.slane %v2898, %v2913
    %v2915 = vcombine.low %v2907, %v2914
    %v2916 = vcombine.high %v2907, %v2914
    %v2918 = vunpack.c.l.s4 1966171168
    %v2919 = vunpack.c.0.s8 %v2918
    %v2920 = vlaneseq
    %v2921 = vshrl.u32 %v2920, 7
    %v2922 = vsub.s32 %v2919, %v2921
    %v2923 = vrot.slane %v2915, %v2922
    %v2925 = vunpack.c.l.s4 1966171168
    %v2926 = vunpack.c.0.s8 %v2925
    %v2927 = vlaneseq
    %v2928 = vshrl.u32 %v2927, 7
    %v2929 = vsub.s32 %v2926, %v2928
    %v2930 = vrot.slane %v2916, %v2929
    %v2931 = vld [vmem:[%s740] sm:$0xff]
    %v2932 = vld [vmem:[%s742] sm:$0xff]
    %v2933 = vlaneseq
    %v2934 = vshrl.u32 %v2933, 7
    %v2935 = vsub.s32 0, %v2934
    %v2936 = vrot.slane %v2923, %v2935
    %v2937 = vlaneseq
    %v2938 = vshrl.u32 %v2937, 7
    %v2939 = vsub.s32 1, %v2938
    %v2940 = vrot.slane %v2923, %v2939
    %v2941 = vlaneseq
    %v2942 = vshrl.u32 %v2941, 7
    %v2943 = vsub.s32 2, %v2942
    %v2944 = vrot.slane %v2923, %v2943
    %v2945 = vlaneseq
    %v2946 = vshrl.u32 %v2945, 7
    %v2947 = vsub.s32 3, %v2946
    %v2948 = vrot.slane %v2923, %v2947
    %v2949 = vlaneseq
    %v2950 = vshrl.u32 %v2949, 7
    %v2951 = vsub.s32 0, %v2950
    %v2952 = vrot.slane %v2930, %v2951
    %v2953 = vlaneseq
    %v2954 = vshrl.u32 %v2953, 7
    %v2955 = vsub.s32 1, %v2954
    %v2956 = vrot.slane %v2930, %v2955
    %v2957 = vlaneseq
    %v2958 = vshrl.u32 %v2957, 7
    %v2959 = vsub.s32 2, %v2958
    %v2960 = vrot.slane %v2930, %v2959
    %v2961 = vlaneseq
    %v2962 = vshrl.u32 %v2961, 7
    %v2963 = vsub.s32 3, %v2962
    %v2964 = vrot.slane %v2930, %v2963
    %2974 = vset.pattern.permute.xlu0 0
    %2975 = vperm.xlu0 %2974, %v2932
    %v2976 = vpop.permute.xlu0 %2975
    %v2978 = vmul.f32 %v2936, %v2976
    %v2979 = vmul.f32 %v2940, %v2976
    %v2980 = vmul.f32 %v2944, %v2976
    %v2981 = vmul.f32 %v2948, %v2976
    %v2982 = vmul.f32 %v2952, %v2976
    %v2983 = vmul.f32 %v2956, %v2976
    %v2984 = vmul.f32 %v2960, %v2976
    %v2985 = vmul.f32 %v2964, %v2976
    %2987 = vset.pattern.permute.xlu0 0
    %2988 = vperm.xlu0 %2987, %v2931
    %v2989 = vpop.permute.xlu0 %2988
    %v2991 = vadd.f32 %v2989, %v2978
    %v2992 = vadd.f32 %v2989, %v2979
    %v2993 = vadd.f32 %v2989, %v2980
    %v2994 = vadd.f32 %v2989, %v2981
    %v2995 = vadd.f32 %v2989, %v2982
    %v2996 = vadd.f32 %v2989, %v2983
    %v2997 = vadd.f32 %v2989, %v2984
    %v2998 = vadd.f32 %v2989, %v2985
    %v2999 = vmul.f32 %v2886, %v2991
    %v3000 = vmul.f32 %v2887, %v2992
    %v3001 = vmul.f32 %v2888, %v2993
    %v3002 = vmul.f32 %v2889, %v2994
    %v3003 = vmul.f32 %v2890, %v2995
    %v3004 = vmul.f32 %v2891, %v2996
    %v3005 = vmul.f32 %v2892, %v2997
    %v3006 = vmul.f32 %v2893, %v2998
    %v3007 = vld [vmem:[%s818 + $0x8] sm:$0xf]
    %v3008 = vunpack.c.0.s8 %v3007
    %v3009 = vunpack.c.1.s8 %v3007
    %v3010 = vcvt.s32.f32 %v3008
    %v3011 = vcvt.s32.f32 %v3009
    %v3015 = vunpack.c.l.s4 1966171168
    %v3016 = vunpack.c.0.s8 %v3015
    %v3017 = vlaneseq
    %v3018 = vshrl.u32 %v3017, 7
    %v3019 = vsub.s32 %v3016, %v3018
    %v3020 = vrot.slane %v3010, %v3019
    %v3022 = vunpack.c.l.s4 1966171168
    %v3023 = vunpack.c.0.s8 %v3022
    %v3024 = vlaneseq
    %v3025 = vshrl.u32 %v3024, 7
    %v3026 = vsub.s32 %v3023, %v3025
    %v3027 = vrot.slane %v3011, %v3026
    %v3028 = vcombine.low %v3020, %v3027
    %v3029 = vcombine.high %v3020, %v3027
    %v3031 = vunpack.c.l.s4 1966171168
    %v3032 = vunpack.c.0.s8 %v3031
    %v3033 = vlaneseq
    %v3034 = vshrl.u32 %v3033, 7
    %v3035 = vsub.s32 %v3032, %v3034
    %v3036 = vrot.slane %v3028, %v3035
    %v3038 = vunpack.c.l.s4 1966171168
    %v3039 = vunpack.c.0.s8 %v3038
    %v3040 = vlaneseq
    %v3041 = vshrl.u32 %v3040, 7
    %v3042 = vsub.s32 %v3039, %v3041
    %v3043 = vrot.slane %v3029, %v3042
    %v3044 = vld [vmem:[%s856] sm:$0xff]
    %v3045 = vld [vmem:[%s858] sm:$0xff]
    %v3046 = vlaneseq
    %v3047 = vshrl.u32 %v3046, 7
    %v3048 = vsub.s32 0, %v3047
    %v3049 = vrot.slane %v3036, %v3048
    %v3050 = vlaneseq
    %v3051 = vshrl.u32 %v3050, 7
    %v3052 = vsub.s32 1, %v3051
    %v3053 = vrot.slane %v3036, %v3052
    %v3054 = vlaneseq
    %v3055 = vshrl.u32 %v3054, 7
    %v3056 = vsub.s32 2, %v3055
    %v3057 = vrot.slane %v3036, %v3056
    %v3058 = vlaneseq
    %v3059 = vshrl.u32 %v3058, 7
    %v3060 = vsub.s32 3, %v3059
    %v3061 = vrot.slane %v3036, %v3060
    %v3062 = vlaneseq
    %v3063 = vshrl.u32 %v3062, 7
    %v3064 = vsub.s32 0, %v3063
    %v3065 = vrot.slane %v3043, %v3064
    %v3066 = vlaneseq
    %v3067 = vshrl.u32 %v3066, 7
    %v3068 = vsub.s32 1, %v3067
    %v3069 = vrot.slane %v3043, %v3068
    %v3070 = vlaneseq
    %v3071 = vshrl.u32 %v3070, 7
    %v3072 = vsub.s32 2, %v3071
    %v3073 = vrot.slane %v3043, %v3072
    %v3074 = vlaneseq
    %v3075 = vshrl.u32 %v3074, 7
    %v3076 = vsub.s32 3, %v3075
    %v3077 = vrot.slane %v3043, %v3076
    %3087 = vset.pattern.permute.xlu0 0
    %3088 = vperm.xlu0 %3087, %v3045
    %v3089 = vpop.permute.xlu0 %3088
    %v3091 = vmul.f32 %v3049, %v3089
    %v3092 = vmul.f32 %v3053, %v3089
    %v3093 = vmul.f32 %v3057, %v3089
    %v3094 = vmul.f32 %v3061, %v3089
    %v3095 = vmul.f32 %v3065, %v3089
    %v3096 = vmul.f32 %v3069, %v3089
    %v3097 = vmul.f32 %v3073, %v3089
    %v3098 = vmul.f32 %v3077, %v3089
    %3100 = vset.pattern.permute.xlu0 0
    %3101 = vperm.xlu0 %3100, %v3044
    %v3102 = vpop.permute.xlu0 %3101
    %v3104 = vadd.f32 %v3102, %v3091
    %v3105 = vadd.f32 %v3102, %v3092
    %v3106 = vadd.f32 %v3102, %v3093
    %v3107 = vadd.f32 %v3102, %v3094
    %v3108 = vadd.f32 %v3102, %v3095
    %v3109 = vadd.f32 %v3102, %v3096
    %v3110 = vadd.f32 %v3102, %v3097
    %v3111 = vadd.f32 %v3102, %v3098
    %v3112 = vmul.f32 %v2999, %v3104
    %v3113 = vmul.f32 %v3000, %v3105
    %v3114 = vmul.f32 %v3001, %v3106
    %v3115 = vmul.f32 %v3002, %v3107
    %v3116 = vmul.f32 %v3003, %v3108
    %v3117 = vmul.f32 %v3004, %v3109
    %v3118 = vmul.f32 %v3005, %v3110
    %v3119 = vmul.f32 %v3006, %v3111
    %v3120 = vld [vmem:[%s934 + $0x8] sm:$0xf]
    %v3121 = vunpack.c.0.s8 %v3120
    %v3122 = vunpack.c.1.s8 %v3120
    %v3123 = vcvt.s32.f32 %v3121
    %v3124 = vcvt.s32.f32 %v3122
    %v3128 = vunpack.c.l.s4 1966171168
    %v3129 = vunpack.c.0.s8 %v3128
    %v3130 = vlaneseq
    %v3131 = vshrl.u32 %v3130, 7
    %v3132 = vsub.s32 %v3129, %v3131
    %v3133 = vrot.slane %v3123, %v3132
    %v3135 = vunpack.c.l.s4 1966171168
    %v3136 = vunpack.c.0.s8 %v3135
    %v3137 = vlaneseq
    %v3138 = vshrl.u32 %v3137, 7
    %v3139 = vsub.s32 %v3136, %v3138
    %v3140 = vrot.slane %v3124, %v3139
    %v3141 = vcombine.low %v3133, %v3140
    %v3142 = vcombine.high %v3133, %v3140
    %v3144 = vunpack.c.l.s4 1966171168
    %v3145 = vunpack.c.0.s8 %v3144
    %v3146 = vlaneseq
    %v3147 = vshrl.u32 %v3146, 7
    %v3148 = vsub.s32 %v3145, %v3147
    %v3149 = vrot.slane %v3141, %v3148
    %v3151 = vunpack.c.l.s4 1966171168
    %v3152 = vunpack.c.0.s8 %v3151
    %v3153 = vlaneseq
    %v3154 = vshrl.u32 %v3153, 7
    %v3155 = vsub.s32 %v3152, %v3154
    %v3156 = vrot.slane %v3142, %v3155
    %v3157 = vld [vmem:[%s972] sm:$0xff]
    %v3158 = vld [vmem:[%s974] sm:$0xff]
    %v3159 = vlaneseq
    %v3160 = vshrl.u32 %v3159, 7
    %v3161 = vsub.s32 0, %v3160
    %v3162 = vrot.slane %v3149, %v3161
    %v3163 = vlaneseq
    %v3164 = vshrl.u32 %v3163, 7
    %v3165 = vsub.s32 1, %v3164
    %v3166 = vrot.slane %v3149, %v3165
    %v3167 = vlaneseq
    %v3168 = vshrl.u32 %v3167, 7
    %v3169 = vsub.s32 2, %v3168
    %v3170 = vrot.slane %v3149, %v3169
    %v3171 = vlaneseq
    %v3172 = vshrl.u32 %v3171, 7
    %v3173 = vsub.s32 3, %v3172
    %v3174 = vrot.slane %v3149, %v3173
    %v3175 = vlaneseq
    %v3176 = vshrl.u32 %v3175, 7
    %v3177 = vsub.s32 0, %v3176
    %v3178 = vrot.slane %v3156, %v3177
    %v3179 = vlaneseq
    %v3180 = vshrl.u32 %v3179, 7
    %v3181 = vsub.s32 1, %v3180
    %v3182 = vrot.slane %v3156, %v3181
    %v3183 = vlaneseq
    %v3184 = vshrl.u32 %v3183, 7
    %v3185 = vsub.s32 2, %v3184
    %v3186 = vrot.slane %v3156, %v3185
    %v3187 = vlaneseq
    %v3188 = vshrl.u32 %v3187, 7
    %v3189 = vsub.s32 3, %v3188
    %v3190 = vrot.slane %v3156, %v3189
    %3200 = vset.pattern.permute.xlu0 0
    %3201 = vperm.xlu0 %3200, %v3158
    %v3202 = vpop.permute.xlu0 %3201
    %v3204 = vmul.f32 %v3162, %v3202
    %v3205 = vmul.f32 %v3166, %v3202
    %v3206 = vmul.f32 %v3170, %v3202
    %v3207 = vmul.f32 %v3174, %v3202
    %v3208 = vmul.f32 %v3178, %v3202
    %v3209 = vmul.f32 %v3182, %v3202
    %v3210 = vmul.f32 %v3186, %v3202
    %v3211 = vmul.f32 %v3190, %v3202
    %3213 = vset.pattern.permute.xlu0 0
    %3214 = vperm.xlu0 %3213, %v3157
    %v3215 = vpop.permute.xlu0 %3214
    %v3217 = vadd.f32 %v3215, %v3204
    %v3218 = vadd.f32 %v3215, %v3205
    %v3219 = vadd.f32 %v3215, %v3206
    %v3220 = vadd.f32 %v3215, %v3207
    %v3221 = vadd.f32 %v3215, %v3208
    %v3222 = vadd.f32 %v3215, %v3209
    %v3223 = vadd.f32 %v3215, %v3210
    %v3224 = vadd.f32 %v3215, %v3211
    %v3225 = vmul.f32 %v3112, %v3217
    %v3226 = vmul.f32 %v3113, %v3218
    %v3227 = vmul.f32 %v3114, %v3219
    %v3228 = vmul.f32 %v3115, %v3220
    %v3229 = vmul.f32 %v3116, %v3221
    %v3230 = vmul.f32 %v3117, %v3222
    %v3231 = vmul.f32 %v3118, %v3223
    %v3232 = vmul.f32 %v3119, %v3224
    %v3233 = vsub.f32 0.5, %v3225
    %v3234 = vsub.f32 0.5, %v3226
    %v3235 = vsub.f32 0.5, %v3227
    %v3236 = vsub.f32 0.5, %v3228
    %v3237 = vsub.f32 0.5, %v3229
    %v3238 = vsub.f32 0.5, %v3230
    %v3239 = vsub.f32 0.5, %v3231
    %v3240 = vsub.f32 0.5, %v3232
    %v3241 = vmul.f32 %v3233, 10.0
    %v3242 = vmul.f32 %v3234, 10.0
    %v3243 = vmul.f32 %v3235, 10.0
    %v3244 = vmul.f32 %v3236, 10.0
    %v3245 = vmul.f32 %v3237, 10.0
    %v3246 = vmul.f32 %v3238, 10.0
    %v3247 = vmul.f32 %v3239, 10.0
    %v3248 = vmul.f32 %v3240, 10.0
    %v3249 = vmul.f32 %v3241, 1.442695
    %v3250 = vpow.pop %v3249
    %v3251 = vmul.f32 %v3242, 1.442695
    %v3252 = vpow.pop %v3251
    %v3253 = vmul.f32 %v3243, 1.442695
    %v3254 = vpow.pop %v3253
    %v3255 = vmul.f32 %v3244, 1.442695
    %v3256 = vpow.pop %v3255
    %v3257 = vmul.f32 %v3245, 1.442695
    %v3258 = vpow.pop %v3257
    %v3259 = vmul.f32 %v3246, 1.442695
    %v3260 = vpow.pop %v3259
    %v3261 = vmul.f32 %v3247, 1.442695
    %v3262 = vpow.pop %v3261
    %v3263 = vmul.f32 %v3248, 1.442695
    %v3264 = vpow.pop %v3263
    %v3265 = vadd.f32 %v3250, 1.0
    %v3266 = vadd.f32 %v3252, 1.0
    %v3267 = vadd.f32 %v3254, 1.0
    %v3268 = vadd.f32 %v3256, 1.0
    %v3269 = vadd.f32 %v3258, 1.0
    %v3270 = vadd.f32 %v3260, 1.0
    %v3271 = vadd.f32 %v3262, 1.0
    %v3272 = vadd.f32 %v3264, 1.0
    %v3273 = vrcp.pop %v3265
    %v3274 = vmul.f32 1.0, %v3273
    %v3275 = vrcp.pop %v3266
    %v3276 = vmul.f32 1.0, %v3275
    %v3277 = vrcp.pop %v3267
    %v3278 = vmul.f32 1.0, %v3277
    %v3279 = vrcp.pop %v3268
    %v3280 = vmul.f32 1.0, %v3279
    %v3281 = vrcp.pop %v3269
    %v3282 = vmul.f32 1.0, %v3281
    %v3283 = vrcp.pop %v3270
    %v3284 = vmul.f32 1.0, %v3283
    %v3285 = vrcp.pop %v3271
    %v3286 = vmul.f32 1.0, %v3285
    %v3287 = vrcp.pop %v3272
    %v3288 = vmul.f32 1.0, %v3287
    %v3289 = vld [vmem:[#allocation2] sm:$0x3]
    %v3290 = vadd.f32 %v3274, %v3276
    %v3291 = vadd.f32 %v3290, %v3278
    %v3292 = vadd.f32 %v3291, %v3280
    %3293 = vadd.xlane.f32.xlu0 %v3292
    %v3294 = vpop.xlane.xlu0 %3293
    %v3295 = vadd.f32 %v3282, %v3284
    %v3296 = vadd.f32 %v3295, %v3286
    %v3297 = vadd.f32 %v3296, %v3288
    %3298 = vadd.xlane.f32.xlu0 %v3297
    %v3299 = vpop.xlane.xlu0 %3298
    %v3302 = vlaneseq
    %v3303 = vshrl.u32 %v3302, 7
    %v3304 = vsub.s32 %v1120, %v3303
    %v3305 = vrot.slane %v3294, %v3304
    %v3306 = vlaneseq
    %v3307 = vshrl.u32 %v3306, 7
    %v3308 = vsub.s32 %v1120, %v3307
    %v3309 = vrot.slane %v3299, %v3308
    %v3310 = vsel %vm1129, %v3309, %v3305
    %v3312 = vadd.f32 %v3289, %v3310
    %3313 = vst.msk [vmem:[#allocation2] sm:$0x3] %vm15, %v3312
    %v3314 = vld [vmem:[%s0 + $0xc] sm:$0xf]
    %v3315 = vunpack.c.0.s8 %v3314
    %v3316 = vunpack.c.1.s8 %v3314
    %v3317 = vcvt.s32.f32 %v3315
    %v3318 = vcvt.s32.f32 %v3316
    %v3322 = vunpack.c.l.s4 1966171168
    %v3323 = vunpack.c.0.s8 %v3322
    %v3324 = vlaneseq
    %v3325 = vshrl.u32 %v3324, 7
    %v3326 = vsub.s32 %v3323, %v3325
    %v3327 = vrot.slane %v3317, %v3326
    %v3329 = vunpack.c.l.s4 1966171168
    %v3330 = vunpack.c.0.s8 %v3329
    %v3331 = vlaneseq
    %v3332 = vshrl.u32 %v3331, 7
    %v3333 = vsub.s32 %v3330, %v3332
    %v3334 = vrot.slane %v3318, %v3333
    %v3335 = vcombine.low %v3327, %v3334
    %v3336 = vcombine.high %v3327, %v3334
    %v3338 = vunpack.c.l.s4 1966171168
    %v3339 = vunpack.c.0.s8 %v3338
    %v3340 = vlaneseq
    %v3341 = vshrl.u32 %v3340, 7
    %v3342 = vsub.s32 %v3339, %v3341
    %v3343 = vrot.slane %v3335, %v3342
    %v3345 = vunpack.c.l.s4 1966171168
    %v3346 = vunpack.c.0.s8 %v3345
    %v3347 = vlaneseq
    %v3348 = vshrl.u32 %v3347, 7
    %v3349 = vsub.s32 %v3346, %v3348
    %v3350 = vrot.slane %v3336, %v3349
    %v3351 = vld [vmem:[%s1] sm:$0xff]
    %v3352 = vld [vmem:[%s2] sm:$0xff]
    %v3353 = vlaneseq
    %v3354 = vshrl.u32 %v3353, 7
    %v3355 = vsub.s32 0, %v3354
    %v3356 = vrot.slane %v3343, %v3355
    %v3357 = vlaneseq
    %v3358 = vshrl.u32 %v3357, 7
    %v3359 = vsub.s32 1, %v3358
    %v3360 = vrot.slane %v3343, %v3359
    %v3361 = vlaneseq
    %v3362 = vshrl.u32 %v3361, 7
    %v3363 = vsub.s32 2, %v3362
    %v3364 = vrot.slane %v3343, %v3363
    %v3365 = vlaneseq
    %v3366 = vshrl.u32 %v3365, 7
    %v3367 = vsub.s32 3, %v3366
    %v3368 = vrot.slane %v3343, %v3367
    %v3369 = vlaneseq
    %v3370 = vshrl.u32 %v3369, 7
    %v3371 = vsub.s32 0, %v3370
    %v3372 = vrot.slane %v3350, %v3371
    %v3373 = vlaneseq
    %v3374 = vshrl.u32 %v3373, 7
    %v3375 = vsub.s32 1, %v3374
    %v3376 = vrot.slane %v3350, %v3375
    %v3377 = vlaneseq
    %v3378 = vshrl.u32 %v3377, 7
    %v3379 = vsub.s32 2, %v3378
    %v3380 = vrot.slane %v3350, %v3379
    %v3381 = vlaneseq
    %v3382 = vshrl.u32 %v3381, 7
    %v3383 = vsub.s32 3, %v3382
    %v3384 = vrot.slane %v3350, %v3383
    %3394 = vset.pattern.permute.xlu0 0
    %3395 = vperm.xlu0 %3394, %v3352
    %v3396 = vpop.permute.xlu0 %3395
    %v3398 = vmul.f32 %v3356, %v3396
    %v3399 = vmul.f32 %v3360, %v3396
    %v3400 = vmul.f32 %v3364, %v3396
    %v3401 = vmul.f32 %v3368, %v3396
    %v3402 = vmul.f32 %v3372, %v3396
    %v3403 = vmul.f32 %v3376, %v3396
    %v3404 = vmul.f32 %v3380, %v3396
    %v3405 = vmul.f32 %v3384, %v3396
    %3407 = vset.pattern.permute.xlu0 0
    %3408 = vperm.xlu0 %3407, %v3351
    %v3409 = vpop.permute.xlu0 %3408
    %v3411 = vadd.f32 %v3409, %v3398
    %v3412 = vadd.f32 %v3409, %v3399
    %v3413 = vadd.f32 %v3409, %v3400
    %v3414 = vadd.f32 %v3409, %v3401
    %v3415 = vadd.f32 %v3409, %v3402
    %v3416 = vadd.f32 %v3409, %v3403
    %v3417 = vadd.f32 %v3409, %v3404
    %v3418 = vadd.f32 %v3409, %v3405
    %v3419 = vld [vmem:[%s122 + $0xc] sm:$0xf]
    %v3420 = vunpack.c.0.s8 %v3419
    %v3421 = vunpack.c.1.s8 %v3419
    %v3422 = vcvt.s32.f32 %v3420
    %v3423 = vcvt.s32.f32 %v3421
    %v3427 = vunpack.c.l.s4 1966171168
    %v3428 = vunpack.c.0.s8 %v3427
    %v3429 = vlaneseq
    %v3430 = vshrl.u32 %v3429, 7
    %v3431 = vsub.s32 %v3428, %v3430
    %v3432 = vrot.slane %v3422, %v3431
    %v3434 = vunpack.c.l.s4 1966171168
    %v3435 = vunpack.c.0.s8 %v3434
    %v3436 = vlaneseq
    %v3437 = vshrl.u32 %v3436, 7
    %v3438 = vsub.s32 %v3435, %v3437
    %v3439 = vrot.slane %v3423, %v3438
    %v3440 = vcombine.low %v3432, %v3439
    %v3441 = vcombine.high %v3432, %v3439
    %v3443 = vunpack.c.l.s4 1966171168
    %v3444 = vunpack.c.0.s8 %v3443
    %v3445 = vlaneseq
    %v3446 = vshrl.u32 %v3445, 7
    %v3447 = vsub.s32 %v3444, %v3446
    %v3448 = vrot.slane %v3440, %v3447
    %v3450 = vunpack.c.l.s4 1966171168
    %v3451 = vunpack.c.0.s8 %v3450
    %v3452 = vlaneseq
    %v3453 = vshrl.u32 %v3452, 7
    %v3454 = vsub.s32 %v3451, %v3453
    %v3455 = vrot.slane %v3441, %v3454
    %v3456 = vld [vmem:[%s160] sm:$0xff]
    %v3457 = vld [vmem:[%s162] sm:$0xff]
    %v3458 = vlaneseq
    %v3459 = vshrl.u32 %v3458, 7
    %v3460 = vsub.s32 0, %v3459
    %v3461 = vrot.slane %v3448, %v3460
    %v3462 = vlaneseq
    %v3463 = vshrl.u32 %v3462, 7
    %v3464 = vsub.s32 1, %v3463
    %v3465 = vrot.slane %v3448, %v3464
    %v3466 = vlaneseq
    %v3467 = vshrl.u32 %v3466, 7
    %v3468 = vsub.s32 2, %v3467
    %v3469 = vrot.slane %v3448, %v3468
    %v3470 = vlaneseq
    %v3471 = vshrl.u32 %v3470, 7
    %v3472 = vsub.s32 3, %v3471
    %v3473 = vrot.slane %v3448, %v3472
    %v3474 = vlaneseq
    %v3475 = vshrl.u32 %v3474, 7
    %v3476 = vsub.s32 0, %v3475
    %v3477 = vrot.slane %v3455, %v3476
    %v3478 = vlaneseq
    %v3479 = vshrl.u32 %v3478, 7
    %v3480 = vsub.s32 1, %v3479
    %v3481 = vrot.slane %v3455, %v3480
    %v3482 = vlaneseq
    %v3483 = vshrl.u32 %v3482, 7
    %v3484 = vsub.s32 2, %v3483
    %v3485 = vrot.slane %v3455, %v3484
    %v3486 = vlaneseq
    %v3487 = vshrl.u32 %v3486, 7
    %v3488 = vsub.s32 3, %v3487
    %v3489 = vrot.slane %v3455, %v3488
    %3499 = vset.pattern.permute.xlu0 0
    %3500 = vperm.xlu0 %3499, %v3457
    %v3501 = vpop.permute.xlu0 %3500
    %v3503 = vmul.f32 %v3461, %v3501
    %v3504 = vmul.f32 %v3465, %v3501
    %v3505 = vmul.f32 %v3469, %v3501
    %v3506 = vmul.f32 %v3473, %v3501
    %v3507 = vmul.f32 %v3477, %v3501
    %v3508 = vmul.f32 %v3481, %v3501
    %v3509 = vmul.f32 %v3485, %v3501
    %v3510 = vmul.f32 %v3489, %v3501
    %3512 = vset.pattern.permute.xlu0 0
    %3513 = vperm.xlu0 %3512, %v3456
    %v3514 = vpop.permute.xlu0 %3513
    %v3516 = vadd.f32 %v3514, %v3503
    %v3517 = vadd.f32 %v3514, %v3504
    %v3518 = vadd.f32 %v3514, %v3505
    %v3519 = vadd.f32 %v3514, %v3506
    %v3520 = vadd.f32 %v3514, %v3507
    %v3521 = vadd.f32 %v3514, %v3508
    %v3522 = vadd.f32 %v3514, %v3509
    %v3523 = vadd.f32 %v3514, %v3510
    %v3524 = vmul.f32 %v3411, %v3516
    %v3525 = vmul.f32 %v3412, %v3517
    %v3526 = vmul.f32 %v3413, %v3518
    %v3527 = vmul.f32 %v3414, %v3519
    %v3528 = vmul.f32 %v3415, %v3520
    %v3529 = vmul.f32 %v3416, %v3521
    %v3530 = vmul.f32 %v3417, %v3522
    %v3531 = vmul.f32 %v3418, %v3523
    %v3532 = vld [vmem:[%s238 + $0xc] sm:$0xf]
    %v3533 = vunpack.c.0.s8 %v3532
    %v3534 = vunpack.c.1.s8 %v3532
    %v3535 = vcvt.s32.f32 %v3533
    %v3536 = vcvt.s32.f32 %v3534
    %v3540 = vunpack.c.l.s4 1966171168
    %v3541 = vunpack.c.0.s8 %v3540
    %v3542 = vlaneseq
    %v3543 = vshrl.u32 %v3542, 7
    %v3544 = vsub.s32 %v3541, %v3543
    %v3545 = vrot.slane %v3535, %v3544
    %v3547 = vunpack.c.l.s4 1966171168
    %v3548 = vunpack.c.0.s8 %v3547
    %v3549 = vlaneseq
    %v3550 = vshrl.u32 %v3549, 7
    %v3551 = vsub.s32 %v3548, %v3550
    %v3552 = vrot.slane %v3536, %v3551
    %v3553 = vcombine.low %v3545, %v3552
    %v3554 = vcombine.high %v3545, %v3552
    %v3556 = vunpack.c.l.s4 1966171168
    %v3557 = vunpack.c.0.s8 %v3556
    %v3558 = vlaneseq
    %v3559 = vshrl.u32 %v3558, 7
    %v3560 = vsub.s32 %v3557, %v3559
    %v3561 = vrot.slane %v3553, %v3560
    %v3563 = vunpack.c.l.s4 1966171168
    %v3564 = vunpack.c.0.s8 %v3563
    %v3565 = vlaneseq
    %v3566 = vshrl.u32 %v3565, 7
    %v3567 = vsub.s32 %v3564, %v3566
    %v3568 = vrot.slane %v3554, %v3567
    %v3569 = vld [vmem:[%s276] sm:$0xff]
    %v3570 = vld [vmem:[%s278] sm:$0xff]
    %v3571 = vlaneseq
    %v3572 = vshrl.u32 %v3571, 7
    %v3573 = vsub.s32 0, %v3572
    %v3574 = vrot.slane %v3561, %v3573
    %v3575 = vlaneseq
    %v3576 = vshrl.u32 %v3575, 7
    %v3577 = vsub.s32 1, %v3576
    %v3578 = vrot.slane %v3561, %v3577
    %v3579 = vlaneseq
    %v3580 = vshrl.u32 %v3579, 7
    %v3581 = vsub.s32 2, %v3580
    %v3582 = vrot.slane %v3561, %v3581
    %v3583 = vlaneseq
    %v3584 = vshrl.u32 %v3583, 7
    %v3585 = vsub.s32 3, %v3584
    %v3586 = vrot.slane %v3561, %v3585
    %v3587 = vlaneseq
    %v3588 = vshrl.u32 %v3587, 7
    %v3589 = vsub.s32 0, %v3588
    %v3590 = vrot.slane %v3568, %v3589
    %v3591 = vlaneseq
    %v3592 = vshrl.u32 %v3591, 7
    %v3593 = vsub.s32 1, %v3592
    %v3594 = vrot.slane %v3568, %v3593
    %v3595 = vlaneseq
    %v3596 = vshrl.u32 %v3595, 7
    %v3597 = vsub.s32 2, %v3596
    %v3598 = vrot.slane %v3568, %v3597
    %v3599 = vlaneseq
    %v3600 = vshrl.u32 %v3599, 7
    %v3601 = vsub.s32 3, %v3600
    %v3602 = vrot.slane %v3568, %v3601
    %3612 = vset.pattern.permute.xlu0 0
    %3613 = vperm.xlu0 %3612, %v3570
    %v3614 = vpop.permute.xlu0 %3613
    %v3616 = vmul.f32 %v3574, %v3614
    %v3617 = vmul.f32 %v3578, %v3614
    %v3618 = vmul.f32 %v3582, %v3614
    %v3619 = vmul.f32 %v3586, %v3614
    %v3620 = vmul.f32 %v3590, %v3614
    %v3621 = vmul.f32 %v3594, %v3614
    %v3622 = vmul.f32 %v3598, %v3614
    %v3623 = vmul.f32 %v3602, %v3614
    %3625 = vset.pattern.permute.xlu0 0
    %3626 = vperm.xlu0 %3625, %v3569
    %v3627 = vpop.permute.xlu0 %3626
    %v3629 = vadd.f32 %v3627, %v3616
    %v3630 = vadd.f32 %v3627, %v3617
    %v3631 = vadd.f32 %v3627, %v3618
    %v3632 = vadd.f32 %v3627, %v3619
    %v3633 = vadd.f32 %v3627, %v3620
    %v3634 = vadd.f32 %v3627, %v3621
    %v3635 = vadd.f32 %v3627, %v3622
    %v3636 = vadd.f32 %v3627, %v3623
    %v3637 = vmul.f32 %v3524, %v3629
    %v3638 = vmul.f32 %v3525, %v3630
    %v3639 = vmul.f32 %v3526, %v3631
    %v3640 = vmul.f32 %v3527, %v3632
    %v3641 = vmul.f32 %v3528, %v3633
    %v3642 = vmul.f32 %v3529, %v3634
    %v3643 = vmul.f32 %v3530, %v3635
    %v3644 = vmul.f32 %v3531, %v3636
    %v3645 = vld [vmem:[%s354 + $0xc] sm:$0xf]
    %v3646 = vunpack.c.0.s8 %v3645
    %v3647 = vunpack.c.1.s8 %v3645
    %v3648 = vcvt.s32.f32 %v3646
    %v3649 = vcvt.s32.f32 %v3647
    %v3653 = vunpack.c.l.s4 1966171168
    %v3654 = vunpack.c.0.s8 %v3653
    %v3655 = vlaneseq
    %v3656 = vshrl.u32 %v3655, 7
    %v3657 = vsub.s32 %v3654, %v3656
    %v3658 = vrot.slane %v3648, %v3657
    %v3660 = vunpack.c.l.s4 1966171168
    %v3661 = vunpack.c.0.s8 %v3660
    %v3662 = vlaneseq
    %v3663 = vshrl.u32 %v3662, 7
    %v3664 = vsub.s32 %v3661, %v3663
    %v3665 = vrot.slane %v3649, %v3664
    %v3666 = vcombine.low %v3658, %v3665
    %v3667 = vcombine.high %v3658, %v3665
    %v3669 = vunpack.c.l.s4 1966171168
    %v3670 = vunpack.c.0.s8 %v3669
    %v3671 = vlaneseq
    %v3672 = vshrl.u32 %v3671, 7
    %v3673 = vsub.s32 %v3670, %v3672
    %v3674 = vrot.slane %v3666, %v3673
    %v3676 = vunpack.c.l.s4 1966171168
    %v3677 = vunpack.c.0.s8 %v3676
    %v3678 = vlaneseq
    %v3679 = vshrl.u32 %v3678, 7
    %v3680 = vsub.s32 %v3677, %v3679
    %v3681 = vrot.slane %v3667, %v3680
    %v3682 = vld [vmem:[%s392] sm:$0xff]
    %v3683 = vld [vmem:[%s394] sm:$0xff]
    %v3684 = vlaneseq
    %v3685 = vshrl.u32 %v3684, 7
    %v3686 = vsub.s32 0, %v3685
    %v3687 = vrot.slane %v3674, %v3686
    %v3688 = vlaneseq
    %v3689 = vshrl.u32 %v3688, 7
    %v3690 = vsub.s32 1, %v3689
    %v3691 = vrot.slane %v3674, %v3690
    %v3692 = vlaneseq
    %v3693 = vshrl.u32 %v3692, 7
    %v3694 = vsub.s32 2, %v3693
    %v3695 = vrot.slane %v3674, %v3694
    %v3696 = vlaneseq
    %v3697 = vshrl.u32 %v3696, 7
    %v3698 = vsub.s32 3, %v3697
    %v3699 = vrot.slane %v3674, %v3698
    %v3700 = vlaneseq
    %v3701 = vshrl.u32 %v3700, 7
    %v3702 = vsub.s32 0, %v3701
    %v3703 = vrot.slane %v3681, %v3702
    %v3704 = vlaneseq
    %v3705 = vshrl.u32 %v3704, 7
    %v3706 = vsub.s32 1, %v3705
    %v3707 = vrot.slane %v3681, %v3706
    %v3708 = vlaneseq
    %v3709 = vshrl.u32 %v3708, 7
    %v3710 = vsub.s32 2, %v3709
    %v3711 = vrot.slane %v3681, %v3710
    %v3712 = vlaneseq
    %v3713 = vshrl.u32 %v3712, 7
    %v3714 = vsub.s32 3, %v3713
    %v3715 = vrot.slane %v3681, %v3714
    %3725 = vset.pattern.permute.xlu0 0
    %3726 = vperm.xlu0 %3725, %v3683
    %v3727 = vpop.permute.xlu0 %3726
    %v3729 = vmul.f32 %v3687, %v3727
    %v3730 = vmul.f32 %v3691, %v3727
    %v3731 = vmul.f32 %v3695, %v3727
    %v3732 = vmul.f32 %v3699, %v3727
    %v3733 = vmul.f32 %v3703, %v3727
    %v3734 = vmul.f32 %v3707, %v3727
    %v3735 = vmul.f32 %v3711, %v3727
    %v3736 = vmul.f32 %v3715, %v3727
    %3738 = vset.pattern.permute.xlu0 0
    %3739 = vperm.xlu0 %3738, %v3682
    %v3740 = vpop.permute.xlu0 %3739
    %v3742 = vadd.f32 %v3740, %v3729
    %v3743 = vadd.f32 %v3740, %v3730
    %v3744 = vadd.f32 %v3740, %v3731
    %v3745 = vadd.f32 %v3740, %v3732
    %v3746 = vadd.f32 %v3740, %v3733
    %v3747 = vadd.f32 %v3740, %v3734
    %v3748 = vadd.f32 %v3740, %v3735
    %v3749 = vadd.f32 %v3740, %v3736
    %v3750 = vmul.f32 %v3637, %v3742
    %v3751 = vmul.f32 %v3638, %v3743
    %v3752 = vmul.f32 %v3639, %v3744
    %v3753 = vmul.f32 %v3640, %v3745
    %v3754 = vmul.f32 %v3641, %v3746
    %v3755 = vmul.f32 %v3642, %v3747
    %v3756 = vmul.f32 %v3643, %v3748
    %v3757 = vmul.f32 %v3644, %v3749
    %v3758 = vld [vmem:[%s470 + $0xc] sm:$0xf]
    %v3759 = vunpack.c.0.s8 %v3758
    %v3760 = vunpack.c.1.s8 %v3758
    %v3761 = vcvt.s32.f32 %v3759
    %v3762 = vcvt.s32.f32 %v3760
    %v3766 = vunpack.c.l.s4 1966171168
    %v3767 = vunpack.c.0.s8 %v3766
    %v3768 = vlaneseq
    %v3769 = vshrl.u32 %v3768, 7
    %v3770 = vsub.s32 %v3767, %v3769
    %v3771 = vrot.slane %v3761, %v3770
    %v3773 = vunpack.c.l.s4 1966171168
    %v3774 = vunpack.c.0.s8 %v3773
    %v3775 = vlaneseq
    %v3776 = vshrl.u32 %v3775, 7
    %v3777 = vsub.s32 %v3774, %v3776
    %v3778 = vrot.slane %v3762, %v3777
    %v3779 = vcombine.low %v3771, %v3778
    %v3780 = vcombine.high %v3771, %v3778
    %v3782 = vunpack.c.l.s4 1966171168
    %v3783 = vunpack.c.0.s8 %v3782
    %v3784 = vlaneseq
    %v3785 = vshrl.u32 %v3784, 7
    %v3786 = vsub.s32 %v3783, %v3785
    %v3787 = vrot.slane %v3779, %v3786
    %v3789 = vunpack.c.l.s4 1966171168
    %v3790 = vunpack.c.0.s8 %v3789
    %v3791 = vlaneseq
    %v3792 = vshrl.u32 %v3791, 7
    %v3793 = vsub.s32 %v3790, %v3792
    %v3794 = vrot.slane %v3780, %v3793
    %v3795 = vld [vmem:[%s508] sm:$0xff]
    %v3796 = vld [vmem:[%s510] sm:$0xff]
    %v3797 = vlaneseq
    %v3798 = vshrl.u32 %v3797, 7
    %v3799 = vsub.s32 0, %v3798
    %v3800 = vrot.slane %v3787, %v3799
    %v3801 = vlaneseq
    %v3802 = vshrl.u32 %v3801, 7
    %v3803 = vsub.s32 1, %v3802
    %v3804 = vrot.slane %v3787, %v3803
    %v3805 = vlaneseq
    %v3806 = vshrl.u32 %v3805, 7
    %v3807 = vsub.s32 2, %v3806
    %v3808 = vrot.slane %v3787, %v3807
    %v3809 = vlaneseq
    %v3810 = vshrl.u32 %v3809, 7
    %v3811 = vsub.s32 3, %v3810
    %v3812 = vrot.slane %v3787, %v3811
    %v3813 = vlaneseq
    %v3814 = vshrl.u32 %v3813, 7
    %v3815 = vsub.s32 0, %v3814
    %v3816 = vrot.slane %v3794, %v3815
    %v3817 = vlaneseq
    %v3818 = vshrl.u32 %v3817, 7
    %v3819 = vsub.s32 1, %v3818
    %v3820 = vrot.slane %v3794, %v3819
    %v3821 = vlaneseq
    %v3822 = vshrl.u32 %v3821, 7
    %v3823 = vsub.s32 2, %v3822
    %v3824 = vrot.slane %v3794, %v3823
    %v3825 = vlaneseq
    %v3826 = vshrl.u32 %v3825, 7
    %v3827 = vsub.s32 3, %v3826
    %v3828 = vrot.slane %v3794, %v3827
    %3838 = vset.pattern.permute.xlu0 0
    %3839 = vperm.xlu0 %3838, %v3796
    %v3840 = vpop.permute.xlu0 %3839
    %v3842 = vmul.f32 %v3800, %v3840
    %v3843 = vmul.f32 %v3804, %v3840
    %v3844 = vmul.f32 %v3808, %v3840
    %v3845 = vmul.f32 %v3812, %v3840
    %v3846 = vmul.f32 %v3816, %v3840
    %v3847 = vmul.f32 %v3820, %v3840
    %v3848 = vmul.f32 %v3824, %v3840
    %v3849 = vmul.f32 %v3828, %v3840
    %3851 = vset.pattern.permute.xlu0 0
    %3852 = vperm.xlu0 %3851, %v3795
    %v3853 = vpop.permute.xlu0 %3852
    %v3855 = vadd.f32 %v3853, %v3842
    %v3856 = vadd.f32 %v3853, %v3843
    %v3857 = vadd.f32 %v3853, %v3844
    %v3858 = vadd.f32 %v3853, %v3845
    %v3859 = vadd.f32 %v3853, %v3846
    %v3860 = vadd.f32 %v3853, %v3847
    %v3861 = vadd.f32 %v3853, %v3848
    %v3862 = vadd.f32 %v3853, %v3849
    %v3863 = vmul.f32 %v3750, %v3855
    %v3864 = vmul.f32 %v3751, %v3856
    %v3865 = vmul.f32 %v3752, %v3857
    %v3866 = vmul.f32 %v3753, %v3858
    %v3867 = vmul.f32 %v3754, %v3859
    %v3868 = vmul.f32 %v3755, %v3860
    %v3869 = vmul.f32 %v3756, %v3861
    %v3870 = vmul.f32 %v3757, %v3862
    %v3871 = vld [vmem:[%s586 + $0xc] sm:$0xf]
    %v3872 = vunpack.c.0.s8 %v3871
    %v3873 = vunpack.c.1.s8 %v3871
    %v3874 = vcvt.s32.f32 %v3872
    %v3875 = vcvt.s32.f32 %v3873
    %v3879 = vunpack.c.l.s4 1966171168
    %v3880 = vunpack.c.0.s8 %v3879
    %v3881 = vlaneseq
    %v3882 = vshrl.u32 %v3881, 7
    %v3883 = vsub.s32 %v3880, %v3882
    %v3884 = vrot.slane %v3874, %v3883
    %v3886 = vunpack.c.l.s4 1966171168
    %v3887 = vunpack.c.0.s8 %v3886
    %v3888 = vlaneseq
    %v3889 = vshrl.u32 %v3888, 7
    %v3890 = vsub.s32 %v3887, %v3889
    %v3891 = vrot.slane %v3875, %v3890
    %v3892 = vcombine.low %v3884, %v3891
    %v3893 = vcombine.high %v3884, %v3891
    %v3895 = vunpack.c.l.s4 1966171168
    %v3896 = vunpack.c.0.s8 %v3895
    %v3897 = vlaneseq
    %v3898 = vshrl.u32 %v3897, 7
    %v3899 = vsub.s32 %v3896, %v3898
    %v3900 = vrot.slane %v3892, %v3899
    %v3902 = vunpack.c.l.s4 1966171168
    %v3903 = vunpack.c.0.s8 %v3902
    %v3904 = vlaneseq
    %v3905 = vshrl.u32 %v3904, 7
    %v3906 = vsub.s32 %v3903, %v3905
    %v3907 = vrot.slane %v3893, %v3906
    %v3908 = vld [vmem:[%s624] sm:$0xff]
    %v3909 = vld [vmem:[%s626] sm:$0xff]
    %v3910 = vlaneseq
    %v3911 = vshrl.u32 %v3910, 7
    %v3912 = vsub.s32 0, %v3911
    %v3913 = vrot.slane %v3900, %v3912
    %v3914 = vlaneseq
    %v3915 = vshrl.u32 %v3914, 7
    %v3916 = vsub.s32 1, %v3915
    %v3917 = vrot.slane %v3900, %v3916
    %v3918 = vlaneseq
    %v3919 = vshrl.u32 %v3918, 7
    %v3920 = vsub.s32 2, %v3919
    %v3921 = vrot.slane %v3900, %v3920
    %v3922 = vlaneseq
    %v3923 = vshrl.u32 %v3922, 7
    %v3924 = vsub.s32 3, %v3923
    %v3925 = vrot.slane %v3900, %v3924
    %v3926 = vlaneseq
    %v3927 = vshrl.u32 %v3926, 7
    %v3928 = vsub.s32 0, %v3927
    %v3929 = vrot.slane %v3907, %v3928
    %v3930 = vlaneseq
    %v3931 = vshrl.u32 %v3930, 7
    %v3932 = vsub.s32 1, %v3931
    %v3933 = vrot.slane %v3907, %v3932
    %v3934 = vlaneseq
    %v3935 = vshrl.u32 %v3934, 7
    %v3936 = vsub.s32 2, %v3935
    %v3937 = vrot.slane %v3907, %v3936
    %v3938 = vlaneseq
    %v3939 = vshrl.u32 %v3938, 7
    %v3940 = vsub.s32 3, %v3939
    %v3941 = vrot.slane %v3907, %v3940
    %3951 = vset.pattern.permute.xlu0 0
    %3952 = vperm.xlu0 %3951, %v3909
    %v3953 = vpop.permute.xlu0 %3952
    %v3955 = vmul.f32 %v3913, %v3953
    %v3956 = vmul.f32 %v3917, %v3953
    %v3957 = vmul.f32 %v3921, %v3953
    %v3958 = vmul.f32 %v3925, %v3953
    %v3959 = vmul.f32 %v3929, %v3953
    %v3960 = vmul.f32 %v3933, %v3953
    %v3961 = vmul.f32 %v3937, %v3953
    %v3962 = vmul.f32 %v3941, %v3953
    %3964 = vset.pattern.permute.xlu0 0
    %3965 = vperm.xlu0 %3964, %v3908
    %v3966 = vpop.permute.xlu0 %3965
    %v3968 = vadd.f32 %v3966, %v3955
    %v3969 = vadd.f32 %v3966, %v3956
    %v3970 = vadd.f32 %v3966, %v3957
    %v3971 = vadd.f32 %v3966, %v3958
    %v3972 = vadd.f32 %v3966, %v3959
    %v3973 = vadd.f32 %v3966, %v3960
    %v3974 = vadd.f32 %v3966, %v3961
    %v3975 = vadd.f32 %v3966, %v3962
    %v3976 = vmul.f32 %v3863, %v3968
    %v3977 = vmul.f32 %v3864, %v3969
    %v3978 = vmul.f32 %v3865, %v3970
    %v3979 = vmul.f32 %v3866, %v3971
    %v3980 = vmul.f32 %v3867, %v3972
    %v3981 = vmul.f32 %v3868, %v3973
    %v3982 = vmul.f32 %v3869, %v3974
    %v3983 = vmul.f32 %v3870, %v3975
    %v3984 = vld [vmem:[%s702 + $0xc] sm:$0xf]
    %v3985 = vunpack.c.0.s8 %v3984
    %v3986 = vunpack.c.1.s8 %v3984
    %v3987 = vcvt.s32.f32 %v3985
    %v3988 = vcvt.s32.f32 %v3986
    %v3992 = vunpack.c.l.s4 1966171168
    %v3993 = vunpack.c.0.s8 %v3992
    %v3994 = vlaneseq
    %v3995 = vshrl.u32 %v3994, 7
    %v3996 = vsub.s32 %v3993, %v3995
    %v3997 = vrot.slane %v3987, %v3996
    %v3999 = vunpack.c.l.s4 1966171168
    %v4000 = vunpack.c.0.s8 %v3999
    %v4001 = vlaneseq
    %v4002 = vshrl.u32 %v4001, 7
    %v4003 = vsub.s32 %v4000, %v4002
    %v4004 = vrot.slane %v3988, %v4003
    %v4005 = vcombine.low %v3997, %v4004
    %v4006 = vcombine.high %v3997, %v4004
    %v4008 = vunpack.c.l.s4 1966171168
    %v4009 = vunpack.c.0.s8 %v4008
    %v4010 = vlaneseq
    %v4011 = vshrl.u32 %v4010, 7
    %v4012 = vsub.s32 %v4009, %v4011
    %v4013 = vrot.slane %v4005, %v4012
    %v4015 = vunpack.c.l.s4 1966171168
    %v4016 = vunpack.c.0.s8 %v4015
    %v4017 = vlaneseq
    %v4018 = vshrl.u32 %v4017, 7
    %v4019 = vsub.s32 %v4016, %v4018
    %v4020 = vrot.slane %v4006, %v4019
    %v4021 = vld [vmem:[%s740] sm:$0xff]
    %v4022 = vld [vmem:[%s742] sm:$0xff]
    %v4023 = vlaneseq
    %v4024 = vshrl.u32 %v4023, 7
    %v4025 = vsub.s32 0, %v4024
    %v4026 = vrot.slane %v4013, %v4025
    %v4027 = vlaneseq
    %v4028 = vshrl.u32 %v4027, 7
    %v4029 = vsub.s32 1, %v4028
    %v4030 = vrot.slane %v4013, %v4029
    %v4031 = vlaneseq
    %v4032 = vshrl.u32 %v4031, 7
    %v4033 = vsub.s32 2, %v4032
    %v4034 = vrot.slane %v4013, %v4033
    %v4035 = vlaneseq
    %v4036 = vshrl.u32 %v4035, 7
    %v4037 = vsub.s32 3, %v4036
    %v4038 = vrot.slane %v4013, %v4037
    %v4039 = vlaneseq
    %v4040 = vshrl.u32 %v4039, 7
    %v4041 = vsub.s32 0, %v4040
    %v4042 = vrot.slane %v4020, %v4041
    %v4043 = vlaneseq
    %v4044 = vshrl.u32 %v4043, 7
    %v4045 = vsub.s32 1, %v4044
    %v4046 = vrot.slane %v4020, %v4045
    %v4047 = vlaneseq
    %v4048 = vshrl.u32 %v4047, 7
    %v4049 = vsub.s32 2, %v4048
    %v4050 = vrot.slane %v4020, %v4049
    %v4051 = vlaneseq
    %v4052 = vshrl.u32 %v4051, 7
    %v4053 = vsub.s32 3, %v4052
    %v4054 = vrot.slane %v4020, %v4053
    %4064 = vset.pattern.permute.xlu0 0
    %4065 = vperm.xlu0 %4064, %v4022
    %v4066 = vpop.permute.xlu0 %4065
    %v4068 = vmul.f32 %v4026, %v4066
    %v4069 = vmul.f32 %v4030, %v4066
    %v4070 = vmul.f32 %v4034, %v4066
    %v4071 = vmul.f32 %v4038, %v4066
    %v4072 = vmul.f32 %v4042, %v4066
    %v4073 = vmul.f32 %v4046, %v4066
    %v4074 = vmul.f32 %v4050, %v4066
    %v4075 = vmul.f32 %v4054, %v4066
    %4077 = vset.pattern.permute.xlu0 0
    %4078 = vperm.xlu0 %4077, %v4021
    %v4079 = vpop.permute.xlu0 %4078
    %v4081 = vadd.f32 %v4079, %v4068
    %v4082 = vadd.f32 %v4079, %v4069
    %v4083 = vadd.f32 %v4079, %v4070
    %v4084 = vadd.f32 %v4079, %v4071
    %v4085 = vadd.f32 %v4079, %v4072
    %v4086 = vadd.f32 %v4079, %v4073
    %v4087 = vadd.f32 %v4079, %v4074
    %v4088 = vadd.f32 %v4079, %v4075
    %v4089 = vmul.f32 %v3976, %v4081
    %v4090 = vmul.f32 %v3977, %v4082
    %v4091 = vmul.f32 %v3978, %v4083
    %v4092 = vmul.f32 %v3979, %v4084
    %v4093 = vmul.f32 %v3980, %v4085
    %v4094 = vmul.f32 %v3981, %v4086
    %v4095 = vmul.f32 %v3982, %v4087
    %v4096 = vmul.f32 %v3983, %v4088
    %v4097 = vld [vmem:[%s818 + $0xc] sm:$0xf]
    %v4098 = vunpack.c.0.s8 %v4097
    %v4099 = vunpack.c.1.s8 %v4097
    %v4100 = vcvt.s32.f32 %v4098
    %v4101 = vcvt.s32.f32 %v4099
    %v4105 = vunpack.c.l.s4 1966171168
    %v4106 = vunpack.c.0.s8 %v4105
    %v4107 = vlaneseq
    %v4108 = vshrl.u32 %v4107, 7
    %v4109 = vsub.s32 %v4106, %v4108
    %v4110 = vrot.slane %v4100, %v4109
    %v4112 = vunpack.c.l.s4 1966171168
    %v4113 = vunpack.c.0.s8 %v4112
    %v4114 = vlaneseq
    %v4115 = vshrl.u32 %v4114, 7
    %v4116 = vsub.s32 %v4113, %v4115
    %v4117 = vrot.slane %v4101, %v4116
    %v4118 = vcombine.low %v4110, %v4117
    %v4119 = vcombine.high %v4110, %v4117
    %v4121 = vunpack.c.l.s4 1966171168
    %v4122 = vunpack.c.0.s8 %v4121
    %v4123 = vlaneseq
    %v4124 = vshrl.u32 %v4123, 7
    %v4125 = vsub.s32 %v4122, %v4124
    %v4126 = vrot.slane %v4118, %v4125
    %v4128 = vunpack.c.l.s4 1966171168
    %v4129 = vunpack.c.0.s8 %v4128
    %v4130 = vlaneseq
    %v4131 = vshrl.u32 %v4130, 7
    %v4132 = vsub.s32 %v4129, %v4131
    %v4133 = vrot.slane %v4119, %v4132
    %v4134 = vld [vmem:[%s856] sm:$0xff]
    %v4135 = vld [vmem:[%s858] sm:$0xff]
    %v4136 = vlaneseq
    %v4137 = vshrl.u32 %v4136, 7
    %v4138 = vsub.s32 0, %v4137
    %v4139 = vrot.slane %v4126, %v4138
    %v4140 = vlaneseq
    %v4141 = vshrl.u32 %v4140, 7
    %v4142 = vsub.s32 1, %v4141
    %v4143 = vrot.slane %v4126, %v4142
    %v4144 = vlaneseq
    %v4145 = vshrl.u32 %v4144, 7
    %v4146 = vsub.s32 2, %v4145
    %v4147 = vrot.slane %v4126, %v4146
    %v4148 = vlaneseq
    %v4149 = vshrl.u32 %v4148, 7
    %v4150 = vsub.s32 3, %v4149
    %v4151 = vrot.slane %v4126, %v4150
    %v4152 = vlaneseq
    %v4153 = vshrl.u32 %v4152, 7
    %v4154 = vsub.s32 0, %v4153
    %v4155 = vrot.slane %v4133, %v4154
    %v4156 = vlaneseq
    %v4157 = vshrl.u32 %v4156, 7
    %v4158 = vsub.s32 1, %v4157
    %v4159 = vrot.slane %v4133, %v4158
    %v4160 = vlaneseq
    %v4161 = vshrl.u32 %v4160, 7
    %v4162 = vsub.s32 2, %v4161
    %v4163 = vrot.slane %v4133, %v4162
    %v4164 = vlaneseq
    %v4165 = vshrl.u32 %v4164, 7
    %v4166 = vsub.s32 3, %v4165
    %v4167 = vrot.slane %v4133, %v4166
    %4177 = vset.pattern.permute.xlu0 0
    %4178 = vperm.xlu0 %4177, %v4135
    %v4179 = vpop.permute.xlu0 %4178
    %v4181 = vmul.f32 %v4139, %v4179
    %v4182 = vmul.f32 %v4143, %v4179
    %v4183 = vmul.f32 %v4147, %v4179
    %v4184 = vmul.f32 %v4151, %v4179
    %v4185 = vmul.f32 %v4155, %v4179
    %v4186 = vmul.f32 %v4159, %v4179
    %v4187 = vmul.f32 %v4163, %v4179
    %v4188 = vmul.f32 %v4167, %v4179
    %4190 = vset.pattern.permute.xlu0 0
    %4191 = vperm.xlu0 %4190, %v4134
    %v4192 = vpop.permute.xlu0 %4191
    %v4194 = vadd.f32 %v4192, %v4181
    %v4195 = vadd.f32 %v4192, %v4182
    %v4196 = vadd.f32 %v4192, %v4183
    %v4197 = vadd.f32 %v4192, %v4184
    %v4198 = vadd.f32 %v4192, %v4185
    %v4199 = vadd.f32 %v4192, %v4186
    %v4200 = vadd.f32 %v4192, %v4187
    %v4201 = vadd.f32 %v4192, %v4188
    %v4202 = vmul.f32 %v4089, %v4194
    %v4203 = vmul.f32 %v4090, %v4195
    %v4204 = vmul.f32 %v4091, %v4196
    %v4205 = vmul.f32 %v4092, %v4197
    %v4206 = vmul.f32 %v4093, %v4198
    %v4207 = vmul.f32 %v4094, %v4199
    %v4208 = vmul.f32 %v4095, %v4200
    %v4209 = vmul.f32 %v4096, %v4201
    %v4210 = vld [vmem:[%s934 + $0xc] sm:$0xf]
    %v4211 = vunpack.c.0.s8 %v4210
    %v4212 = vunpack.c.1.s8 %v4210
    %v4213 = vcvt.s32.f32 %v4211
    %v4214 = vcvt.s32.f32 %v4212
    %v4218 = vunpack.c.l.s4 1966171168
    %v4219 = vunpack.c.0.s8 %v4218
    %v4220 = vlaneseq
    %v4221 = vshrl.u32 %v4220, 7
    %v4222 = vsub.s32 %v4219, %v4221
    %v4223 = vrot.slane %v4213, %v4222
    %v4225 = vunpack.c.l.s4 1966171168
    %v4226 = vunpack.c.0.s8 %v4225
    %v4227 = vlaneseq
    %v4228 = vshrl.u32 %v4227, 7
    %v4229 = vsub.s32 %v4226, %v4228
    %v4230 = vrot.slane %v4214, %v4229
    %v4231 = vcombine.low %v4223, %v4230
    %v4232 = vcombine.high %v4223, %v4230
    %v4234 = vunpack.c.l.s4 1966171168
    %v4235 = vunpack.c.0.s8 %v4234
    %v4236 = vlaneseq
    %v4237 = vshrl.u32 %v4236, 7
    %v4238 = vsub.s32 %v4235, %v4237
    %v4239 = vrot.slane %v4231, %v4238
    %v4241 = vunpack.c.l.s4 1966171168
    %v4242 = vunpack.c.0.s8 %v4241
    %v4243 = vlaneseq
    %v4244 = vshrl.u32 %v4243, 7
    %v4245 = vsub.s32 %v4242, %v4244
    %v4246 = vrot.slane %v4232, %v4245
    %v4247 = vld [vmem:[%s972] sm:$0xff]
    %v4248 = vld [vmem:[%s974] sm:$0xff]
    %v4249 = vlaneseq
    %v4250 = vshrl.u32 %v4249, 7
    %v4251 = vsub.s32 0, %v4250
    %v4252 = vrot.slane %v4239, %v4251
    %v4253 = vlaneseq
    %v4254 = vshrl.u32 %v4253, 7
    %v4255 = vsub.s32 1, %v4254
    %v4256 = vrot.slane %v4239, %v4255
    %v4257 = vlaneseq
    %v4258 = vshrl.u32 %v4257, 7
    %v4259 = vsub.s32 2, %v4258
    %v4260 = vrot.slane %v4239, %v4259
    %v4261 = vlaneseq
    %v4262 = vshrl.u32 %v4261, 7
    %v4263 = vsub.s32 3, %v4262
    %v4264 = vrot.slane %v4239, %v4263
    %v4265 = vlaneseq
    %v4266 = vshrl.u32 %v4265, 7
    %v4267 = vsub.s32 0, %v4266
    %v4268 = vrot.slane %v4246, %v4267
    %v4269 = vlaneseq
    %v4270 = vshrl.u32 %v4269, 7
    %v4271 = vsub.s32 1, %v4270
    %v4272 = vrot.slane %v4246, %v4271
    %v4273 = vlaneseq
    %v4274 = vshrl.u32 %v4273, 7
    %v4275 = vsub.s32 2, %v4274
    %v4276 = vrot.slane %v4246, %v4275
    %v4277 = vlaneseq
    %v4278 = vshrl.u32 %v4277, 7
    %v4279 = vsub.s32 3, %v4278
    %v4280 = vrot.slane %v4246, %v4279
    %4290 = vset.pattern.permute.xlu0 0
    %4291 = vperm.xlu0 %4290, %v4248
    %v4292 = vpop.permute.xlu0 %4291
    %v4294 = vmul.f32 %v4252, %v4292
    %v4295 = vmul.f32 %v4256, %v4292
    %v4296 = vmul.f32 %v4260, %v4292
    %v4297 = vmul.f32 %v4264, %v4292
    %v4298 = vmul.f32 %v4268, %v4292
    %v4299 = vmul.f32 %v4272, %v4292
    %v4300 = vmul.f32 %v4276, %v4292
    %v4301 = vmul.f32 %v4280, %v4292
    %4303 = vset.pattern.permute.xlu0 0
    %4304 = vperm.xlu0 %4303, %v4247
    %v4305 = vpop.permute.xlu0 %4304
    %v4307 = vadd.f32 %v4305, %v4294
    %v4308 = vadd.f32 %v4305, %v4295
    %v4309 = vadd.f32 %v4305, %v4296
    %v4310 = vadd.f32 %v4305, %v4297
    %v4311 = vadd.f32 %v4305, %v4298
    %v4312 = vadd.f32 %v4305, %v4299
    %v4313 = vadd.f32 %v4305, %v4300
    %v4314 = vadd.f32 %v4305, %v4301
    %v4315 = vmul.f32 %v4202, %v4307
    %v4316 = vmul.f32 %v4203, %v4308
    %v4317 = vmul.f32 %v4204, %v4309
    %v4318 = vmul.f32 %v4205, %v4310
    %v4319 = vmul.f32 %v4206, %v4311
    %v4320 = vmul.f32 %v4207, %v4312
    %v4321 = vmul.f32 %v4208, %v4313
    %v4322 = vmul.f32 %v4209, %v4314
    %v4323 = vsub.f32 0.5, %v4315
    %v4324 = vsub.f32 0.5, %v4316
    %v4325 = vsub.f32 0.5, %v4317
    %v4326 = vsub.f32 0.5, %v4318
    %v4327 = vsub.f32 0.5, %v4319
    %v4328 = vsub.f32 0.5, %v4320
    %v4329 = vsub.f32 0.5, %v4321
    %v4330 = vsub.f32 0.5, %v4322
    %v4331 = vmul.f32 %v4323, 10.0
    %v4332 = vmul.f32 %v4324, 10.0
    %v4333 = vmul.f32 %v4325, 10.0
    %v4334 = vmul.f32 %v4326, 10.0
    %v4335 = vmul.f32 %v4327, 10.0
    %v4336 = vmul.f32 %v4328, 10.0
    %v4337 = vmul.f32 %v4329, 10.0
    %v4338 = vmul.f32 %v4330, 10.0
    %v4339 = vmul.f32 %v4331, 1.442695
    %v4340 = vpow.pop %v4339
    %v4341 = vmul.f32 %v4332, 1.442695
    %v4342 = vpow.pop %v4341
    %v4343 = vmul.f32 %v4333, 1.442695
    %v4344 = vpow.pop %v4343
    %v4345 = vmul.f32 %v4334, 1.442695
    %v4346 = vpow.pop %v4345
    %v4347 = vmul.f32 %v4335, 1.442695
    %v4348 = vpow.pop %v4347
    %v4349 = vmul.f32 %v4336, 1.442695
    %v4350 = vpow.pop %v4349
    %v4351 = vmul.f32 %v4337, 1.442695
    %v4352 = vpow.pop %v4351
    %v4353 = vmul.f32 %v4338, 1.442695
    %v4354 = vpow.pop %v4353
    %v4355 = vadd.f32 %v4340, 1.0
    %v4356 = vadd.f32 %v4342, 1.0
    %v4357 = vadd.f32 %v4344, 1.0
    %v4358 = vadd.f32 %v4346, 1.0
    %v4359 = vadd.f32 %v4348, 1.0
    %v4360 = vadd.f32 %v4350, 1.0
    %v4361 = vadd.f32 %v4352, 1.0
    %v4362 = vadd.f32 %v4354, 1.0
    %v4363 = vrcp.pop %v4355
    %v4364 = vmul.f32 1.0, %v4363
    %v4365 = vrcp.pop %v4356
    %v4366 = vmul.f32 1.0, %v4365
    %v4367 = vrcp.pop %v4357
    %v4368 = vmul.f32 1.0, %v4367
    %v4369 = vrcp.pop %v4358
    %v4370 = vmul.f32 1.0, %v4369
    %v4371 = vrcp.pop %v4359
    %v4372 = vmul.f32 1.0, %v4371
    %v4373 = vrcp.pop %v4360
    %v4374 = vmul.f32 1.0, %v4373
    %v4375 = vrcp.pop %v4361
    %v4376 = vmul.f32 1.0, %v4375
    %v4377 = vrcp.pop %v4362
    %v4378 = vmul.f32 1.0, %v4377
    %v4379 = vld [vmem:[#allocation2] sm:$0x3]
    %v4380 = vadd.f32 %v4364, %v4366
    %v4381 = vadd.f32 %v4380, %v4368
    %v4382 = vadd.f32 %v4381, %v4370
    %4383 = vadd.xlane.f32.xlu0 %v4382
    %v4384 = vpop.xlane.xlu0 %4383
    %v4385 = vadd.f32 %v4372, %v4374
    %v4386 = vadd.f32 %v4385, %v4376
    %v4387 = vadd.f32 %v4386, %v4378
    %4388 = vadd.xlane.f32.xlu0 %v4387
    %v4389 = vpop.xlane.xlu0 %4388
    %v4392 = vlaneseq
    %v4393 = vshrl.u32 %v4392, 7
    %v4394 = vsub.s32 %v1120, %v4393
    %v4395 = vrot.slane %v4384, %v4394
    %v4396 = vlaneseq
    %v4397 = vshrl.u32 %v4396, 7
    %v4398 = vsub.s32 %v1120, %v4397
    %v4399 = vrot.slane %v4389, %v4398
    %v4400 = vsel %vm1129, %v4399, %v4395
    %v4402 = vadd.f32 %v4379, %v4400
    %4403 = vst.msk [vmem:[#allocation2] sm:$0x3] %vm15, %v4402
    %v4404 = vld [vmem:[%s0 + $0x10] sm:$0xf]
    %v4405 = vunpack.c.0.s8 %v4404
    %v4406 = vunpack.c.1.s8 %v4404
    %v4407 = vcvt.s32.f32 %v4405
    %v4408 = vcvt.s32.f32 %v4406
    %v4412 = vunpack.c.l.s4 1966171168
    %v4413 = vunpack.c.0.s8 %v4412
    %v4414 = vlaneseq
    %v4415 = vshrl.u32 %v4414, 7
    %v4416 = vsub.s32 %v4413, %v4415
    %v4417 = vrot.slane %v4407, %v4416
    %v4419 = vunpack.c.l.s4 1966171168
    %v4420 = vunpack.c.0.s8 %v4419
    %v4421 = vlaneseq
    %v4422 = vshrl.u32 %v4421, 7
    %v4423 = vsub.s32 %v4420, %v4422
    %v4424 = vrot.slane %v4408, %v4423
    %v4425 = vcombine.low %v4417, %v4424
    %v4426 = vcombine.high %v4417, %v4424
    %v4428 = vunpack.c.l.s4 1966171168
    %v4429 = vunpack.c.0.s8 %v4428
    %v4430 = vlaneseq
    %v4431 = vshrl.u32 %v4430, 7
    %v4432 = vsub.s32 %v4429, %v4431
    %v4433 = vrot.slane %v4425, %v4432
    %v4435 = vunpack.c.l.s4 1966171168
    %v4436 = vunpack.c.0.s8 %v4435
    %v4437 = vlaneseq
    %v4438 = vshrl.u32 %v4437, 7
    %v4439 = vsub.s32 %v4436, %v4438
    %v4440 = vrot.slane %v4426, %v4439
    %v4441 = vld [vmem:[%s1] sm:$0xff]
    %v4442 = vld [vmem:[%s2] sm:$0xff]
    %v4443 = vlaneseq
    %v4444 = vshrl.u32 %v4443, 7
    %v4445 = vsub.s32 0, %v4444
    %v4446 = vrot.slane %v4433, %v4445
    %v4447 = vlaneseq
    %v4448 = vshrl.u32 %v4447, 7
    %v4449 = vsub.s32 1, %v4448
    %v4450 = vrot.slane %v4433, %v4449
    %v4451 = vlaneseq
    %v4452 = vshrl.u32 %v4451, 7
    %v4453 = vsub.s32 2, %v4452
    %v4454 = vrot.slane %v4433, %v4453
    %v4455 = vlaneseq
    %v4456 = vshrl.u32 %v4455, 7
    %v4457 = vsub.s32 3, %v4456
    %v4458 = vrot.slane %v4433, %v4457
    %v4459 = vlaneseq
    %v4460 = vshrl.u32 %v4459, 7
    %v4461 = vsub.s32 0, %v4460
    %v4462 = vrot.slane %v4440, %v4461
    %v4463 = vlaneseq
    %v4464 = vshrl.u32 %v4463, 7
    %v4465 = vsub.s32 1, %v4464
    %v4466 = vrot.slane %v4440, %v4465
    %v4467 = vlaneseq
    %v4468 = vshrl.u32 %v4467, 7
    %v4469 = vsub.s32 2, %v4468
    %v4470 = vrot.slane %v4440, %v4469
    %v4471 = vlaneseq
    %v4472 = vshrl.u32 %v4471, 7
    %v4473 = vsub.s32 3, %v4472
    %v4474 = vrot.slane %v4440, %v4473
    %4484 = vset.pattern.permute.xlu0 0
    %4485 = vperm.xlu0 %4484, %v4442
    %v4486 = vpop.permute.xlu0 %4485
    %v4488 = vmul.f32 %v4446, %v4486
    %v4489 = vmul.f32 %v4450, %v4486
    %v4490 = vmul.f32 %v4454, %v4486
    %v4491 = vmul.f32 %v4458, %v4486
    %v4492 = vmul.f32 %v4462, %v4486
    %v4493 = vmul.f32 %v4466, %v4486
    %v4494 = vmul.f32 %v4470, %v4486
    %v4495 = vmul.f32 %v4474, %v4486
    %4497 = vset.pattern.permute.xlu0 0
    %4498 = vperm.xlu0 %4497, %v4441
    %v4499 = vpop.permute.xlu0 %4498
    %v4501 = vadd.f32 %v4499, %v4488
    %v4502 = vadd.f32 %v4499, %v4489
    %v4503 = vadd.f32 %v4499, %v4490
    %v4504 = vadd.f32 %v4499, %v4491
    %v4505 = vadd.f32 %v4499, %v4492
    %v4506 = vadd.f32 %v4499, %v4493
    %v4507 = vadd.f32 %v4499, %v4494
    %v4508 = vadd.f32 %v4499, %v4495
    %v4509 = vld [vmem:[%s122 + $0x10] sm:$0xf]
    %v4510 = vunpack.c.0.s8 %v4509
    %v4511 = vunpack.c.1.s8 %v4509
    %v4512 = vcvt.s32.f32 %v4510
    %v4513 = vcvt.s32.f32 %v4511
    %v4517 = vunpack.c.l.s4 1966171168
    %v4518 = vunpack.c.0.s8 %v4517
    %v4519 = vlaneseq
    %v4520 = vshrl.u32 %v4519, 7
    %v4521 = vsub.s32 %v4518, %v4520
    %v4522 = vrot.slane %v4512, %v4521
    %v4524 = vunpack.c.l.s4 1966171168
    %v4525 = vunpack.c.0.s8 %v4524
    %v4526 = vlaneseq
    %v4527 = vshrl.u32 %v4526, 7
    %v4528 = vsub.s32 %v4525, %v4527
    %v4529 = vrot.slane %v4513, %v4528
    %v4530 = vcombine.low %v4522, %v4529
    %v4531 = vcombine.high %v4522, %v4529
    %v4533 = vunpack.c.l.s4 1966171168
    %v4534 = vunpack.c.0.s8 %v4533
    %v4535 = vlaneseq
    %v4536 = vshrl.u32 %v4535, 7
    %v4537 = vsub.s32 %v4534, %v4536
    %v4538 = vrot.slane %v4530, %v4537
    %v4540 = vunpack.c.l.s4 1966171168
    %v4541 = vunpack.c.0.s8 %v4540
    %v4542 = vlaneseq
    %v4543 = vshrl.u32 %v4542, 7
    %v4544 = vsub.s32 %v4541, %v4543
    %v4545 = vrot.slane %v4531, %v4544
    %v4546 = vld [vmem:[%s160] sm:$0xff]
    %v4547 = vld [vmem:[%s162] sm:$0xff]
    %v4548 = vlaneseq
    %v4549 = vshrl.u32 %v4548, 7
    %v4550 = vsub.s32 0, %v4549
    %v4551 = vrot.slane %v4538, %v4550
    %v4552 = vlaneseq
    %v4553 = vshrl.u32 %v4552, 7
    %v4554 = vsub.s32 1, %v4553
    %v4555 = vrot.slane %v4538, %v4554
    %v4556 = vlaneseq
    %v4557 = vshrl.u32 %v4556, 7
    %v4558 = vsub.s32 2, %v4557
    %v4559 = vrot.slane %v4538, %v4558
    %v4560 = vlaneseq
    %v4561 = vshrl.u32 %v4560, 7
    %v4562 = vsub.s32 3, %v4561
    %v4563 = vrot.slane %v4538, %v4562
    %v4564 = vlaneseq
    %v4565 = vshrl.u32 %v4564, 7
    %v4566 = vsub.s32 0, %v4565
    %v4567 = vrot.slane %v4545, %v4566
    %v4568 = vlaneseq
    %v4569 = vshrl.u32 %v4568, 7
    %v4570 = vsub.s32 1, %v4569
    %v4571 = vrot.slane %v4545, %v4570
    %v4572 = vlaneseq
    %v4573 = vshrl.u32 %v4572, 7
    %v4574 = vsub.s32 2, %v4573
    %v4575 = vrot.slane %v4545, %v4574
    %v4576 = vlaneseq
    %v4577 = vshrl.u32 %v4576, 7
    %v4578 = vsub.s32 3, %v4577
    %v4579 = vrot.slane %v4545, %v4578
    %4589 = vset.pattern.permute.xlu0 0
    %4590 = vperm.xlu0 %4589, %v4547
    %v4591 = vpop.permute.xlu0 %4590
    %v4593 = vmul.f32 %v4551, %v4591
    %v4594 = vmul.f32 %v4555, %v4591
    %v4595 = vmul.f32 %v4559, %v4591
    %v4596 = vmul.f32 %v4563, %v4591
    %v4597 = vmul.f32 %v4567, %v4591
    %v4598 = vmul.f32 %v4571, %v4591
    %v4599 = vmul.f32 %v4575, %v4591
    %v4600 = vmul.f32 %v4579, %v4591
    %4602 = vset.pattern.permute.xlu0 0
    %4603 = vperm.xlu0 %4602, %v4546
    %v4604 = vpop.permute.xlu0 %4603
    %v4606 = vadd.f32 %v4604, %v4593
    %v4607 = vadd.f32 %v4604, %v4594
    %v4608 = vadd.f32 %v4604, %v4595
    %v4609 = vadd.f32 %v4604, %v4596
    %v4610 = vadd.f32 %v4604, %v4597
    %v4611 = vadd.f32 %v4604, %v4598
    %v4612 = vadd.f32 %v4604, %v4599
    %v4613 = vadd.f32 %v4604, %v4600
    %v4614 = vmul.f32 %v4501, %v4606
    %v4615 = vmul.f32 %v4502, %v4607
    %v4616 = vmul.f32 %v4503, %v4608
    %v4617 = vmul.f32 %v4504, %v4609
    %v4618 = vmul.f32 %v4505, %v4610
    %v4619 = vmul.f32 %v4506, %v4611
    %v4620 = vmul.f32 %v4507, %v4612
    %v4621 = vmul.f32 %v4508, %v4613
    %v4622 = vld [vmem:[%s238 + $0x10] sm:$0xf]
    %v4623 = vunpack.c.0.s8 %v4622
    %v4624 = vunpack.c.1.s8 %v4622
    %v4625 = vcvt.s32.f32 %v4623
    %v4626 = vcvt.s32.f32 %v4624
    %v4630 = vunpack.c.l.s4 1966171168
    %v4631 = vunpack.c.0.s8 %v4630
    %v4632 = vlaneseq
    %v4633 = vshrl.u32 %v4632, 7
    %v4634 = vsub.s32 %v4631, %v4633
    %v4635 = vrot.slane %v4625, %v4634
    %v4637 = vunpack.c.l.s4 1966171168
    %v4638 = vunpack.c.0.s8 %v4637
    %v4639 = vlaneseq
    %v4640 = vshrl.u32 %v4639, 7
    %v4641 = vsub.s32 %v4638, %v4640
    %v4642 = vrot.slane %v4626, %v4641
    %v4643 = vcombine.low %v4635, %v4642
    %v4644 = vcombine.high %v4635, %v4642
    %v4646 = vunpack.c.l.s4 1966171168
    %v4647 = vunpack.c.0.s8 %v4646
    %v4648 = vlaneseq
    %v4649 = vshrl.u32 %v4648, 7
    %v4650 = vsub.s32 %v4647, %v4649
    %v4651 = vrot.slane %v4643, %v4650
    %v4653 = vunpack.c.l.s4 1966171168
    %v4654 = vunpack.c.0.s8 %v4653
    %v4655 = vlaneseq
    %v4656 = vshrl.u32 %v4655, 7
    %v4657 = vsub.s32 %v4654, %v4656
    %v4658 = vrot.slane %v4644, %v4657
    %v4659 = vld [vmem:[%s276] sm:$0xff]
    %v4660 = vld [vmem:[%s278] sm:$0xff]
    %v4661 = vlaneseq
    %v4662 = vshrl.u32 %v4661, 7
    %v4663 = vsub.s32 0, %v4662
    %v4664 = vrot.slane %v4651, %v4663
    %v4665 = vlaneseq
    %v4666 = vshrl.u32 %v4665, 7
    %v4667 = vsub.s32 1, %v4666
    %v4668 = vrot.slane %v4651, %v4667
    %v4669 = vlaneseq
    %v4670 = vshrl.u32 %v4669, 7
    %v4671 = vsub.s32 2, %v4670
    %v4672 = vrot.slane %v4651, %v4671
    %v4673 = vlaneseq
    %v4674 = vshrl.u32 %v4673, 7
    %v4675 = vsub.s32 3, %v4674
    %v4676 = vrot.slane %v4651, %v4675
    %v4677 = vlaneseq
    %v4678 = vshrl.u32 %v4677, 7
    %v4679 = vsub.s32 0, %v4678
    %v4680 = vrot.slane %v4658, %v4679
    %v4681 = vlaneseq
    %v4682 = vshrl.u32 %v4681, 7
    %v4683 = vsub.s32 1, %v4682
    %v4684 = vrot.slane %v4658, %v4683
    %v4685 = vlaneseq
    %v4686 = vshrl.u32 %v4685, 7
    %v4687 = vsub.s32 2, %v4686
    %v4688 = vrot.slane %v4658, %v4687
    %v4689 = vlaneseq
    %v4690 = vshrl.u32 %v4689, 7
    %v4691 = vsub.s32 3, %v4690
    %v4692 = vrot.slane %v4658, %v4691
    %4702 = vset.pattern.permute.xlu0 0
    %4703 = vperm.xlu0 %4702, %v4660
    %v4704 = vpop.permute.xlu0 %4703
    %v4706 = vmul.f32 %v4664, %v4704
    %v4707 = vmul.f32 %v4668, %v4704
    %v4708 = vmul.f32 %v4672, %v4704
    %v4709 = vmul.f32 %v4676, %v4704
    %v4710 = vmul.f32 %v4680, %v4704
    %v4711 = vmul.f32 %v4684, %v4704
    %v4712 = vmul.f32 %v4688, %v4704
    %v4713 = vmul.f32 %v4692, %v4704
    %4715 = vset.pattern.permute.xlu0 0
    %4716 = vperm.xlu0 %4715, %v4659
    %v4717 = vpop.permute.xlu0 %4716
    %v4719 = vadd.f32 %v4717, %v4706
    %v4720 = vadd.f32 %v4717, %v4707
    %v4721 = vadd.f32 %v4717, %v4708
    %v4722 = vadd.f32 %v4717, %v4709
    %v4723 = vadd.f32 %v4717, %v4710
    %v4724 = vadd.f32 %v4717, %v4711
    %v4725 = vadd.f32 %v4717, %v4712
    %v4726 = vadd.f32 %v4717, %v4713
    %v4727 = vmul.f32 %v4614, %v4719
    %v4728 = vmul.f32 %v4615, %v4720
    %v4729 = vmul.f32 %v4616, %v4721
    %v4730 = vmul.f32 %v4617, %v4722
    %v4731 = vmul.f32 %v4618, %v4723
    %v4732 = vmul.f32 %v4619, %v4724
    %v4733 = vmul.f32 %v4620, %v4725
    %v4734 = vmul.f32 %v4621, %v4726
    %v4735 = vld [vmem:[%s354 + $0x10] sm:$0xf]
    %v4736 = vunpack.c.0.s8 %v4735
    %v4737 = vunpack.c.1.s8 %v4735
    %v4738 = vcvt.s32.f32 %v4736
    %v4739 = vcvt.s32.f32 %v4737
    %v4743 = vunpack.c.l.s4 1966171168
    %v4744 = vunpack.c.0.s8 %v4743
    %v4745 = vlaneseq
    %v4746 = vshrl.u32 %v4745, 7
    %v4747 = vsub.s32 %v4744, %v4746
    %v4748 = vrot.slane %v4738, %v4747
    %v4750 = vunpack.c.l.s4 1966171168
    %v4751 = vunpack.c.0.s8 %v4750
    %v4752 = vlaneseq
    %v4753 = vshrl.u32 %v4752, 7
    %v4754 = vsub.s32 %v4751, %v4753
    %v4755 = vrot.slane %v4739, %v4754
    %v4756 = vcombine.low %v4748, %v4755
    %v4757 = vcombine.high %v4748, %v4755
    %v4759 = vunpack.c.l.s4 1966171168
    %v4760 = vunpack.c.0.s8 %v4759
    %v4761 = vlaneseq
    %v4762 = vshrl.u32 %v4761, 7
    %v4763 = vsub.s32 %v4760, %v4762
    %v4764 = vrot.slane %v4756, %v4763
    %v4766 = vunpack.c.l.s4 1966171168
    %v4767 = vunpack.c.0.s8 %v4766
    %v4768 = vlaneseq
    %v4769 = vshrl.u32 %v4768, 7
    %v4770 = vsub.s32 %v4767, %v4769
    %v4771 = vrot.slane %v4757, %v4770
    %v4772 = vld [vmem:[%s392] sm:$0xff]
    %v4773 = vld [vmem:[%s394] sm:$0xff]
    %v4774 = vlaneseq
    %v4775 = vshrl.u32 %v4774, 7
    %v4776 = vsub.s32 0, %v4775
    %v4777 = vrot.slane %v4764, %v4776
    %v4778 = vlaneseq
    %v4779 = vshrl.u32 %v4778, 7
    %v4780 = vsub.s32 1, %v4779
    %v4781 = vrot.slane %v4764, %v4780
    %v4782 = vlaneseq
    %v4783 = vshrl.u32 %v4782, 7
    %v4784 = vsub.s32 2, %v4783
    %v4785 = vrot.slane %v4764, %v4784
    %v4786 = vlaneseq
    %v4787 = vshrl.u32 %v4786, 7
    %v4788 = vsub.s32 3, %v4787
    %v4789 = vrot.slane %v4764, %v4788
    %v4790 = vlaneseq
    %v4791 = vshrl.u32 %v4790, 7
    %v4792 = vsub.s32 0, %v4791
    %v4793 = vrot.slane %v4771, %v4792
    %v4794 = vlaneseq
    %v4795 = vshrl.u32 %v4794, 7
    %v4796 = vsub.s32 1, %v4795
    %v4797 = vrot.slane %v4771, %v4796
    %v4798 = vlaneseq
    %v4799 = vshrl.u32 %v4798, 7
    %v4800 = vsub.s32 2, %v4799
    %v4801 = vrot.slane %v4771, %v4800
    %v4802 = vlaneseq
    %v4803 = vshrl.u32 %v4802, 7
    %v4804 = vsub.s32 3, %v4803
    %v4805 = vrot.slane %v4771, %v4804
    %4815 = vset.pattern.permute.xlu0 0
    %4816 = vperm.xlu0 %4815, %v4773
    %v4817 = vpop.permute.xlu0 %4816
    %v4819 = vmul.f32 %v4777, %v4817
    %v4820 = vmul.f32 %v4781, %v4817
    %v4821 = vmul.f32 %v4785, %v4817
    %v4822 = vmul.f32 %v4789, %v4817
    %v4823 = vmul.f32 %v4793, %v4817
    %v4824 = vmul.f32 %v4797, %v4817
    %v4825 = vmul.f32 %v4801, %v4817
    %v4826 = vmul.f32 %v4805, %v4817
    %4828 = vset.pattern.permute.xlu0 0
    %4829 = vperm.xlu0 %4828, %v4772
    %v4830 = vpop.permute.xlu0 %4829
    %v4832 = vadd.f32 %v4830, %v4819
    %v4833 = vadd.f32 %v4830, %v4820
    %v4834 = vadd.f32 %v4830, %v4821
    %v4835 = vadd.f32 %v4830, %v4822
    %v4836 = vadd.f32 %v4830, %v4823
    %v4837 = vadd.f32 %v4830, %v4824
    %v4838 = vadd.f32 %v4830, %v4825
    %v4839 = vadd.f32 %v4830, %v4826
    %v4840 = vmul.f32 %v4727, %v4832
    %v4841 = vmul.f32 %v4728, %v4833
    %v4842 = vmul.f32 %v4729, %v4834
    %v4843 = vmul.f32 %v4730, %v4835
    %v4844 = vmul.f32 %v4731, %v4836
    %v4845 = vmul.f32 %v4732, %v4837
    %v4846 = vmul.f32 %v4733, %v4838
    %v4847 = vmul.f32 %v4734, %v4839
    %v4848 = vld [vmem:[%s470 + $0x10] sm:$0xf]
    %v4849 = vunpack.c.0.s8 %v4848
    %v4850 = vunpack.c.1.s8 %v4848
    %v4851 = vcvt.s32.f32 %v4849
    %v4852 = vcvt.s32.f32 %v4850
    %v4856 = vunpack.c.l.s4 1966171168
    %v4857 = vunpack.c.0.s8 %v4856
    %v4858 = vlaneseq
    %v4859 = vshrl.u32 %v4858, 7
    %v4860 = vsub.s32 %v4857, %v4859
    %v4861 = vrot.slane %v4851, %v4860
    %v4863 = vunpack.c.l.s4 1966171168
    %v4864 = vunpack.c.0.s8 %v4863
    %v4865 = vlaneseq
    %v4866 = vshrl.u32 %v4865, 7
    %v4867 = vsub.s32 %v4864, %v4866
    %v4868 = vrot.slane %v4852, %v4867
    %v4869 = vcombine.low %v4861, %v4868
    %v4870 = vcombine.high %v4861, %v4868
    %v4872 = vunpack.c.l.s4 1966171168
    %v4873 = vunpack.c.0.s8 %v4872
    %v4874 = vlaneseq
    %v4875 = vshrl.u32 %v4874, 7
    %v4876 = vsub.s32 %v4873, %v4875
    %v4877 = vrot.slane %v4869, %v4876
    %v4879 = vunpack.c.l.s4 1966171168
    %v4880 = vunpack.c.0.s8 %v4879
    %v4881 = vlaneseq
    %v4882 = vshrl.u32 %v4881, 7
    %v4883 = vsub.s32 %v4880, %v4882
    %v4884 = vrot.slane %v4870, %v4883
    %v4885 = vld [vmem:[%s508] sm:$0xff]
    %v4886 = vld [vmem:[%s510] sm:$0xff]
    %v4887 = vlaneseq
    %v4888 = vshrl.u32 %v4887, 7
    %v4889 = vsub.s32 0, %v4888
    %v4890 = vrot.slane %v4877, %v4889
    %v4891 = vlaneseq
    %v4892 = vshrl.u32 %v4891, 7
    %v4893 = vsub.s32 1, %v4892
    %v4894 = vrot.slane %v4877, %v4893
    %v4895 = vlaneseq
    %v4896 = vshrl.u32 %v4895, 7
    %v4897 = vsub.s32 2, %v4896
    %v4898 = vrot.slane %v4877, %v4897
    %v4899 = vlaneseq
    %v4900 = vshrl.u32 %v4899, 7
    %v4901 = vsub.s32 3, %v4900
    %v4902 = vrot.slane %v4877, %v4901
    %v4903 = vlaneseq
    %v4904 = vshrl.u32 %v4903, 7
    %v4905 = vsub.s32 0, %v4904
    %v4906 = vrot.slane %v4884, %v4905
    %v4907 = vlaneseq
    %v4908 = vshrl.u32 %v4907, 7
    %v4909 = vsub.s32 1, %v4908
    %v4910 = vrot.slane %v4884, %v4909
    %v4911 = vlaneseq
    %v4912 = vshrl.u32 %v4911, 7
    %v4913 = vsub.s32 2, %v4912
    %v4914 = vrot.slane %v4884, %v4913
    %v4915 = vlaneseq
    %v4916 = vshrl.u32 %v4915, 7
    %v4917 = vsub.s32 3, %v4916
    %v4918 = vrot.slane %v4884, %v4917
    %4928 = vset.pattern.permute.xlu0 0
    %4929 = vperm.xlu0 %4928, %v4886
    %v4930 = vpop.permute.xlu0 %4929
    %v4932 = vmul.f32 %v4890, %v4930
    %v4933 = vmul.f32 %v4894, %v4930
    %v4934 = vmul.f32 %v4898, %v4930
    %v4935 = vmul.f32 %v4902, %v4930
    %v4936 = vmul.f32 %v4906, %v4930
    %v4937 = vmul.f32 %v4910, %v4930
    %v4938 = vmul.f32 %v4914, %v4930
    %v4939 = vmul.f32 %v4918, %v4930
    %4941 = vset.pattern.permute.xlu0 0
    %4942 = vperm.xlu0 %4941, %v4885
    %v4943 = vpop.permute.xlu0 %4942
    %v4945 = vadd.f32 %v4943, %v4932
    %v4946 = vadd.f32 %v4943, %v4933
    %v4947 = vadd.f32 %v4943, %v4934
    %v4948 = vadd.f32 %v4943, %v4935
    %v4949 = vadd.f32 %v4943, %v4936
    %v4950 = vadd.f32 %v4943, %v4937
    %v4951 = vadd.f32 %v4943, %v4938
    %v4952 = vadd.f32 %v4943, %v4939
    %v4953 = vmul.f32 %v4840, %v4945
    %v4954 = vmul.f32 %v4841, %v4946
    %v4955 = vmul.f32 %v4842, %v4947
    %v4956 = vmul.f32 %v4843, %v4948
    %v4957 = vmul.f32 %v4844, %v4949
    %v4958 = vmul.f32 %v4845, %v4950
    %v4959 = vmul.f32 %v4846, %v4951
    %v4960 = vmul.f32 %v4847, %v4952
    %v4961 = vld [vmem:[%s586 + $0x10] sm:$0xf]
    %v4962 = vunpack.c.0.s8 %v4961
    %v4963 = vunpack.c.1.s8 %v4961
    %v4964 = vcvt.s32.f32 %v4962
    %v4965 = vcvt.s32.f32 %v4963
    %v4969 = vunpack.c.l.s4 1966171168
    %v4970 = vunpack.c.0.s8 %v4969
    %v4971 = vlaneseq
    %v4972 = vshrl.u32 %v4971, 7
    %v4973 = vsub.s32 %v4970, %v4972
    %v4974 = vrot.slane %v4964, %v4973
    %v4976 = vunpack.c.l.s4 1966171168
    %v4977 = vunpack.c.0.s8 %v4976
    %v4978 = vlaneseq
    %v4979 = vshrl.u32 %v4978, 7
    %v4980 = vsub.s32 %v4977, %v4979
    %v4981 = vrot.slane %v4965, %v4980
    %v4982 = vcombine.low %v4974, %v4981
    %v4983 = vcombine.high %v4974, %v4981
    %v4985 = vunpack.c.l.s4 1966171168
    %v4986 = vunpack.c.0.s8 %v4985
    %v4987 = vlaneseq
    %v4988 = vshrl.u32 %v4987, 7
    %v4989 = vsub.s32 %v4986, %v4988
    %v4990 = vrot.slane %v4982, %v4989
    %v4992 = vunpack.c.l.s4 1966171168
    %v4993 = vunpack.c.0.s8 %v4992
    %v4994 = vlaneseq
    %v4995 = vshrl.u32 %v4994, 7
    %v4996 = vsub.s32 %v4993, %v4995
    %v4997 = vrot.slane %v4983, %v4996
    %v4998 = vld [vmem:[%s624] sm:$0xff]
    %v4999 = vld [vmem:[%s626] sm:$0xff]
    %v5000 = vlaneseq
    %v5001 = vshrl.u32 %v5000, 7
    %v5002 = vsub.s32 0, %v5001
    %v5003 = vrot.slane %v4990, %v5002
    %v5004 = vlaneseq
    %v5005 = vshrl.u32 %v5004, 7
    %v5006 = vsub.s32 1, %v5005
    %v5007 = vrot.slane %v4990, %v5006
    %v5008 = vlaneseq
    %v5009 = vshrl.u32 %v5008, 7
    %v5010 = vsub.s32 2, %v5009
    %v5011 = vrot.slane %v4990, %v5010
    %v5012 = vlaneseq
    %v5013 = vshrl.u32 %v5012, 7
    %v5014 = vsub.s32 3, %v5013
    %v5015 = vrot.slane %v4990, %v5014
    %v5016 = vlaneseq
    %v5017 = vshrl.u32 %v5016, 7
    %v5018 = vsub.s32 0, %v5017
    %v5019 = vrot.slane %v4997, %v5018
    %v5020 = vlaneseq
    %v5021 = vshrl.u32 %v5020, 7
    %v5022 = vsub.s32 1, %v5021
    %v5023 = vrot.slane %v4997, %v5022
    %v5024 = vlaneseq
    %v5025 = vshrl.u32 %v5024, 7
    %v5026 = vsub.s32 2, %v5025
    %v5027 = vrot.slane %v4997, %v5026
    %v5028 = vlaneseq
    %v5029 = vshrl.u32 %v5028, 7
    %v5030 = vsub.s32 3, %v5029
    %v5031 = vrot.slane %v4997, %v5030
    %5041 = vset.pattern.permute.xlu0 0
    %5042 = vperm.xlu0 %5041, %v4999
    %v5043 = vpop.permute.xlu0 %5042
    %v5045 = vmul.f32 %v5003, %v5043
    %v5046 = vmul.f32 %v5007, %v5043
    %v5047 = vmul.f32 %v5011, %v5043
    %v5048 = vmul.f32 %v5015, %v5043
    %v5049 = vmul.f32 %v5019, %v5043
    %v5050 = vmul.f32 %v5023, %v5043
    %v5051 = vmul.f32 %v5027, %v5043
    %v5052 = vmul.f32 %v5031, %v5043
    %5054 = vset.pattern.permute.xlu0 0
    %5055 = vperm.xlu0 %5054, %v4998
    %v5056 = vpop.permute.xlu0 %5055
    %v5058 = vadd.f32 %v5056, %v5045
    %v5059 = vadd.f32 %v5056, %v5046
    %v5060 = vadd.f32 %v5056, %v5047
    %v5061 = vadd.f32 %v5056, %v5048
    %v5062 = vadd.f32 %v5056, %v5049
    %v5063 = vadd.f32 %v5056, %v5050
    %v5064 = vadd.f32 %v5056, %v5051
    %v5065 = vadd.f32 %v5056, %v5052
    %v5066 = vmul.f32 %v4953, %v5058
    %v5067 = vmul.f32 %v4954, %v5059
    %v5068 = vmul.f32 %v4955, %v5060
    %v5069 = vmul.f32 %v4956, %v5061
    %v5070 = vmul.f32 %v4957, %v5062
    %v5071 = vmul.f32 %v4958, %v5063
    %v5072 = vmul.f32 %v4959, %v5064
    %v5073 = vmul.f32 %v4960, %v5065
    %v5074 = vld [vmem:[%s702 + $0x10] sm:$0xf]
    %v5075 = vunpack.c.0.s8 %v5074
    %v5076 = vunpack.c.1.s8 %v5074
    %v5077 = vcvt.s32.f32 %v5075
    %v5078 = vcvt.s32.f32 %v5076
    %v5082 = vunpack.c.l.s4 1966171168
    %v5083 = vunpack.c.0.s8 %v5082
    %v5084 = vlaneseq
    %v5085 = vshrl.u32 %v5084, 7
    %v5086 = vsub.s32 %v5083, %v5085
    %v5087 = vrot.slane %v5077, %v5086
    %v5089 = vunpack.c.l.s4 1966171168
    %v5090 = vunpack.c.0.s8 %v5089
    %v5091 = vlaneseq
    %v5092 = vshrl.u32 %v5091, 7
    %v5093 = vsub.s32 %v5090, %v5092
    %v5094 = vrot.slane %v5078, %v5093
    %v5095 = vcombine.low %v5087, %v5094
    %v5096 = vcombine.high %v5087, %v5094
    %v5098 = vunpack.c.l.s4 1966171168
    %v5099 = vunpack.c.0.s8 %v5098
    %v5100 = vlaneseq
    %v5101 = vshrl.u32 %v5100, 7
    %v5102 = vsub.s32 %v5099, %v5101
    %v5103 = vrot.slane %v5095, %v5102
    %v5105 = vunpack.c.l.s4 1966171168
    %v5106 = vunpack.c.0.s8 %v5105
    %v5107 = vlaneseq
    %v5108 = vshrl.u32 %v5107, 7
    %v5109 = vsub.s32 %v5106, %v5108
    %v5110 = vrot.slane %v5096, %v5109
    %v5111 = vld [vmem:[%s740] sm:$0xff]
    %v5112 = vld [vmem:[%s742] sm:$0xff]
    %v5113 = vlaneseq
    %v5114 = vshrl.u32 %v5113, 7
    %v5115 = vsub.s32 0, %v5114
    %v5116 = vrot.slane %v5103, %v5115
    %v5117 = vlaneseq
    %v5118 = vshrl.u32 %v5117, 7
    %v5119 = vsub.s32 1, %v5118
    %v5120 = vrot.slane %v5103, %v5119
    %v5121 = vlaneseq
    %v5122 = vshrl.u32 %v5121, 7
    %v5123 = vsub.s32 2, %v5122
    %v5124 = vrot.slane %v5103, %v5123
    %v5125 = vlaneseq
    %v5126 = vshrl.u32 %v5125, 7
    %v5127 = vsub.s32 3, %v5126
    %v5128 = vrot.slane %v5103, %v5127
    %v5129 = vlaneseq
    %v5130 = vshrl.u32 %v5129, 7
    %v5131 = vsub.s32 0, %v5130
    %v5132 = vrot.slane %v5110, %v5131
    %v5133 = vlaneseq
    %v5134 = vshrl.u32 %v5133, 7
    %v5135 = vsub.s32 1, %v5134
    %v5136 = vrot.slane %v5110, %v5135
    %v5137 = vlaneseq
    %v5138 = vshrl.u32 %v5137, 7
    %v5139 = vsub.s32 2, %v5138
    %v5140 = vrot.slane %v5110, %v5139
    %v5141 = vlaneseq
    %v5142 = vshrl.u32 %v5141, 7
    %v5143 = vsub.s32 3, %v5142
    %v5144 = vrot.slane %v5110, %v5143
    %5154 = vset.pattern.permute.xlu0 0
    %5155 = vperm.xlu0 %5154, %v5112
    %v5156 = vpop.permute.xlu0 %5155
    %v5158 = vmul.f32 %v5116, %v5156
    %v5159 = vmul.f32 %v5120, %v5156
    %v5160 = vmul.f32 %v5124, %v5156
    %v5161 = vmul.f32 %v5128, %v5156
    %v5162 = vmul.f32 %v5132, %v5156
    %v5163 = vmul.f32 %v5136, %v5156
    %v5164 = vmul.f32 %v5140, %v5156
    %v5165 = vmul.f32 %v5144, %v5156
    %5167 = vset.pattern.permute.xlu0 0
    %5168 = vperm.xlu0 %5167, %v5111
    %v5169 = vpop.permute.xlu0 %5168
    %v5171 = vadd.f32 %v5169, %v5158
    %v5172 = vadd.f32 %v5169, %v5159
    %v5173 = vadd.f32 %v5169, %v5160
    %v5174 = vadd.f32 %v5169, %v5161
    %v5175 = vadd.f32 %v5169, %v5162
    %v5176 = vadd.f32 %v5169, %v5163
    %v5177 = vadd.f32 %v5169, %v5164
    %v5178 = vadd.f32 %v5169, %v5165
    %v5179 = vmul.f32 %v5066, %v5171
    %v5180 = vmul.f32 %v5067, %v5172
    %v5181 = vmul.f32 %v5068, %v5173
    %v5182 = vmul.f32 %v5069, %v5174
    %v5183 = vmul.f32 %v5070, %v5175
    %v5184 = vmul.f32 %v5071, %v5176
    %v5185 = vmul.f32 %v5072, %v5177
    %v5186 = vmul.f32 %v5073, %v5178
    %v5187 = vld [vmem:[%s818 + $0x10] sm:$0xf]
    %v5188 = vunpack.c.0.s8 %v5187
    %v5189 = vunpack.c.1.s8 %v5187
    %v5190 = vcvt.s32.f32 %v5188
    %v5191 = vcvt.s32.f32 %v5189
    %v5195 = vunpack.c.l.s4 1966171168
    %v5196 = vunpack.c.0.s8 %v5195
    %v5197 = vlaneseq
    %v5198 = vshrl.u32 %v5197, 7
    %v5199 = vsub.s32 %v5196, %v5198
    %v5200 = vrot.slane %v5190, %v5199
    %v5202 = vunpack.c.l.s4 1966171168
    %v5203 = vunpack.c.0.s8 %v5202
    %v5204 = vlaneseq
    %v5205 = vshrl.u32 %v5204, 7
    %v5206 = vsub.s32 %v5203, %v5205
    %v5207 = vrot.slane %v5191, %v5206
    %v5208 = vcombine.low %v5200, %v5207
    %v5209 = vcombine.high %v5200, %v5207
    %v5211 = vunpack.c.l.s4 1966171168
    %v5212 = vunpack.c.0.s8 %v5211
    %v5213 = vlaneseq
    %v5214 = vshrl.u32 %v5213, 7
    %v5215 = vsub.s32 %v5212, %v5214
    %v5216 = vrot.slane %v5208, %v5215
    %v5218 = vunpack.c.l.s4 1966171168
    %v5219 = vunpack.c.0.s8 %v5218
    %v5220 = vlaneseq
    %v5221 = vshrl.u32 %v5220, 7
    %v5222 = vsub.s32 %v5219, %v5221
    %v5223 = vrot.slane %v5209, %v5222
    %v5224 = vld [vmem:[%s856] sm:$0xff]
    %v5225 = vld [vmem:[%s858] sm:$0xff]
    %v5226 = vlaneseq
    %v5227 = vshrl.u32 %v5226, 7
    %v5228 = vsub.s32 0, %v5227
    %v5229 = vrot.slane %v5216, %v5228
    %v5230 = vlaneseq
    %v5231 = vshrl.u32 %v5230, 7
    %v5232 = vsub.s32 1, %v5231
    %v5233 = vrot.slane %v5216, %v5232
    %v5234 = vlaneseq
    %v5235 = vshrl.u32 %v5234, 7
    %v5236 = vsub.s32 2, %v5235
    %v5237 = vrot.slane %v5216, %v5236
    %v5238 = vlaneseq
    %v5239 = vshrl.u32 %v5238, 7
    %v5240 = vsub.s32 3, %v5239
    %v5241 = vrot.slane %v5216, %v5240
    %v5242 = vlaneseq
    %v5243 = vshrl.u32 %v5242, 7
    %v5244 = vsub.s32 0, %v5243
    %v5245 = vrot.slane %v5223, %v5244
    %v5246 = vlaneseq
    %v5247 = vshrl.u32 %v5246, 7
    %v5248 = vsub.s32 1, %v5247
    %v5249 = vrot.slane %v5223, %v5248
    %v5250 = vlaneseq
    %v5251 = vshrl.u32 %v5250, 7
    %v5252 = vsub.s32 2, %v5251
    %v5253 = vrot.slane %v5223, %v5252
    %v5254 = vlaneseq
    %v5255 = vshrl.u32 %v5254, 7
    %v5256 = vsub.s32 3, %v5255
    %v5257 = vrot.slane %v5223, %v5256
    %5267 = vset.pattern.permute.xlu0 0
    %5268 = vperm.xlu0 %5267, %v5225
    %v5269 = vpop.permute.xlu0 %5268
    %v5271 = vmul.f32 %v5229, %v5269
    %v5272 = vmul.f32 %v5233, %v5269
    %v5273 = vmul.f32 %v5237, %v5269
    %v5274 = vmul.f32 %v5241, %v5269
    %v5275 = vmul.f32 %v5245, %v5269
    %v5276 = vmul.f32 %v5249, %v5269
    %v5277 = vmul.f32 %v5253, %v5269
    %v5278 = vmul.f32 %v5257, %v5269
    %5280 = vset.pattern.permute.xlu0 0
    %5281 = vperm.xlu0 %5280, %v5224
    %v5282 = vpop.permute.xlu0 %5281
    %v5284 = vadd.f32 %v5282, %v5271
    %v5285 = vadd.f32 %v5282, %v5272
    %v5286 = vadd.f32 %v5282, %v5273
    %v5287 = vadd.f32 %v5282, %v5274
    %v5288 = vadd.f32 %v5282, %v5275
    %v5289 = vadd.f32 %v5282, %v5276
    %v5290 = vadd.f32 %v5282, %v5277
    %v5291 = vadd.f32 %v5282, %v5278
    %v5292 = vmul.f32 %v5179, %v5284
    %v5293 = vmul.f32 %v5180, %v5285
    %v5294 = vmul.f32 %v5181, %v5286
    %v5295 = vmul.f32 %v5182, %v5287
    %v5296 = vmul.f32 %v5183, %v5288
    %v5297 = vmul.f32 %v5184, %v5289
    %v5298 = vmul.f32 %v5185, %v5290
    %v5299 = vmul.f32 %v5186, %v5291
    %v5300 = vld [vmem:[%s934 + $0x10] sm:$0xf]
    %v5301 = vunpack.c.0.s8 %v5300
    %v5302 = vunpack.c.1.s8 %v5300
    %v5303 = vcvt.s32.f32 %v5301
    %v5304 = vcvt.s32.f32 %v5302
    %v5308 = vunpack.c.l.s4 1966171168
    %v5309 = vunpack.c.0.s8 %v5308
    %v5310 = vlaneseq
    %v5311 = vshrl.u32 %v5310, 7
    %v5312 = vsub.s32 %v5309, %v5311
    %v5313 = vrot.slane %v5303, %v5312
    %v5315 = vunpack.c.l.s4 1966171168
    %v5316 = vunpack.c.0.s8 %v5315
    %v5317 = vlaneseq
    %v5318 = vshrl.u32 %v5317, 7
    %v5319 = vsub.s32 %v5316, %v5318
    %v5320 = vrot.slane %v5304, %v5319
    %v5321 = vcombine.low %v5313, %v5320
    %v5322 = vcombine.high %v5313, %v5320
    %v5324 = vunpack.c.l.s4 1966171168
    %v5325 = vunpack.c.0.s8 %v5324
    %v5326 = vlaneseq
    %v5327 = vshrl.u32 %v5326, 7
    %v5328 = vsub.s32 %v5325, %v5327
    %v5329 = vrot.slane %v5321, %v5328
    %v5331 = vunpack.c.l.s4 1966171168
    %v5332 = vunpack.c.0.s8 %v5331
    %v5333 = vlaneseq
    %v5334 = vshrl.u32 %v5333, 7
    %v5335 = vsub.s32 %v5332, %v5334
    %v5336 = vrot.slane %v5322, %v5335
    %v5337 = vld [vmem:[%s972] sm:$0xff]
    %v5338 = vld [vmem:[%s974] sm:$0xff]
    %v5339 = vlaneseq
    %v5340 = vshrl.u32 %v5339, 7
    %v5341 = vsub.s32 0, %v5340
    %v5342 = vrot.slane %v5329, %v5341
    %v5343 = vlaneseq
    %v5344 = vshrl.u32 %v5343, 7
    %v5345 = vsub.s32 1, %v5344
    %v5346 = vrot.slane %v5329, %v5345
    %v5347 = vlaneseq
    %v5348 = vshrl.u32 %v5347, 7
    %v5349 = vsub.s32 2, %v5348
    %v5350 = vrot.slane %v5329, %v5349
    %v5351 = vlaneseq
    %v5352 = vshrl.u32 %v5351, 7
    %v5353 = vsub.s32 3, %v5352
    %v5354 = vrot.slane %v5329, %v5353
    %v5355 = vlaneseq
    %v5356 = vshrl.u32 %v5355, 7
    %v5357 = vsub.s32 0, %v5356
    %v5358 = vrot.slane %v5336, %v5357
    %v5359 = vlaneseq
    %v5360 = vshrl.u32 %v5359, 7
    %v5361 = vsub.s32 1, %v5360
    %v5362 = vrot.slane %v5336, %v5361
    %v5363 = vlaneseq
    %v5364 = vshrl.u32 %v5363, 7
    %v5365 = vsub.s32 2, %v5364
    %v5366 = vrot.slane %v5336, %v5365
    %v5367 = vlaneseq
    %v5368 = vshrl.u32 %v5367, 7
    %v5369 = vsub.s32 3, %v5368
    %v5370 = vrot.slane %v5336, %v5369
    %5380 = vset.pattern.permute.xlu0 0
    %5381 = vperm.xlu0 %5380, %v5338
    %v5382 = vpop.permute.xlu0 %5381
    %v5384 = vmul.f32 %v5342, %v5382
    %v5385 = vmul.f32 %v5346, %v5382
    %v5386 = vmul.f32 %v5350, %v5382
    %v5387 = vmul.f32 %v5354, %v5382
    %v5388 = vmul.f32 %v5358, %v5382
    %v5389 = vmul.f32 %v5362, %v5382
    %v5390 = vmul.f32 %v5366, %v5382
    %v5391 = vmul.f32 %v5370, %v5382
    %5393 = vset.pattern.permute.xlu0 0
    %5394 = vperm.xlu0 %5393, %v5337
    %v5395 = vpop.permute.xlu0 %5394
    %v5397 = vadd.f32 %v5395, %v5384
    %v5398 = vadd.f32 %v5395, %v5385
    %v5399 = vadd.f32 %v5395, %v5386
    %v5400 = vadd.f32 %v5395, %v5387
    %v5401 = vadd.f32 %v5395, %v5388
    %v5402 = vadd.f32 %v5395, %v5389
    %v5403 = vadd.f32 %v5395, %v5390
    %v5404 = vadd.f32 %v5395, %v5391
    %v5405 = vmul.f32 %v5292, %v5397
    %v5406 = vmul.f32 %v5293, %v5398
    %v5407 = vmul.f32 %v5294, %v5399
    %v5408 = vmul.f32 %v5295, %v5400
    %v5409 = vmul.f32 %v5296, %v5401
    %v5410 = vmul.f32 %v5297, %v5402
    %v5411 = vmul.f32 %v5298, %v5403
    %v5412 = vmul.f32 %v5299, %v5404
    %v5413 = vsub.f32 0.5, %v5405
    %v5414 = vsub.f32 0.5, %v5406
    %v5415 = vsub.f32 0.5, %v5407
    %v5416 = vsub.f32 0.5, %v5408
    %v5417 = vsub.f32 0.5, %v5409
    %v5418 = vsub.f32 0.5, %v5410
    %v5419 = vsub.f32 0.5, %v5411
    %v5420 = vsub.f32 0.5, %v5412
    %v5421 = vmul.f32 %v5413, 10.0
    %v5422 = vmul.f32 %v5414, 10.0
    %v5423 = vmul.f32 %v5415, 10.0
    %v5424 = vmul.f32 %v5416, 10.0
    %v5425 = vmul.f32 %v5417, 10.0
    %v5426 = vmul.f32 %v5418, 10.0
    %v5427 = vmul.f32 %v5419, 10.0
    %v5428 = vmul.f32 %v5420, 10.0
    %v5429 = vmul.f32 %v5421, 1.442695
    %v5430 = vpow.pop %v5429
    %v5431 = vmul.f32 %v5422, 1.442695
    %v5432 = vpow.pop %v5431
    %v5433 = vmul.f32 %v5423, 1.442695
    %v5434 = vpow.pop %v5433
    %v5435 = vmul.f32 %v5424, 1.442695
    %v5436 = vpow.pop %v5435
    %v5437 = vmul.f32 %v5425, 1.442695
    %v5438 = vpow.pop %v5437
    %v5439 = vmul.f32 %v5426, 1.442695
    %v5440 = vpow.pop %v5439
    %v5441 = vmul.f32 %v5427, 1.442695
    %v5442 = vpow.pop %v5441
    %v5443 = vmul.f32 %v5428, 1.442695
    %v5444 = vpow.pop %v5443
    %v5445 = vadd.f32 %v5430, 1.0
    %v5446 = vadd.f32 %v5432, 1.0
    %v5447 = vadd.f32 %v5434, 1.0
    %v5448 = vadd.f32 %v5436, 1.0
    %v5449 = vadd.f32 %v5438, 1.0
    %v5450 = vadd.f32 %v5440, 1.0
    %v5451 = vadd.f32 %v5442, 1.0
    %v5452 = vadd.f32 %v5444, 1.0
    %v5453 = vrcp.pop %v5445
    %v5454 = vmul.f32 1.0, %v5453
    %v5455 = vrcp.pop %v5446
    %v5456 = vmul.f32 1.0, %v5455
    %v5457 = vrcp.pop %v5447
    %v5458 = vmul.f32 1.0, %v5457
    %v5459 = vrcp.pop %v5448
    %v5460 = vmul.f32 1.0, %v5459
    %v5461 = vrcp.pop %v5449
    %v5462 = vmul.f32 1.0, %v5461
    %v5463 = vrcp.pop %v5450
    %v5464 = vmul.f32 1.0, %v5463
    %v5465 = vrcp.pop %v5451
    %v5466 = vmul.f32 1.0, %v5465
    %v5467 = vrcp.pop %v5452
    %v5468 = vmul.f32 1.0, %v5467
    %v5469 = vadd.s32 %v1120, 128
    %v5470 = vadd.s32 %v1120, 256
    %v5471 = vadd.s32 %v1120, 384
    %vm5472 = vcmp.lt.s32.totalorder %v1120, 68
    %vm5473 = vcmp.lt.s32.totalorder %v5469, 68
    %vm5474 = vcmp.lt.s32.totalorder %v5470, 68
    %vm5475 = vcmp.lt.s32.totalorder %v5471, 68
    %v5476 = vsel %vm5472, 1, 0
    %v5477 = vsel %vm5473, 1, 0
    %v5478 = vsel %vm5474, 1, 0
    %v5479 = vsel %vm5475, 1, 0
    %v5480 = vcvt.s32.f32 %v5476
    %v5481 = vcvt.s32.f32 %v5477
    %v5482 = vcvt.s32.f32 %v5478
    %v5483 = vcvt.s32.f32 %v5479
    %v5484 = vld [vmem:[#allocation2] sm:$0x3]
    %v5485 = vmul.f32 %v5454, %v5480
    %v5486 = vmul.f32 %v5456, %v5481
    %v5487 = vmul.f32 %v5458, %v5482
    %v5488 = vmul.f32 %v5460, %v5483
    %v5489 = vmul.f32 %v5462, %v5480
    %v5490 = vmul.f32 %v5464, %v5481
    %v5491 = vmul.f32 %v5466, %v5482
    %v5492 = vmul.f32 %v5468, %v5483
    %v5493 = vadd.f32 %v5485, %v5486
    %v5494 = vadd.f32 %v5493, %v5487
    %v5495 = vadd.f32 %v5494, %v5488
    %5496 = vadd.xlane.f32.xlu0 %v5495
    %v5497 = vpop.xlane.xlu0 %5496
    %v5498 = vadd.f32 %v5489, %v5490
    %v5499 = vadd.f32 %v5498, %v5491
    %v5500 = vadd.f32 %v5499, %v5492
    %5501 = vadd.xlane.f32.xlu0 %v5500
    %v5502 = vpop.xlane.xlu0 %5501
    %v5505 = vlaneseq
    %v5506 = vshrl.u32 %v5505, 7
    %v5507 = vsub.s32 %v1120, %v5506
    %v5508 = vrot.slane %v5497, %v5507
    %v5509 = vlaneseq
    %v5510 = vshrl.u32 %v5509, 7
    %v5511 = vsub.s32 %v1120, %v5510
    %v5512 = vrot.slane %v5502, %v5511
    %v5513 = vsel %vm1129, %v5512, %v5508
    %v5515 = vadd.f32 %v5484, %v5513
    %5516 = vst.msk [vmem:[#allocation2] sm:$0x3] %vm15, %v5515
    // Predicated region
    $region14: #{tpu_custom_call.1} parent=1 // pred_check
      _
    $region15: #{tpu_custom_call.1} parent=1 // pred_check_branch
      %5518 = sbr.rel (0) target = $region17
    $region16: #{tpu_custom_call.1} parent=1 // pred_region
      %s5520 = ssub.s32 32, 32
      %5521 = vsyncadd [#allocation3], %s5520
      %s5523 = sshll.u32 [#allocation2], 4
      %s5524 = int_to_ptr.vmem [resolvable:$true] %s5523
      %5526 = dma.vmem_to_hbm [thread:$0]  %s5524, 32, %s3, [#allocation3]
    $region17: #{tpu_custom_call.1} parent=1 // pred_fallthru
      _
    // Predicated region
    $region18: #{tpu_custom_call.1} parent=1 // pred_check
      _
    $region19: #{tpu_custom_call.1} parent=1 // pred_check_branch
      %5528 = sbr.rel (0) target = $region21
    $region20: #{tpu_custom_call.1} parent=1 // pred_region
      %5529 = dma.done [#allocation3], 32
    $region21: #{tpu_custom_call.1} parent=1 // pred_fallthru
      _
    %5530 = vsyncpa [#allocation3], 1

</llo_original>
